<compile_context>
chip_gen: v5e
topology: v5e:2x2
jax: 0.10.0
libtpu: 0.0.40
codegen_flags: <defaults>
</compile_context>

<pallas_src>
import functools

import numpy as np
import jax
import jax.numpy as jnp
from jax.experimental import pallas as pl
from jax.experimental.pallas import tpu as pltpu


# ----------------------------------------------------------------------------
# in-kernel helpers
# ----------------------------------------------------------------------------
def _layernorm(x, gamma, beta, eps=1e-5):
    """torch.nn.LayerNorm over the last axis (biased variance, eps=1e-5)."""
    mu = jnp.mean(x, axis=-1, keepdims=True)
    xc = x - mu
    var = jnp.mean(xc * xc, axis=-1, keepdims=True)
    return xc * jax.lax.rsqrt(var + eps) * gamma + beta


def _erf(z):
    """Abramowitz & Stegun 7.1.26 polynomial erf (max abs err ~1.5e-7).

    Uses only exp / mul / add / where so it lowers cleanly in Mosaic.
    """
    a1, a2, a3, a4, a5 = (0.254829592, -0.284496736, 1.421413741,
                          -1.453152027, 1.061405429)
    pp = 0.3275911
    az = jnp.abs(z)
    t = 1.0 / (1.0 + pp * az)
    poly = ((((a5 * t + a4) * t + a3) * t + a2) * t + a1) * t
    e = 1.0 - poly * jnp.exp(-az * az)
    return jnp.where(z >= 0, e, -e)


def _gelu_exact(x):
    """Exact (erf-based) GELU, matching torch.nn.GELU()."""
    return 0.5 * x * (1.0 + _erf(x * 0.7071067811865476))


# ----------------------------------------------------------------------------
# Pallas kernel: one full SwinTransformerBlock on a (TB*L, C) batch slab
# ----------------------------------------------------------------------------
def swin_block_kernel(x_ref, wqkv_ref, bqkv_ref, bias_ref, scale_ref,
                      wproj_ref, bproj_ref, g1_ref, bt1_ref,
                      wfc1_ref, bfc1_ref, wfc2_ref, bfc2_ref,
                      g2_ref, bt2_ref, o_ref, *, num_heads, head_dim, seq_len):
    """x_ref/o_ref: (TB*L, C).  bias_ref: (H, L, L) window/shift/mask-folded
    additive attention bias.  scale_ref: (H,) per-head cosine logit scale
    (SMEM).  All weights are pre-transposed for `x @ W`."""
    M, C = x_ref.shape
    TB = M // seq_len

    x = x_ref[...]                                                  # (M, C)

    # ---- QKV projection: one tall (M, C) @ (C, 3C) MXU matmul ----
    qkv = jnp.dot(x, wqkv_ref[...],
                  preferred_element_type=jnp.float32) + bqkv_ref[...]
    wproj = wproj_ref[...]                                          # (C, C)

    # ---- multi-head cosine attention, windows folded into bias_ref ----
    attn_out = jnp.zeros((M, C), jnp.float32)
    for h in range(num_heads):                                      # H = 4
        lo = h * head_dim
        q = qkv[:, lo:lo + head_dim]                                # (M, D)
        k = qkv[:, C + lo:C + lo + head_dim]
        v = qkv[:, 2 * C + lo:2 * C + lo + head_dim]

        # F.normalize(p=2, eps=1e-12) via rsqrt (EUP)
        qn = q * jax.lax.rsqrt(
            jnp.maximum(jnp.sum(q * q, axis=-1, keepdims=True), 1e-24))
        kn = k * jax.lax.rsqrt(
            jnp.maximum(jnp.sum(k * k, axis=-1, keepdims=True), 1e-24))
        # fold the per-head logit scale into q (single broadcast multiply)
        qn = qn * scale_ref[h]

        qn = qn.reshape(TB, seq_len, head_dim)
        kn = kn.reshape(TB, seq_len, head_dim)
        vh = v.reshape(TB, seq_len, head_dim)

        s = jnp.einsum('bqd,bkd->bqk', qn, kn,
                       preferred_element_type=jnp.float32)          # (TB,L,L)
        s = s + bias_ref[h][None]                                   # bias+mask

        # numerically-stable softmax (cross-window -1e9 entries underflow to 0)
        s = s - jnp.max(s, axis=-1, keepdims=True)
        p = jnp.exp(s)
        p = p * pl.reciprocal(jnp.sum(p, axis=-1, keepdims=True))

        oh = jnp.einsum('bqk,bkd->bqd', p, vh,
                        preferred_element_type=jnp.float32)         # (TB,L,D)

        # fold this head straight into the output projection: (M,D)@(D,C)
        attn_out = attn_out + jnp.dot(oh.reshape(M, head_dim),
                                      wproj[lo:lo + head_dim, :],
                                      preferred_element_type=jnp.float32)

    y = attn_out + bproj_ref[...]                                   # proj out

    # ---- residual + post-norm 1 ----
    x1 = x + _layernorm(y, g1_ref[...], bt1_ref[...])

    # ---- MLP (fc1 -> GELU -> fc2), tall (M, C) matmuls ----
    hdn = jnp.dot(x1, wfc1_ref[...],
                  preferred_element_type=jnp.float32) + bfc1_ref[...]
    hdn = _gelu_exact(hdn)
    mlp = jnp.dot(hdn, wfc2_ref[...],
                  preferred_element_type=jnp.float32) + bfc2_ref[...]

    # ---- residual + post-norm 2 ----
    out = x1 + _layernorm(mlp, g2_ref[...], bt2_ref[...])
    o_ref[...] = out.astype(o_ref.dtype)


def swin_block_forward(x, d, *, num_heads, grid_b):
    """Apply one SwinTransformerBlock with a single fused pallas_call."""
    B, L, C = x.shape
    H = num_heads
    D = C // H
    Ch = d['wfc1_t'].shape[1]
    if B % grid_b != 0:
        grid_b = 1
    M = (B // grid_b) * L                       # rows per grid step

    xf = x.reshape(B * L, C)                    # sublane-dense (B*L, C) slab
    kernel = functools.partial(swin_block_kernel, num_heads=H, head_dim=D,
                               seq_len=L)

    const2 = lambda b: (0, 0)
    out = pl.pallas_call(
        kernel,
        out_shape=jax.ShapeDtypeStruct((B * L, C), x.dtype),
        grid=(grid_b,),
        in_specs=[
            pl.BlockSpec((M, C), lambda b: (b, 0)),            # x slab
            pl.BlockSpec((C, 3 * C), const2),                  # qkv weight
            pl.BlockSpec((1, 3 * C), const2),                  # qkv bias
            pl.BlockSpec((H, L, L), lambda b: (0, 0, 0)),      # resident bias
            pl.BlockSpec(memory_space=pltpu.MemorySpace.SMEM),  # logit scale
            pl.BlockSpec((C, C), const2),                      # proj weight
            pl.BlockSpec((1, C), const2),                      # proj bias
            pl.BlockSpec((1, C), const2),                      # norm1 weight
            pl.BlockSpec((1, C), const2),                      # norm1 bias
            pl.BlockSpec((C, Ch), const2),                     # fc1 weight
            pl.BlockSpec((1, Ch), const2),                     # fc1 bias
            pl.BlockSpec((Ch, C), const2),                     # fc2 weight
            pl.BlockSpec((1, C), const2),                      # fc2 bias
            pl.BlockSpec((1, C), const2),                      # norm2 weight
            pl.BlockSpec((1, C), const2),                      # norm2 bias
        ],
        out_specs=pl.BlockSpec((M, C), lambda b: (b, 0)),
        compiler_params=pltpu.CompilerParams(
            dimension_semantics=("parallel",)),
    )(xf, d['wqkv_t'], d['bqkv'], d['bias'], d['scale'], d['wproj_t'],
      d['bproj'], d['g1'], d['bt1'], d['wfc1_t'], d['bfc1'], d['wfc2_t'],
      d['bfc2'], d['g2'], d['bt2'])
    return out.reshape(B, L, C)


# ----------------------------------------------------------------------------
# parameter-only (input independent) setup, plain JAX
# ----------------------------------------------------------------------------
def _rel_pos_bias(cpb_w1, cpb_b1, cpb_w2, window_size, num_heads):
    """Exact transcription of the PyTorch cpb_mlp / relative-position-bias."""
    rel = jnp.arange(-(window_size - 1), window_size,
                     dtype=jnp.float32).reshape(1, -1, 1)
    rel = rel / (window_size - 1) * 8.0
    rel = jnp.sign(rel) * jnp.log2(jnp.abs(rel) + 1.0) / np.log2(8)
    hidden = jax.nn.relu(rel @ cpb_w1.T + cpb_b1)          # (1, 2W-1, 512)
    table = (hidden @ cpb_w2.T).reshape(-1, num_heads)     # (2W-1, H)
    coords = jnp.arange(window_size)
    rpi = coords[:, None] - coords[None, :] + window_size - 1
    rpb = table[rpi.reshape(-1)].reshape(window_size, window_size, num_heads)
    rpb = jnp.transpose(rpb, (2, 0, 1))                    # (H, W, W)
    return 16.0 * jax.nn.sigmoid(rpb)


def _attn_mask(L, W, shift):
    """PyTorch SwinTransformerBlock (0 / -100) shift mask, shape (L//W, W, W)."""
    seq = jnp.zeros((L,), jnp.float32)
    seq = seq.at[L - W:L - shift].set(1.0)
    seq = seq.at[L - shift:].set(2.0)
    mw = seq.reshape(L // W, W)
    am = mw[:, None, :] - mw[:, :, None]
    return jnp.where(am != 0, -100.0, 0.0)


def _full_bias(rpb, L, W, shift, neg=-1e9):
    """Fold rel-pos bias + cyclic shift + window partition + shift mask into a
    single additive (H, L, L) attention bias on the *unshifted* sequence."""
    idx = jnp.arange(L)
    p = (idx - shift) % L                      # position in shifted sequence
    win, wp = p // W, p % W
    bias = rpb[:, wp[:, None], wp[None, :]]    # (H, L, L)
    allowed = win[:, None] == win[None, :]     # same shifted window
    if shift > 0:
        am = _attn_mask(L, W, shift)           # (L//W, W, W)
        mval = am[win[:, None], wp[:, None], wp[None, :]]
        bias = bias + mval[None]
    return jnp.where(allowed[None], bias, neg)


def prepare_block(bp, L, W, shift, num_heads):
    rpb = _rel_pos_bias(bp['cpb_w1'], bp['cpb_b1'], bp['cpb_w2'], W, num_heads)
    return dict(
        wqkv_t=bp['w_qkv'].T,
        bqkv=jnp.concatenate([bp['q_bias'], jnp.zeros_like(bp['v_bias']),
                              bp['v_bias']])[None],
        bias=_full_bias(rpb, L, W, shift),
        scale=jnp.exp(jnp.minimum(bp['logit_scale'],
                                  np.log(100.0))).reshape(num_heads),
        wproj_t=bp['w_proj'].T, bproj=bp['b_proj'][None],
        g1=bp['g1'][None], bt1=bp['bt1'][None],
        wfc1_t=bp['w_fc1'].T, bfc1=bp['b_fc1'][None],
        wfc2_t=bp['w_fc2'].T, bfc2=bp['b_fc2'][None],
        g2=bp['g2'][None], bt2=bp['bt2'][None],
    )


def basic_layer_forward(x, blocks, *, window_size, num_heads, grid_b=2):
    """BasicLayer.forward (downsample=None): alternating W-MSA / SW-MSA blocks."""
    B, L, C = x.shape
    win = L if L <= window_size else window_size
    for i, bp in enumerate(blocks):
        shift = 0 if (i % 2 == 0 or L <= window_size) else win // 2
        d = prepare_block(bp, L, win, shift, num_heads)
        x = swin_block_forward(x, d, num_heads=num_heads, grid_b=grid_b)
    return x


# ----------------------------------------------------------------------------
# pure-JAX reference that mirrors the PyTorch module operation-by-operation
# ----------------------------------------------------------------------------
def _layernorm_ref(x, gamma, beta, eps=1e-5):
    mu = jnp.mean(x, axis=-1, keepdims=True)
    var = jnp.mean((x - mu) ** 2, axis=-1, keepdims=True)
    return (x - mu) / jnp.sqrt(var + eps) * gamma + beta


def _block_reference(x, bp, shift, W, H):
    HI = jax.lax.Precision.HIGHEST
    B, L, C = x.shape
    D = C // H
    shortcut = x
    xs = jnp.roll(x, -shift, axis=1) if shift > 0 else x
    xw = xs.reshape(B * (L // W), W, C)
    B_, N, _ = xw.shape

    qkv_b = jnp.concatenate([bp['q_bias'], jnp.zeros_like(bp['v_bias']),
                             bp['v_bias']])
    qkv = jnp.einsum('bnc,dc->bnd', xw, bp['w_qkv'], precision=HI) + qkv_b
    qkv = qkv.reshape(B_, N, 3, H, D).transpose(2, 0, 3, 1, 4)
    q, k, v = qkv[0], qkv[1], qkv[2]
    qn = q / jnp.maximum(jnp.linalg.norm(q, axis=-1, keepdims=True), 1e-12)
    kn = k / jnp.maximum(jnp.linalg.norm(k, axis=-1, keepdims=True), 1e-12)
    attn = jnp.einsum('bhnd,bhmd->bhnm', qn, kn, precision=HI)
    scale = jnp.exp(jnp.minimum(bp['logit_scale'], np.log(100.0)))  # (H,1,1)
    attn = attn * scale[None]
    rpb = _rel_pos_bias(bp['cpb_w1'], bp['cpb_b1'], bp['cpb_w2'], W, H)
    attn = attn + rpb[None]
    if shift > 0:
        mask = _attn_mask(L, W, shift)
        nW = mask.shape[0]
        attn = attn.reshape(B_ // nW, nW, H, N, N) + mask[:, None][None]
        attn = attn.reshape(B_, H, N, N)
    attn = jax.nn.softmax(attn, axis=-1)
    xo = jnp.einsum('bhnm,bhmd->bhnd', attn, v, precision=HI)
    xo = xo.transpose(0, 2, 1, 3).reshape(B_, N, C)
    xo = jnp.einsum('bnc,dc->bnd', xo, bp['w_proj'], precision=HI) + bp['b_proj']
    xo = xo.reshape(B, L, C)
    if shift > 0:
        xo = jnp.roll(xo, shift, axis=1)

    x1 = shortcut + _layernorm_ref(xo, bp['g1'], bp['bt1'])
    hdn = jnp.einsum('blc,hc->blh', x1, bp['w_fc1'], precision=HI) + bp['b_fc1']
    hdn = jax.nn.gelu(hdn, approximate=False)
    mlp = jnp.einsum('blh,ch->blc', hdn, bp['w_fc2'], precision=HI) + bp['b_fc2']
    return x1 + _layernorm_ref(mlp, bp['g2'], bp['bt2'])


def basic_layer_reference(x, blocks, *, window_size, num_heads):
    B, L, C = x.shape
    win = L if L <= window_size else window_size
    for i, bp in enumerate(blocks):
        shift = 0 if (i % 2 == 0 or L <= window_size) else win // 2
        x = _block_reference(x, bp, shift, win, num_heads)
    return x


# ----------------------------------------------------------------------------
if __name__ == "__main__":
    # ---- BasicLayer config (small) ----
    dim = 32                 # num_channel
    num_heads = 4
    window_size = 8
    input_resolution = 16    # len_sequence
    depth = 2                # blocks: shift 0, then window_size // 2
    mlp_ratio = 4.0
    batch = 8

    L = input_resolution
    Ch = int(dim * mlp_ratio)

    key = jax.random.PRNGKey(0)
    kx, key = jax.random.split(key)
    x = jax.random.normal(kx, (batch, L, dim), jnp.float32)

    # ---- deterministic per-block parameters (PyTorch param shapes) ----
    blocks = []
    for i in range(depth):
        ks = jax.random.split(jax.random.fold_in(key, i), 16)
        blocks.append(dict(
            w_qkv=jax.random.normal(ks[0], (3 * dim, dim), jnp.float32) * 0.1,
            q_bias=jax.random.normal(ks[1], (dim,), jnp.float32) * 0.1,
            v_bias=jax.random.normal(ks[2], (dim,), jnp.float32) * 0.1,
            logit_scale=jnp.log(10.0 * jnp.ones((num_heads, 1, 1), jnp.float32)),
            cpb_w1=jax.random.normal(ks[3], (512, 1), jnp.float32) * 0.1,
            cpb_b1=jax.random.normal(ks[4], (512,), jnp.float32) * 0.1,
            cpb_w2=jax.random.normal(ks[5], (num_heads, 512), jnp.float32) * 0.05,
            w_proj=jax.random.normal(ks[6], (dim, dim), jnp.float32) * 0.1,
            b_proj=jax.random.normal(ks[7], (dim,), jnp.float32) * 0.1,
            g1=1.0 + 0.1 * jax.random.normal(ks[8], (dim,), jnp.float32),
            bt1=0.1 * jax.random.normal(ks[9], (dim,), jnp.float32),
            w_fc1=jax.random.normal(ks[10], (Ch, dim), jnp.float32) * 0.1,
            b_fc1=jax.random.normal(ks[11], (Ch,), jnp.float32) * 0.1,
            w_fc2=jax.random.normal(ks[12], (dim, Ch), jnp.float32) * 0.1,
            b_fc2=jax.random.normal(ks[13], (dim,), jnp.float32) * 0.1,
            g2=1.0 + 0.1 * jax.random.normal(ks[14], (dim,), jnp.float32),
            bt2=0.1 * jax.random.normal(ks[15], (dim,), jnp.float32),
        ))

    # ---- run the Pallas BasicLayer ----
    out = basic_layer_forward(x, blocks, window_size=window_size,
                              num_heads=num_heads, grid_b=2)
    out = jax.block_until_ready(out)

    # ---- pure-JAX reference mirroring the PyTorch module ----
    ref = basic_layer_reference(x, blocks, window_size=window_size,
                                num_heads=num_heads)
    ref = jax.block_until_ready(ref)

    np.testing.assert_allclose(np.asarray(out), np.asarray(ref),
                               rtol=2e-3, atol=2e-3)
    print("KERNEL_OK")
</pallas_src>

<mosaic_0001>
module attributes {stable_mosaic.version = 11 : i64} {
  func.func @swin_block_kernel(%arg0: i32, %arg1: memref<64x32xf32, #tpu.memory_space<vmem>>, %arg2: memref<32x96xf32, #tpu.memory_space<vmem>>, %arg3: memref<1x96xf32, #tpu.memory_space<vmem>>, %arg4: memref<4x16x16xf32, #tpu.memory_space<vmem>>, %arg5: memref<4xf32, #tpu.memory_space<smem>>, %arg6: memref<32x32xf32, #tpu.memory_space<vmem>>, %arg7: memref<1x32xf32, #tpu.memory_space<vmem>>, %arg8: memref<1x32xf32, #tpu.memory_space<vmem>>, %arg9: memref<1x32xf32, #tpu.memory_space<vmem>>, %arg10: memref<32x128xf32, #tpu.memory_space<vmem>>, %arg11: memref<1x128xf32, #tpu.memory_space<vmem>>, %arg12: memref<128x32xf32, #tpu.memory_space<vmem>>, %arg13: memref<1x32xf32, #tpu.memory_space<vmem>>, %arg14: memref<1x32xf32, #tpu.memory_space<vmem>>, %arg15: memref<1x32xf32, #tpu.memory_space<vmem>>, %arg16: memref<64x32xf32, #tpu.memory_space<vmem>>) attributes {dimension_semantics = [#tpu.dimension_semantics<parallel>], iteration_bounds = array<i64: 2>, scalar_prefetch = 0 : i64, scratch_operands = 0 : i64, tpu.core_type = #tpu.core_type<tc>, window_params = [{transform_indices = @transform_0, window_bounds = array<i64: 64, 32>}, {pipeline_mode = #tpu.pipeline_mode<synchronous>, transform_indices = @transform_1, window_bounds = array<i64: 32, 96>}, {pipeline_mode = #tpu.pipeline_mode<synchronous>, transform_indices = @transform_2, window_bounds = array<i64: 1, 96>}, {pipeline_mode = #tpu.pipeline_mode<synchronous>, transform_indices = @transform_3, window_bounds = array<i64: 4, 16, 16>}, {transform_indices = @transform_4, window_bounds = array<i64: 4>}, {pipeline_mode = #tpu.pipeline_mode<synchronous>, transform_indices = @transform_5, window_bounds = array<i64: 32, 32>}, {pipeline_mode = #tpu.pipeline_mode<synchronous>, transform_indices = @transform_6, window_bounds = array<i64: 1, 32>}, {pipeline_mode = #tpu.pipeline_mode<synchronous>, transform_indices = @transform_7, window_bounds = array<i64: 1, 32>}, {pipeline_mode = #tpu.pipeline_mode<synchronous>, transform_indices = @transform_8, window_bounds = array<i64: 1, 32>}, {pipeline_mode = #tpu.pipeline_mode<synchronous>, transform_indices = @transform_9, window_bounds = array<i64: 32, 128>}, {pipeline_mode = #tpu.pipeline_mode<synchronous>, transform_indices = @transform_10, window_bounds = array<i64: 1, 128>}, {pipeline_mode = #tpu.pipeline_mode<synchronous>, transform_indices = @transform_11, window_bounds = array<i64: 128, 32>}, {pipeline_mode = #tpu.pipeline_mode<synchronous>, transform_indices = @transform_12, window_bounds = array<i64: 1, 32>}, {pipeline_mode = #tpu.pipeline_mode<synchronous>, transform_indices = @transform_13, window_bounds = array<i64: 1, 32>}, {pipeline_mode = #tpu.pipeline_mode<synchronous>, transform_indices = @transform_14, window_bounds = array<i64: 1, 32>}, {transform_indices = @transform_15, window_bounds = array<i64: 64, 32>}]} {
    %c0 = arith.constant 0 : index
    %c0_0 = arith.constant 0 : index
    %0 = vector.load %arg1[%c0, %c0_0] : memref<64x32xf32, #tpu.memory_space<vmem>>, vector<64x32xf32>
    %c0_1 = arith.constant 0 : index
    %c0_2 = arith.constant 0 : index
    %1 = vector.load %arg2[%c0_1, %c0_2] : memref<32x96xf32, #tpu.memory_space<vmem>>, vector<32x96xf32>
    %cst = arith.constant dense<0.000000e+00> : vector<64x96xf32>
    %2 = tpu.matmul %0, %1, %cst {dimension_numbers = #tpu.dot_dimension_numbers<[1], [0], [0], [1], [0, 0, 1, 1], [], []>} : vector<64x32xf32>, vector<32x96xf32>, vector<64x96xf32> -> vector<64x96xf32>
    %c0_3 = arith.constant 0 : index
    %c0_4 = arith.constant 0 : index
    %3 = vector.load %arg3[%c0_3, %c0_4] : memref<1x96xf32, #tpu.memory_space<vmem>>, vector<1x96xf32>
    %4 = vector.broadcast %3 : vector<1x96xf32> to vector<64x96xf32>
    %5 = arith.addf %2, %4 : vector<64x96xf32>
    %c0_5 = arith.constant 0 : index
    %c0_6 = arith.constant 0 : index
    %6 = vector.load %arg6[%c0_5, %c0_6] : memref<32x32xf32, #tpu.memory_space<vmem>>, vector<32x32xf32>
    %cst_7 = arith.constant 0.000000e+00 : f32
    %7 = vector.broadcast %cst_7 : f32 to vector<64x32xf32>
    %8 = vector.extract_strided_slice %5 {offsets = [0, 0], sizes = [64, 8], strides = [1, 1]} : vector<64x96xf32> to vector<64x8xf32>
    %9 = vector.extract_strided_slice %5 {offsets = [0, 32], sizes = [64, 8], strides = [1, 1]} : vector<64x96xf32> to vector<64x8xf32>
    %10 = vector.extract_strided_slice %5 {offsets = [0, 64], sizes = [64, 8], strides = [1, 1]} : vector<64x96xf32> to vector<64x8xf32>
    %11 = arith.mulf %8, %8 : vector<64x8xf32>
    %cst_8 = arith.constant dense<0.000000e+00> : vector<64xf32>
    %12 = vector.multi_reduction <add>, %11, %cst_8 [1] : vector<64x8xf32> to vector<64xf32>
    %13 = vector.shape_cast %12 : vector<64xf32> to vector<64x1xf32>
    %cst_9 = arith.constant 1.000000e-24 : f32
    %14 = vector.broadcast %cst_9 : f32 to vector<64x1xf32>
    %15 = arith.maximumf %13, %14 : vector<64x1xf32>
    %16 = math.rsqrt %15 : vector<64x1xf32>
    %17 = vector.broadcast %16 : vector<64x1xf32> to vector<64x8xf32>
    %18 = arith.mulf %8, %17 : vector<64x8xf32>
    %19 = arith.mulf %9, %9 : vector<64x8xf32>
    %cst_10 = arith.constant dense<0.000000e+00> : vector<64xf32>
    %20 = vector.multi_reduction <add>, %19, %cst_10 [1] : vector<64x8xf32> to vector<64xf32>
    %21 = vector.shape_cast %20 : vector<64xf32> to vector<64x1xf32>
    %cst_11 = arith.constant 1.000000e-24 : f32
    %22 = vector.broadcast %cst_11 : f32 to vector<64x1xf32>
    %23 = arith.maximumf %21, %22 : vector<64x1xf32>
    %24 = math.rsqrt %23 : vector<64x1xf32>
    %25 = vector.broadcast %24 : vector<64x1xf32> to vector<64x8xf32>
    %26 = arith.mulf %9, %25 : vector<64x8xf32>
    %c0_12 = arith.constant 0 : index
    %27 = memref.load %arg5[%c0_12] : memref<4xf32, #tpu.memory_space<smem>>
    %28 = vector.broadcast %27 : f32 to vector<64x8xf32>
    %29 = arith.mulf %18, %28 : vector<64x8xf32>
    %30 = vector.shape_cast %29 : vector<64x8xf32> to vector<4x16x8xf32>
    %31 = vector.shape_cast %26 : vector<64x8xf32> to vector<4x16x8xf32>
    %32 = vector.shape_cast %10 : vector<64x8xf32> to vector<4x16x8xf32>
    "tpu.trace_start"() <{level = 10 : i32, message = "bqd,bkd->bqk"}> : () -> ()
    %cst_13 = arith.constant dense<0.000000e+00> : vector<4x16x16xf32>
    %33 = tpu.matmul %30, %31, %cst_13 {dimension_numbers = #tpu.dot_dimension_numbers<[2], [2], [1], [1], [0, 0, 0, 1, 1, 1], [0], [0]>} : vector<4x16x8xf32>, vector<4x16x8xf32>, vector<4x16x16xf32> -> vector<4x16x16xf32>
    "tpu.trace_stop"() : () -> ()
    %c0_14 = arith.constant 0 : index
    %c0_15 = arith.constant 0 : index
    %c0_16 = arith.constant 0 : index
    %34 = vector.load %arg4[%c0_14, %c0_15, %c0_16] : memref<4x16x16xf32, #tpu.memory_space<vmem>>, vector<1x16x16xf32>
    %35 = vector.shape_cast %34 : vector<1x16x16xf32> to vector<16x16xf32>
    %36 = vector.shape_cast %35 : vector<16x16xf32> to vector<1x16x16xf32>
    %37 = vector.broadcast %36 : vector<1x16x16xf32> to vector<4x16x16xf32>
    %38 = arith.addf %33, %37 : vector<4x16x16xf32>
    %cst_17 = arith.constant dense<0xFF800000> : vector<4x16xf32>
    %39 = vector.multi_reduction <maximumf>, %38, %cst_17 [2] : vector<4x16x16xf32> to vector<4x16xf32>
    %40 = vector.shape_cast %39 : vector<4x16xf32> to vector<4x16x1xf32>
    %41 = vector.broadcast %40 : vector<4x16x1xf32> to vector<4x16x16xf32>
    %42 = arith.subf %38, %41 : vector<4x16x16xf32>
    %43 = math.exp %42 : vector<4x16x16xf32>
    %cst_18 = arith.constant dense<0.000000e+00> : vector<4x16xf32>
    %44 = vector.multi_reduction <add>, %43, %cst_18 [2] : vector<4x16x16xf32> to vector<4x16xf32>
    %45 = vector.shape_cast %44 : vector<4x16xf32> to vector<4x16x1xf32>
    %46 = tpu.reciprocal %45 : vector<4x16x1xf32> -> vector<4x16x1xf32>
    %47 = vector.broadcast %46 : vector<4x16x1xf32> to vector<4x16x16xf32>
    %48 = arith.mulf %43, %47 : vector<4x16x16xf32>
    "tpu.trace_start"() <{level = 10 : i32, message = "bqk,bkd->bqd"}> : () -> ()
    %cst_19 = arith.constant dense<0.000000e+00> : vector<4x16x8xf32>
    %49 = tpu.matmul %48, %32, %cst_19 {dimension_numbers = #tpu.dot_dimension_numbers<[2], [1], [1], [2], [0, 0, 0, 1, 1, 2], [0], [0]>} : vector<4x16x16xf32>, vector<4x16x8xf32>, vector<4x16x8xf32> -> vector<4x16x8xf32>
    "tpu.trace_stop"() : () -> ()
    %50 = vector.shape_cast %49 : vector<4x16x8xf32> to vector<64x8xf32>
    %51 = vector.extract_strided_slice %6 {offsets = [0, 0], sizes = [8, 32], strides = [1, 1]} : vector<32x32xf32> to vector<8x32xf32>
    %cst_20 = arith.constant dense<0.000000e+00> : vector<64x32xf32>
    %52 = tpu.matmul %50, %51, %cst_20 {dimension_numbers = #tpu.dot_dimension_numbers<[1], [0], [0], [1], [0, 0, 1, 1], [], []>} : vector<64x8xf32>, vector<8x32xf32>, vector<64x32xf32> -> vector<64x32xf32>
    %53 = arith.addf %7, %52 : vector<64x32xf32>
    %54 = vector.extract_strided_slice %5 {offsets = [0, 8], sizes = [64, 8], strides = [1, 1]} : vector<64x96xf32> to vector<64x8xf32>
    %55 = vector.extract_strided_slice %5 {offsets = [0, 40], sizes = [64, 8], strides = [1, 1]} : vector<64x96xf32> to vector<64x8xf32>
    %56 = vector.extract_strided_slice %5 {offsets = [0, 72], sizes = [64, 8], strides = [1, 1]} : vector<64x96xf32> to vector<64x8xf32>
    %57 = arith.mulf %54, %54 : vector<64x8xf32>
    %cst_21 = arith.constant dense<0.000000e+00> : vector<64xf32>
    %58 = vector.multi_reduction <add>, %57, %cst_21 [1] : vector<64x8xf32> to vector<64xf32>
    %59 = vector.shape_cast %58 : vector<64xf32> to vector<64x1xf32>
    %cst_22 = arith.constant 1.000000e-24 : f32
    %60 = vector.broadcast %cst_22 : f32 to vector<64x1xf32>
    %61 = arith.maximumf %59, %60 : vector<64x1xf32>
    %62 = math.rsqrt %61 : vector<64x1xf32>
    %63 = vector.broadcast %62 : vector<64x1xf32> to vector<64x8xf32>
    %64 = arith.mulf %54, %63 : vector<64x8xf32>
    %65 = arith.mulf %55, %55 : vector<64x8xf32>
    %cst_23 = arith.constant dense<0.000000e+00> : vector<64xf32>
    %66 = vector.multi_reduction <add>, %65, %cst_23 [1] : vector<64x8xf32> to vector<64xf32>
    %67 = vector.shape_cast %66 : vector<64xf32> to vector<64x1xf32>
    %cst_24 = arith.constant 1.000000e-24 : f32
    %68 = vector.broadcast %cst_24 : f32 to vector<64x1xf32>
    %69 = arith.maximumf %67, %68 : vector<64x1xf32>
    %70 = math.rsqrt %69 : vector<64x1xf32>
    %71 = vector.broadcast %70 : vector<64x1xf32> to vector<64x8xf32>
    %72 = arith.mulf %55, %71 : vector<64x8xf32>
    %c1 = arith.constant 1 : index
    %73 = memref.load %arg5[%c1] : memref<4xf32, #tpu.memory_space<smem>>
    %74 = vector.broadcast %73 : f32 to vector<64x8xf32>
    %75 = arith.mulf %64, %74 : vector<64x8xf32>
    %76 = vector.shape_cast %75 : vector<64x8xf32> to vector<4x16x8xf32>
    %77 = vector.shape_cast %72 : vector<64x8xf32> to vector<4x16x8xf32>
    %78 = vector.shape_cast %56 : vector<64x8xf32> to vector<4x16x8xf32>
    "tpu.trace_start"() <{level = 10 : i32, message = "bqd,bkd->bqk"}> : () -> ()
    %cst_25 = arith.constant dense<0.000000e+00> : vector<4x16x16xf32>
    %79 = tpu.matmul %76, %77, %cst_25 {dimension_numbers = #tpu.dot_dimension_numbers<[2], [2], [1], [1], [0, 0, 0, 1, 1, 1], [0], [0]>} : vector<4x16x8xf32>, vector<4x16x8xf32>, vector<4x16x16xf32> -> vector<4x16x16xf32>
    "tpu.trace_stop"() : () -> ()
    %c1_26 = arith.constant 1 : index
    %c0_27 = arith.constant 0 : index
    %c0_28 = arith.constant 0 : index
    %80 = vector.load %arg4[%c1_26, %c0_27, %c0_28] : memref<4x16x16xf32, #tpu.memory_space<vmem>>, vector<1x16x16xf32>
    %81 = vector.shape_cast %80 : vector<1x16x16xf32> to vector<16x16xf32>
    %82 = vector.shape_cast %81 : vector<16x16xf32> to vector<1x16x16xf32>
    %83 = vector.broadcast %82 : vector<1x16x16xf32> to vector<4x16x16xf32>
    %84 = arith.addf %79, %83 : vector<4x16x16xf32>
    %cst_29 = arith.constant dense<0xFF800000> : vector<4x16xf32>
    %85 = vector.multi_reduction <maximumf>, %84, %cst_29 [2] : vector<4x16x16xf32> to vector<4x16xf32>
    %86 = vector.shape_cast %85 : vector<4x16xf32> to vector<4x16x1xf32>
    %87 = vector.broadcast %86 : vector<4x16x1xf32> to vector<4x16x16xf32>
    %88 = arith.subf %84, %87 : vector<4x16x16xf32>
    %89 = math.exp %88 : vector<4x16x16xf32>
    %cst_30 = arith.constant dense<0.000000e+00> : vector<4x16xf32>
    %90 = vector.multi_reduction <add>, %89, %cst_30 [2] : vector<4x16x16xf32> to vector<4x16xf32>
    %91 = vector.shape_cast %90 : vector<4x16xf32> to vector<4x16x1xf32>
    %92 = tpu.reciprocal %91 : vector<4x16x1xf32> -> vector<4x16x1xf32>
    %93 = vector.broadcast %92 : vector<4x16x1xf32> to vector<4x16x16xf32>
    %94 = arith.mulf %89, %93 : vector<4x16x16xf32>
    "tpu.trace_start"() <{level = 10 : i32, message = "bqk,bkd->bqd"}> : () -> ()
    %cst_31 = arith.constant dense<0.000000e+00> : vector<4x16x8xf32>
    %95 = tpu.matmul %94, %78, %cst_31 {dimension_numbers = #tpu.dot_dimension_numbers<[2], [1], [1], [2], [0, 0, 0, 1, 1, 2], [0], [0]>} : vector<4x16x16xf32>, vector<4x16x8xf32>, vector<4x16x8xf32> -> vector<4x16x8xf32>
    "tpu.trace_stop"() : () -> ()
    %96 = vector.shape_cast %95 : vector<4x16x8xf32> to vector<64x8xf32>
    %97 = vector.extract_strided_slice %6 {offsets = [8, 0], sizes = [8, 32], strides = [1, 1]} : vector<32x32xf32> to vector<8x32xf32>
    %cst_32 = arith.constant dense<0.000000e+00> : vector<64x32xf32>
    %98 = tpu.matmul %96, %97, %cst_32 {dimension_numbers = #tpu.dot_dimension_numbers<[1], [0], [0], [1], [0, 0, 1, 1], [], []>} : vector<64x8xf32>, vector<8x32xf32>, vector<64x32xf32> -> vector<64x32xf32>
    %99 = arith.addf %53, %98 : vector<64x32xf32>
    %100 = vector.extract_strided_slice %5 {offsets = [0, 16], sizes = [64, 8], strides = [1, 1]} : vector<64x96xf32> to vector<64x8xf32>
    %101 = vector.extract_strided_slice %5 {offsets = [0, 48], sizes = [64, 8], strides = [1, 1]} : vector<64x96xf32> to vector<64x8xf32>
    %102 = vector.extract_strided_slice %5 {offsets = [0, 80], sizes = [64, 8], strides = [1, 1]} : vector<64x96xf32> to vector<64x8xf32>
    %103 = arith.mulf %100, %100 : vector<64x8xf32>
    %cst_33 = arith.constant dense<0.000000e+00> : vector<64xf32>
    %104 = vector.multi_reduction <add>, %103, %cst_33 [1] : vector<64x8xf32> to vector<64xf32>
    %105 = vector.shape_cast %104 : vector<64xf32> to vector<64x1xf32>
    %cst_34 = arith.constant 1.000000e-24 : f32
    %106 = vector.broadcast %cst_34 : f32 to vector<64x1xf32>
    %107 = arith.maximumf %105, %106 : vector<64x1xf32>
    %108 = math.rsqrt %107 : vector<64x1xf32>
    %109 = vector.broadcast %108 : vector<64x1xf32> to vector<64x8xf32>
    %110 = arith.mulf %100, %109 : vector<64x8xf32>
    %111 = arith.mulf %101, %101 : vector<64x8xf32>
    %cst_35 = arith.constant dense<0.000000e+00> : vector<64xf32>
    %112 = vector.multi_reduction <add>, %111, %cst_35 [1] : vector<64x8xf32> to vector<64xf32>
    %113 = vector.shape_cast %112 : vector<64xf32> to vector<64x1xf32>
    %cst_36 = arith.constant 1.000000e-24 : f32
    %114 = vector.broadcast %cst_36 : f32 to vector<64x1xf32>
    %115 = arith.maximumf %113, %114 : vector<64x1xf32>
    %116 = math.rsqrt %115 : vector<64x1xf32>
    %117 = vector.broadcast %116 : vector<64x1xf32> to vector<64x8xf32>
    %118 = arith.mulf %101, %117 : vector<64x8xf32>
    %c2 = arith.constant 2 : index
    %119 = memref.load %arg5[%c2] : memref<4xf32, #tpu.memory_space<smem>>
    %120 = vector.broadcast %119 : f32 to vector<64x8xf32>
    %121 = arith.mulf %110, %120 : vector<64x8xf32>
    %122 = vector.shape_cast %121 : vector<64x8xf32> to vector<4x16x8xf32>
    %123 = vector.shape_cast %118 : vector<64x8xf32> to vector<4x16x8xf32>
    %124 = vector.shape_cast %102 : vector<64x8xf32> to vector<4x16x8xf32>
    "tpu.trace_start"() <{level = 10 : i32, message = "bqd,bkd->bqk"}> : () -> ()
    %cst_37 = arith.constant dense<0.000000e+00> : vector<4x16x16xf32>
    %125 = tpu.matmul %122, %123, %cst_37 {dimension_numbers = #tpu.dot_dimension_numbers<[2], [2], [1], [1], [0, 0, 0, 1, 1, 1], [0], [0]>} : vector<4x16x8xf32>, vector<4x16x8xf32>, vector<4x16x16xf32> -> vector<4x16x16xf32>
    "tpu.trace_stop"() : () -> ()
    %c2_38 = arith.constant 2 : index
    %c0_39 = arith.constant 0 : index
    %c0_40 = arith.constant 0 : index
    %126 = vector.load %arg4[%c2_38, %c0_39, %c0_40] : memref<4x16x16xf32, #tpu.memory_space<vmem>>, vector<1x16x16xf32>
    %127 = vector.shape_cast %126 : vector<1x16x16xf32> to vector<16x16xf32>
    %128 = vector.shape_cast %127 : vector<16x16xf32> to vector<1x16x16xf32>
    %129 = vector.broadcast %128 : vector<1x16x16xf32> to vector<4x16x16xf32>
    %130 = arith.addf %125, %129 : vector<4x16x16xf32>
    %cst_41 = arith.constant dense<0xFF800000> : vector<4x16xf32>
    %131 = vector.multi_reduction <maximumf>, %130, %cst_41 [2] : vector<4x16x16xf32> to vector<4x16xf32>
    %132 = vector.shape_cast %131 : vector<4x16xf32> to vector<4x16x1xf32>
    %133 = vector.broadcast %132 : vector<4x16x1xf32> to vector<4x16x16xf32>
    %134 = arith.subf %130, %133 : vector<4x16x16xf32>
    %135 = math.exp %134 : vector<4x16x16xf32>
    %cst_42 = arith.constant dense<0.000000e+00> : vector<4x16xf32>
    %136 = vector.multi_reduction <add>, %135, %cst_42 [2] : vector<4x16x16xf32> to vector<4x16xf32>
    %137 = vector.shape_cast %136 : vector<4x16xf32> to vector<4x16x1xf32>
    %138 = tpu.reciprocal %137 : vector<4x16x1xf32> -> vector<4x16x1xf32>
    %139 = vector.broadcast %138 : vector<4x16x1xf32> to vector<4x16x16xf32>
    %140 = arith.mulf %135, %139 : vector<4x16x16xf32>
    "tpu.trace_start"() <{level = 10 : i32, message = "bqk,bkd->bqd"}> : () -> ()
    %cst_43 = arith.constant dense<0.000000e+00> : vector<4x16x8xf32>
    %141 = tpu.matmul %140, %124, %cst_43 {dimension_numbers = #tpu.dot_dimension_numbers<[2], [1], [1], [2], [0, 0, 0, 1, 1, 2], [0], [0]>} : vector<4x16x16xf32>, vector<4x16x8xf32>, vector<4x16x8xf32> -> vector<4x16x8xf32>
    "tpu.trace_stop"() : () -> ()
    %142 = vector.shape_cast %141 : vector<4x16x8xf32> to vector<64x8xf32>
    %143 = vector.extract_strided_slice %6 {offsets = [16, 0], sizes = [8, 32], strides = [1, 1]} : vector<32x32xf32> to vector<8x32xf32>
    %cst_44 = arith.constant dense<0.000000e+00> : vector<64x32xf32>
    %144 = tpu.matmul %142, %143, %cst_44 {dimension_numbers = #tpu.dot_dimension_numbers<[1], [0], [0], [1], [0, 0, 1, 1], [], []>} : vector<64x8xf32>, vector<8x32xf32>, vector<64x32xf32> -> vector<64x32xf32>
    %145 = arith.addf %99, %144 : vector<64x32xf32>
    %146 = vector.extract_strided_slice %5 {offsets = [0, 24], sizes = [64, 8], strides = [1, 1]} : vector<64x96xf32> to vector<64x8xf32>
    %147 = vector.extract_strided_slice %5 {offsets = [0, 56], sizes = [64, 8], strides = [1, 1]} : vector<64x96xf32> to vector<64x8xf32>
    %148 = vector.extract_strided_slice %5 {offsets = [0, 88], sizes = [64, 8], strides = [1, 1]} : vector<64x96xf32> to vector<64x8xf32>
    %149 = arith.mulf %146, %146 : vector<64x8xf32>
    %cst_45 = arith.constant dense<0.000000e+00> : vector<64xf32>
    %150 = vector.multi_reduction <add>, %149, %cst_45 [1] : vector<64x8xf32> to vector<64xf32>
    %151 = vector.shape_cast %150 : vector<64xf32> to vector<64x1xf32>
    %cst_46 = arith.constant 1.000000e-24 : f32
    %152 = vector.broadcast %cst_46 : f32 to vector<64x1xf32>
    %153 = arith.maximumf %151, %152 : vector<64x1xf32>
    %154 = math.rsqrt %153 : vector<64x1xf32>
    %155 = vector.broadcast %154 : vector<64x1xf32> to vector<64x8xf32>
    %156 = arith.mulf %146, %155 : vector<64x8xf32>
    %157 = arith.mulf %147, %147 : vector<64x8xf32>
    %cst_47 = arith.constant dense<0.000000e+00> : vector<64xf32>
    %158 = vector.multi_reduction <add>, %157, %cst_47 [1] : vector<64x8xf32> to vector<64xf32>
    %159 = vector.shape_cast %158 : vector<64xf32> to vector<64x1xf32>
    %cst_48 = arith.constant 1.000000e-24 : f32
    %160 = vector.broadcast %cst_48 : f32 to vector<64x1xf32>
    %161 = arith.maximumf %159, %160 : vector<64x1xf32>
    %162 = math.rsqrt %161 : vector<64x1xf32>
    %163 = vector.broadcast %162 : vector<64x1xf32> to vector<64x8xf32>
    %164 = arith.mulf %147, %163 : vector<64x8xf32>
    %c3 = arith.constant 3 : index
    %165 = memref.load %arg5[%c3] : memref<4xf32, #tpu.memory_space<smem>>
    %166 = vector.broadcast %165 : f32 to vector<64x8xf32>
    %167 = arith.mulf %156, %166 : vector<64x8xf32>
    %168 = vector.shape_cast %167 : vector<64x8xf32> to vector<4x16x8xf32>
    %169 = vector.shape_cast %164 : vector<64x8xf32> to vector<4x16x8xf32>
    %170 = vector.shape_cast %148 : vector<64x8xf32> to vector<4x16x8xf32>
    "tpu.trace_start"() <{level = 10 : i32, message = "bqd,bkd->bqk"}> : () -> ()
    %cst_49 = arith.constant dense<0.000000e+00> : vector<4x16x16xf32>
    %171 = tpu.matmul %168, %169, %cst_49 {dimension_numbers = #tpu.dot_dimension_numbers<[2], [2], [1], [1], [0, 0, 0, 1, 1, 1], [0], [0]>} : vector<4x16x8xf32>, vector<4x16x8xf32>, vector<4x16x16xf32> -> vector<4x16x16xf32>
    "tpu.trace_stop"() : () -> ()
    %c3_50 = arith.constant 3 : index
    %c0_51 = arith.constant 0 : index
    %c0_52 = arith.constant 0 : index
    %172 = vector.load %arg4[%c3_50, %c0_51, %c0_52] : memref<4x16x16xf32, #tpu.memory_space<vmem>>, vector<1x16x16xf32>
    %173 = vector.shape_cast %172 : vector<1x16x16xf32> to vector<16x16xf32>
    %174 = vector.shape_cast %173 : vector<16x16xf32> to vector<1x16x16xf32>
    %175 = vector.broadcast %174 : vector<1x16x16xf32> to vector<4x16x16xf32>
    %176 = arith.addf %171, %175 : vector<4x16x16xf32>
    %cst_53 = arith.constant dense<0xFF800000> : vector<4x16xf32>
    %177 = vector.multi_reduction <maximumf>, %176, %cst_53 [2] : vector<4x16x16xf32> to vector<4x16xf32>
    %178 = vector.shape_cast %177 : vector<4x16xf32> to vector<4x16x1xf32>
    %179 = vector.broadcast %178 : vector<4x16x1xf32> to vector<4x16x16xf32>
    %180 = arith.subf %176, %179 : vector<4x16x16xf32>
    %181 = math.exp %180 : vector<4x16x16xf32>
    %cst_54 = arith.constant dense<0.000000e+00> : vector<4x16xf32>
    %182 = vector.multi_reduction <add>, %181, %cst_54 [2] : vector<4x16x16xf32> to vector<4x16xf32>
    %183 = vector.shape_cast %182 : vector<4x16xf32> to vector<4x16x1xf32>
    %184 = tpu.reciprocal %183 : vector<4x16x1xf32> -> vector<4x16x1xf32>
    %185 = vector.broadcast %184 : vector<4x16x1xf32> to vector<4x16x16xf32>
    %186 = arith.mulf %181, %185 : vector<4x16x16xf32>
    "tpu.trace_start"() <{level = 10 : i32, message = "bqk,bkd->bqd"}> : () -> ()
    %cst_55 = arith.constant dense<0.000000e+00> : vector<4x16x8xf32>
    %187 = tpu.matmul %186, %170, %cst_55 {dimension_numbers = #tpu.dot_dimension_numbers<[2], [1], [1], [2], [0, 0, 0, 1, 1, 2], [0], [0]>} : vector<4x16x16xf32>, vector<4x16x8xf32>, vector<4x16x8xf32> -> vector<4x16x8xf32>
    "tpu.trace_stop"() : () -> ()
    %188 = vector.shape_cast %187 : vector<4x16x8xf32> to vector<64x8xf32>
    %189 = vector.extract_strided_slice %6 {offsets = [24, 0], sizes = [8, 32], strides = [1, 1]} : vector<32x32xf32> to vector<8x32xf32>
    %cst_56 = arith.constant dense<0.000000e+00> : vector<64x32xf32>
    %190 = tpu.matmul %188, %189, %cst_56 {dimension_numbers = #tpu.dot_dimension_numbers<[1], [0], [0], [1], [0, 0, 1, 1], [], []>} : vector<64x8xf32>, vector<8x32xf32>, vector<64x32xf32> -> vector<64x32xf32>
    %191 = arith.addf %145, %190 : vector<64x32xf32>
    %c0_57 = arith.constant 0 : index
    %c0_58 = arith.constant 0 : index
    %192 = vector.load %arg7[%c0_57, %c0_58] : memref<1x32xf32, #tpu.memory_space<vmem>>, vector<1x32xf32>
    %193 = vector.broadcast %192 : vector<1x32xf32> to vector<64x32xf32>
    %194 = arith.addf %191, %193 : vector<64x32xf32>
    %c0_59 = arith.constant 0 : index
    %c0_60 = arith.constant 0 : index
    %195 = vector.load %arg8[%c0_59, %c0_60] : memref<1x32xf32, #tpu.memory_space<vmem>>, vector<1x32xf32>
    %c0_61 = arith.constant 0 : index
    %c0_62 = arith.constant 0 : index
    %196 = vector.load %arg9[%c0_61, %c0_62] : memref<1x32xf32, #tpu.memory_space<vmem>>, vector<1x32xf32>
    %cst_63 = arith.constant dense<0.000000e+00> : vector<64xf32>
    %197 = vector.multi_reduction <add>, %194, %cst_63 [1] : vector<64x32xf32> to vector<64xf32>
    %198 = vector.shape_cast %197 : vector<64xf32> to vector<64x1xf32>
    %cst_64 = arith.constant 3.200000e+01 : f32
    %199 = vector.broadcast %cst_64 : f32 to vector<64x1xf32>
    %200 = arith.divf %198, %199 : vector<64x1xf32>
    %201 = vector.broadcast %200 : vector<64x1xf32> to vector<64x32xf32>
    %202 = arith.subf %194, %201 : vector<64x32xf32>
    %203 = arith.mulf %202, %202 : vector<64x32xf32>
    %cst_65 = arith.constant dense<0.000000e+00> : vector<64xf32>
    %204 = vector.multi_reduction <add>, %203, %cst_65 [1] : vector<64x32xf32> to vector<64xf32>
    %205 = vector.shape_cast %204 : vector<64xf32> to vector<64x1xf32>
    %cst_66 = arith.constant 3.200000e+01 : f32
    %206 = vector.broadcast %cst_66 : f32 to vector<64x1xf32>
    %207 = arith.divf %205, %206 : vector<64x1xf32>
    %cst_67 = arith.constant 9.99999974E-6 : f32
    %208 = vector.broadcast %cst_67 : f32 to vector<64x1xf32>
    %209 = arith.addf %207, %208 : vector<64x1xf32>
    %210 = math.rsqrt %209 : vector<64x1xf32>
    %211 = vector.broadcast %210 : vector<64x1xf32> to vector<64x32xf32>
    %212 = arith.mulf %202, %211 : vector<64x32xf32>
    %213 = vector.broadcast %195 : vector<1x32xf32> to vector<64x32xf32>
    %214 = arith.mulf %212, %213 : vector<64x32xf32>
    %215 = vector.broadcast %196 : vector<1x32xf32> to vector<64x32xf32>
    %216 = arith.addf %214, %215 : vector<64x32xf32>
    %217 = arith.addf %0, %216 : vector<64x32xf32>
    %c0_68 = arith.constant 0 : index
    %c0_69 = arith.constant 0 : index
    %218 = vector.load %arg10[%c0_68, %c0_69] : memref<32x128xf32, #tpu.memory_space<vmem>>, vector<32x128xf32>
    %cst_70 = arith.constant dense<0.000000e+00> : vector<64x128xf32>
    %219 = tpu.matmul %217, %218, %cst_70 {dimension_numbers = #tpu.dot_dimension_numbers<[1], [0], [0], [1], [0, 0, 1, 1], [], []>} : vector<64x32xf32>, vector<32x128xf32>, vector<64x128xf32> -> vector<64x128xf32>
    %c0_71 = arith.constant 0 : index
    %c0_72 = arith.constant 0 : index
    %220 = vector.load %arg11[%c0_71, %c0_72] : memref<1x128xf32, #tpu.memory_space<vmem>>, vector<1x128xf32>
    %221 = vector.broadcast %220 : vector<1x128xf32> to vector<64x128xf32>
    %222 = arith.addf %219, %221 : vector<64x128xf32>
    %cst_73 = arith.constant 5.000000e-01 : f32
    %223 = vector.broadcast %cst_73 : f32 to vector<64x128xf32>
    %224 = arith.mulf %223, %222 : vector<64x128xf32>
    %cst_74 = arith.constant 0.707106769 : f32
    %225 = vector.broadcast %cst_74 : f32 to vector<64x128xf32>
    %226 = arith.mulf %222, %225 : vector<64x128xf32>
    %227 = math.absf %226 : vector<64x128xf32>
    %cst_75 = arith.constant 0.327591091 : f32
    %228 = vector.broadcast %cst_75 : f32 to vector<64x128xf32>
    %229 = arith.mulf %228, %227 : vector<64x128xf32>
    %cst_76 = arith.constant 1.000000e+00 : f32
    %230 = vector.broadcast %cst_76 : f32 to vector<64x128xf32>
    %231 = arith.addf %230, %229 : vector<64x128xf32>
    %cst_77 = arith.constant 1.000000e+00 : f32
    %232 = vector.broadcast %cst_77 : f32 to vector<64x128xf32>
    %233 = arith.divf %232, %231 : vector<64x128xf32>
    %cst_78 = arith.constant 1.06140542 : f32
    %234 = vector.broadcast %cst_78 : f32 to vector<64x128xf32>
    %235 = arith.mulf %234, %233 : vector<64x128xf32>
    %cst_79 = arith.constant -1.45315206 : f32
    %236 = vector.broadcast %cst_79 : f32 to vector<64x128xf32>
    %237 = arith.addf %235, %236 : vector<64x128xf32>
    %238 = arith.mulf %237, %233 : vector<64x128xf32>
    %cst_80 = arith.constant 1.42141378 : f32
    %239 = vector.broadcast %cst_80 : f32 to vector<64x128xf32>
    %240 = arith.addf %238, %239 : vector<64x128xf32>
    %241 = arith.mulf %240, %233 : vector<64x128xf32>
    %cst_81 = arith.constant -0.284496725 : f32
    %242 = vector.broadcast %cst_81 : f32 to vector<64x128xf32>
    %243 = arith.addf %241, %242 : vector<64x128xf32>
    %244 = arith.mulf %243, %233 : vector<64x128xf32>
    %cst_82 = arith.constant 0.254829586 : f32
    %245 = vector.broadcast %cst_82 : f32 to vector<64x128xf32>
    %246 = arith.addf %244, %245 : vector<64x128xf32>
    %247 = arith.mulf %246, %233 : vector<64x128xf32>
    %cst_83 = arith.constant 0.000000e+00 : f32
    %248 = vector.broadcast %cst_83 : f32 to vector<64x128xf32>
    %249 = arith.subf %248, %227 : vector<64x128xf32>
    %250 = arith.mulf %249, %227 : vector<64x128xf32>
    %251 = math.exp %250 : vector<64x128xf32>
    %252 = arith.mulf %247, %251 : vector<64x128xf32>
    %cst_84 = arith.constant 1.000000e+00 : f32
    %253 = vector.broadcast %cst_84 : f32 to vector<64x128xf32>
    %254 = arith.subf %253, %252 : vector<64x128xf32>
    %cst_85 = arith.constant 0.000000e+00 : f32
    %255 = vector.broadcast %cst_85 : f32 to vector<64x128xf32>
    %256 = arith.cmpf oge, %226, %255 : vector<64x128xf32>
    %cst_86 = arith.constant 0.000000e+00 : f32
    %257 = vector.broadcast %cst_86 : f32 to vector<64x128xf32>
    %258 = arith.subf %257, %254 : vector<64x128xf32>
    %259 = arith.select %256, %254, %258 : vector<64x128xi1>, vector<64x128xf32>
    %cst_87 = arith.constant 1.000000e+00 : f32
    %260 = vector.broadcast %cst_87 : f32 to vector<64x128xf32>
    %261 = arith.addf %260, %259 : vector<64x128xf32>
    %262 = arith.mulf %224, %261 : vector<64x128xf32>
    %c0_88 = arith.constant 0 : index
    %c0_89 = arith.constant 0 : index
    %263 = vector.load %arg12[%c0_88, %c0_89] : memref<128x32xf32, #tpu.memory_space<vmem>>, vector<128x32xf32>
    %cst_90 = arith.constant dense<0.000000e+00> : vector<64x32xf32>
    %264 = tpu.matmul %262, %263, %cst_90 {dimension_numbers = #tpu.dot_dimension_numbers<[1], [0], [0], [1], [0, 0, 1, 1], [], []>} : vector<64x128xf32>, vector<128x32xf32>, vector<64x32xf32> -> vector<64x32xf32>
    %c0_91 = arith.constant 0 : index
    %c0_92 = arith.constant 0 : index
    %265 = vector.load %arg13[%c0_91, %c0_92] : memref<1x32xf32, #tpu.memory_space<vmem>>, vector<1x32xf32>
    %266 = vector.broadcast %265 : vector<1x32xf32> to vector<64x32xf32>
    %267 = arith.addf %264, %266 : vector<64x32xf32>
    %c0_93 = arith.constant 0 : index
    %c0_94 = arith.constant 0 : index
    %268 = vector.load %arg14[%c0_93, %c0_94] : memref<1x32xf32, #tpu.memory_space<vmem>>, vector<1x32xf32>
    %c0_95 = arith.constant 0 : index
    %c0_96 = arith.constant 0 : index
    %269 = vector.load %arg15[%c0_95, %c0_96] : memref<1x32xf32, #tpu.memory_space<vmem>>, vector<1x32xf32>
    %cst_97 = arith.constant dense<0.000000e+00> : vector<64xf32>
    %270 = vector.multi_reduction <add>, %267, %cst_97 [1] : vector<64x32xf32> to vector<64xf32>
    %271 = vector.shape_cast %270 : vector<64xf32> to vector<64x1xf32>
    %cst_98 = arith.constant 3.200000e+01 : f32
    %272 = vector.broadcast %cst_98 : f32 to vector<64x1xf32>
    %273 = arith.divf %271, %272 : vector<64x1xf32>
    %274 = vector.broadcast %273 : vector<64x1xf32> to vector<64x32xf32>
    %275 = arith.subf %267, %274 : vector<64x32xf32>
    %276 = arith.mulf %275, %275 : vector<64x32xf32>
    %cst_99 = arith.constant dense<0.000000e+00> : vector<64xf32>
    %277 = vector.multi_reduction <add>, %276, %cst_99 [1] : vector<64x32xf32> to vector<64xf32>
    %278 = vector.shape_cast %277 : vector<64xf32> to vector<64x1xf32>
    %cst_100 = arith.constant 3.200000e+01 : f32
    %279 = vector.broadcast %cst_100 : f32 to vector<64x1xf32>
    %280 = arith.divf %278, %279 : vector<64x1xf32>
    %cst_101 = arith.constant 9.99999974E-6 : f32
    %281 = vector.broadcast %cst_101 : f32 to vector<64x1xf32>
    %282 = arith.addf %280, %281 : vector<64x1xf32>
    %283 = math.rsqrt %282 : vector<64x1xf32>
    %284 = vector.broadcast %283 : vector<64x1xf32> to vector<64x32xf32>
    %285 = arith.mulf %275, %284 : vector<64x32xf32>
    %286 = vector.broadcast %268 : vector<1x32xf32> to vector<64x32xf32>
    %287 = arith.mulf %285, %286 : vector<64x32xf32>
    %288 = vector.broadcast %269 : vector<1x32xf32> to vector<64x32xf32>
    %289 = arith.addf %287, %288 : vector<64x32xf32>
    %290 = arith.addf %217, %289 : vector<64x32xf32>
    %c0_102 = arith.constant 0 : index
    %c0_103 = arith.constant 0 : index
    %291 = vector.load %arg16[%c0_102, %c0_103] : memref<64x32xf32, #tpu.memory_space<vmem>>, vector<64x32xf32>
    tpu.vector_store %arg16[%c0_102, %c0_103], %290 {strides = array<i32>} : memref<64x32xf32, #tpu.memory_space<vmem>>, vector<64x32xf32>,
    return
  }
  func.func @transform_0(%arg0: i32) -> (i32, i32) {
    %c0_i32 = arith.constant 0 : i32
    %c0_i32_0 = arith.constant 0 : i32
    return %arg0, %c0_i32 : i32, i32
  }
  func.func @transform_1(%arg0: i32) -> (i32, i32) {
    %c0_i32 = arith.constant 0 : i32
    %c0_i32_0 = arith.constant 0 : i32
    %c0_i32_1 = arith.constant 0 : i32
    return %c0_i32, %c0_i32_0 : i32, i32
  }
  func.func @transform_2(%arg0: i32) -> (i32, i32) {
    %c0_i32 = arith.constant 0 : i32
    %c0_i32_0 = arith.constant 0 : i32
    %c0_i32_1 = arith.constant 0 : i32
    return %c0_i32, %c0_i32_0 : i32, i32
  }
  func.func @transform_3(%arg0: i32) -> (i32, i32, i32) {
    %c0_i32 = arith.constant 0 : i32
    %c0_i32_0 = arith.constant 0 : i32
    %c0_i32_1 = arith.constant 0 : i32
    %c0_i32_2 = arith.constant 0 : i32
    return %c0_i32, %c0_i32_0, %c0_i32_1 : i32, i32, i32
  }
  func.func @transform_4(%arg0: i32) -> i32 {
    %c0_i32 = arith.constant 0 : i32
    %c0_i32_0 = arith.constant 0 : i32
    return %c0_i32 : i32
  }
  func.func @transform_5(%arg0: i32) -> (i32, i32) {
    %c0_i32 = arith.constant 0 : i32
    %c0_i32_0 = arith.constant 0 : i32
    %c0_i32_1 = arith.constant 0 : i32
    return %c0_i32, %c0_i32_0 : i32, i32
  }
  func.func @transform_6(%arg0: i32) -> (i32, i32) {
    %c0_i32 = arith.constant 0 : i32
    %c0_i32_0 = arith.constant 0 : i32
    %c0_i32_1 = arith.constant 0 : i32
    return %c0_i32, %c0_i32_0 : i32, i32
  }
  func.func @transform_7(%arg0: i32) -> (i32, i32) {
    %c0_i32 = arith.constant 0 : i32
    %c0_i32_0 = arith.constant 0 : i32
    %c0_i32_1 = arith.constant 0 : i32
    return %c0_i32, %c0_i32_0 : i32, i32
  }
  func.func @transform_8(%arg0: i32) -> (i32, i32) {
    %c0_i32 = arith.constant 0 : i32
    %c0_i32_0 = arith.constant 0 : i32
    %c0_i32_1 = arith.constant 0 : i32
    return %c0_i32, %c0_i32_0 : i32, i32
  }
  func.func @transform_9(%arg0: i32) -> (i32, i32) {
    %c0_i32 = arith.constant 0 : i32
    %c0_i32_0 = arith.constant 0 : i32
    %c0_i32_1 = arith.constant 0 : i32
    return %c0_i32, %c0_i32_0 : i32, i32
  }
  func.func @transform_10(%arg0: i32) -> (i32, i32) {
    %c0_i32 = arith.constant 0 : i32
    %c0_i32_0 = arith.constant 0 : i32
    %c0_i32_1 = arith.constant 0 : i32
    return %c0_i32, %c0_i32_0 : i32, i32
  }
  func.func @transform_11(%arg0: i32) -> (i32, i32) {
    %c0_i32 = arith.constant 0 : i32
    %c0_i32_0 = arith.constant 0 : i32
    %c0_i32_1 = arith.constant 0 : i32
    return %c0_i32, %c0_i32_0 : i32, i32
  }
  func.func @transform_12(%arg0: i32) -> (i32, i32) {
    %c0_i32 = arith.constant 0 : i32
    %c0_i32_0 = arith.constant 0 : i32
    %c0_i32_1 = arith.constant 0 : i32
    return %c0_i32, %c0_i32_0 : i32, i32
  }
  func.func @transform_13(%arg0: i32) -> (i32, i32) {
    %c0_i32 = arith.constant 0 : i32
    %c0_i32_0 = arith.constant 0 : i32
    %c0_i32_1 = arith.constant 0 : i32
    return %c0_i32, %c0_i32_0 : i32, i32
  }
  func.func @transform_14(%arg0: i32) -> (i32, i32) {
    %c0_i32 = arith.constant 0 : i32
    %c0_i32_0 = arith.constant 0 : i32
    %c0_i32_1 = arith.constant 0 : i32
    return %c0_i32, %c0_i32_0 : i32, i32
  }
  func.func @transform_15(%arg0: i32) -> (i32, i32) {
    %c0_i32 = arith.constant 0 : i32
    %c0_i32_0 = arith.constant 0 : i32
    return %arg0, %c0_i32 : i32, i32
  }
}

</mosaic_0001>

<llo_original>
// kernel: tpu_custom_call.1
$region0: #{tpu_custom_call.1}
  #allocation0 [shape = 'u32[]', space=smem, size = 0x4, offset = 0x4, fixed_abs, tag = 'smem constant byte address 0x4 - core index']
  #allocation1 [shape = 'u32[72,128]{1,0:T(1,128)}', space=vmem, size = 0x9000, scoped, tag = 'internal scratch']
  %s0 = inlined_call_operand.vmem [shape: f32[128,32], index: 0, kind: input, shape index: {}]
  %s1 = inlined_call_operand.vmem [shape: f32[32,96], index: 1, kind: input, shape index: {}]
  %s2 = inlined_call_operand.vmem [shape: f32[1,96], index: 2, kind: input, shape index: {}]
  %s3 = inlined_call_operand.vmem [shape: f32[4,16,16], index: 3, kind: input, shape index: {}]
  %s4 = inlined_call_operand.vmem [shape: f32[4], index: 4, kind: input, shape index: {}]
  %s5 = inlined_call_operand.vmem [shape: f32[32,32], index: 5, kind: input, shape index: {}]
  %s6 = inlined_call_operand.vmem [shape: f32[1,32], index: 6, kind: input, shape index: {}]
  %s7 = inlined_call_operand.vmem [shape: f32[1,32], index: 7, kind: input, shape index: {}]
  %s8 = inlined_call_operand.vmem [shape: f32[1,32], index: 8, kind: input, shape index: {}]
  %s9 = inlined_call_operand.vmem [shape: f32[32,128], index: 9, kind: input, shape index: {}]
  %s10 = inlined_call_operand.vmem [shape: f32[1,128], index: 10, kind: input, shape index: {}]
  %s11 = inlined_call_operand.vmem [shape: f32[128,32], index: 11, kind: input, shape index: {}]
  %s12 = inlined_call_operand.vmem [shape: f32[1,32], index: 12, kind: input, shape index: {}]
  %s13 = inlined_call_operand.vmem [shape: f32[1,32], index: 13, kind: input, shape index: {}]
  %s14 = inlined_call_operand.vmem [shape: f32[1,32], index: 14, kind: input, shape index: {}]
  %s15 = inlined_call_operand.vmem [shape: f32[128,32], index: 15, kind: output, shape index: {}]
  %s16 = sld [smem:[#allocation0]]
  $region97: #{tpu_custom_call.1} parent=0
    _
  %s18 = ssub.s32 1, %s16
  %s19 = scalar_select 0, %s18, %s16
  $region1: #{tpu_custom_call.1} parent=0
    #allocation2 [shape = 'u8[512]{0}', space=smem, size = 0x200, scoped, tag = 'input window, operand 4, single buffered']
    #allocation3 [shape = 's32[2]{0}', space=sflag, size = 0x8, scoped, tag = 'scoped memory for tpu_custom_call.1']
    %20 = vsyncpa [#allocation3], 0
    loop: start=0, step=1, limit=4
    $region2: #{tpu_custom_call.1} parent=1 // loop_pre_header
      _
    $region3: #{tpu_custom_call.1} parent=1 // loop_header
      %s22 = sphi 0, %s26
      %p23 = scmp.ge.s32.totalorder %s22, 4
      %s32 = sphi 0, %s34
      %s35 = sphi 0, %s32
      %s36 = sphi 0, %s35
      %s52 = sphi 0, %s36
      %s56 = sphi 0, %s56
      %s58 = sphi 0, %s56
      %s59 = sphi 0, %s58
      %s73 = sphi 0, %s59
      %s77 = sphi 0, %s77
      %s79 = sphi 0, %s77
      %s80 = sphi 0, %s79
      %s94 = sphi 0, %s80
      %s98 = sphi 0, %s98
      %s100 = sphi 0, %s98
      %s101 = sphi 0, %s100
      %s115 = sphi 0, %s101
      %s119 = sphi 0, %s119
      %s121 = sphi 0, %s119
      %s122 = sphi 0, %s121
      %s136 = sphi 0, %s122
      %s140 = sphi 0, %s140
      %s142 = sphi 0, %s140
      %s143 = sphi 0, %s142
      %s157 = sphi 0, %s143
      %s161 = sphi 0, %s161
      %s163 = sphi 0, %s161
      %s164 = sphi 0, %s163
      %s178 = sphi 0, %s164
      %s182 = sphi 0, %s182
      %s184 = sphi 0, %s182
      %s185 = sphi 0, %s184
      %s199 = sphi 0, %s185
      %s203 = sphi 0, %s203
      %s205 = sphi 0, %s203
      %s206 = sphi 0, %s205
      %s220 = sphi 0, %s206
      %s224 = sphi 0, %s224
      %s226 = sphi 0, %s224
      %s227 = sphi 0, %s226
      %s241 = sphi 0, %s227
      %s245 = sphi 0, %s245
      %s247 = sphi 0, %s245
      %s248 = sphi 0, %s247
      %s262 = sphi 0, %s248
      %s266 = sphi 0, %s266
      %s268 = sphi 0, %s266
      %s269 = sphi 0, %s268
      %s283 = sphi 0, %s269
      %s287 = sphi 0, %s287
      %s289 = sphi 0, %s287
      %s290 = sphi 0, %s289
      %s304 = sphi 0, %s290
      %s308 = sphi 0, %s308
      %s310 = sphi 0, %s308
      %s311 = sphi 0, %s310
      %s325 = sphi 0, %s311
      %s329 = sphi 0, %s329
      %s331 = sphi 0, %s329
      %s332 = sphi 0, %s331
      %s346 = sphi 0, %s332
      %s352 = sphi 0, %s354
      %s355 = sphi 0, %s352
      %s356 = sphi 0, %s355
      %s372 = sphi 0, %s356
    $region4: #{tpu_custom_call.1} parent=1 // loop_header_branch
      %25 = sbr.rel (%p23) target = $region8
    $region5: #{tpu_custom_call.1} parent=1 // loop_body
      %s27 = ssub.s32 %s22, 1
      %s28 = ssub.s32 %s22, 2
      %s29 = sadd.s32 %s22, 1
      %s30 = ssub.s32 %s22, %s29
      %p31 = scmp.eq.s32.totalorder %s30, 0
      %s33 = sadd.s32 %s32, 1
      %s34 = scalar_select %p31, %s32, %s33
      %p37 = pneg %p31
      %p38 = scmp.eq.s32.totalorder %s22, 1
      %p39 = por %p37, %p38
      %p40 = scmp.ne.s32.totalorder %s32, %s35
      %p41 = scmp.eq.s32.totalorder %s22, 0
      %p42 = por %p40, %p41
      %p43 = scmp.ne.s32.totalorder %s32, %s35
      %p44 = scmp.eq.s32.totalorder %s27, 1
      %p45 = por %p43, %p44
      %p46 = scmp.ne.s32.totalorder %s35, %s36
      %p47 = scmp.eq.s32.totalorder %s27, 0
      %p48 = por %p46, %p47
      %p49 = scmp.ne.s32.totalorder %s35, %s36
      %p50 = scmp.eq.s32.totalorder %s28, 1
      %p51 = por %p49, %p50
      %p53 = scmp.ne.s32.totalorder %s36, %s52
      %p54 = scmp.eq.s32.totalorder %s28, 0
      %p55 = por %p53, %p54
      %s57 = sadd.s32 %s56, 1
      %p60 = scmp.eq.s32.totalorder %s22, 1
      %p61 = scmp.ne.s32.totalorder %s56, %s58
      %p62 = scmp.eq.s32.totalorder %s22, 0
      %p63 = por %p61, %p62
      %p64 = scmp.ne.s32.totalorder %s56, %s58
      %p65 = scmp.eq.s32.totalorder %s27, 1
      %p66 = por %p64, %p65
      %p67 = scmp.ne.s32.totalorder %s58, %s59
      %p68 = scmp.eq.s32.totalorder %s27, 0
      %p69 = por %p67, %p68
      %p70 = scmp.ne.s32.totalorder %s58, %s59
      %p71 = scmp.eq.s32.totalorder %s28, 1
      %p72 = por %p70, %p71
      %p74 = scmp.ne.s32.totalorder %s59, %s73
      %p75 = scmp.eq.s32.totalorder %s28, 0
      %p76 = por %p74, %p75
      %s78 = sadd.s32 %s77, 1
      %p81 = scmp.eq.s32.totalorder %s22, 1
      %p82 = scmp.ne.s32.totalorder %s77, %s79
      %p83 = scmp.eq.s32.totalorder %s22, 0
      %p84 = por %p82, %p83
      %p85 = scmp.ne.s32.totalorder %s77, %s79
      %p86 = scmp.eq.s32.totalorder %s27, 1
      %p87 = por %p85, %p86
      %p88 = scmp.ne.s32.totalorder %s79, %s80
      %p89 = scmp.eq.s32.totalorder %s27, 0
      %p90 = por %p88, %p89
      %p91 = scmp.ne.s32.totalorder %s79, %s80
      %p92 = scmp.eq.s32.totalorder %s28, 1
      %p93 = por %p91, %p92
      %p95 = scmp.ne.s32.totalorder %s80, %s94
      %p96 = scmp.eq.s32.totalorder %s28, 0
      %p97 = por %p95, %p96
      %s99 = sadd.s32 %s98, 1
      %p102 = scmp.eq.s32.totalorder %s22, 1
      %p103 = scmp.ne.s32.totalorder %s98, %s100
      %p104 = scmp.eq.s32.totalorder %s22, 0
      %p105 = por %p103, %p104
      %p106 = scmp.ne.s32.totalorder %s98, %s100
      %p107 = scmp.eq.s32.totalorder %s27, 1
      %p108 = por %p106, %p107
      %p109 = scmp.ne.s32.totalorder %s100, %s101
      %p110 = scmp.eq.s32.totalorder %s27, 0
      %p111 = por %p109, %p110
      %p112 = scmp.ne.s32.totalorder %s100, %s101
      %p113 = scmp.eq.s32.totalorder %s28, 1
      %p114 = por %p112, %p113
      %p116 = scmp.ne.s32.totalorder %s101, %s115
      %p117 = scmp.eq.s32.totalorder %s28, 0
      %p118 = por %p116, %p117
      %s120 = sadd.s32 %s119, 1
      %p123 = scmp.eq.s32.totalorder %s22, 1
      %p124 = scmp.ne.s32.totalorder %s119, %s121
      %p125 = scmp.eq.s32.totalorder %s22, 0
      %p126 = por %p124, %p125
      %p127 = scmp.ne.s32.totalorder %s119, %s121
      %p128 = scmp.eq.s32.totalorder %s27, 1
      %p129 = por %p127, %p128
      %p130 = scmp.ne.s32.totalorder %s121, %s122
      %p131 = scmp.eq.s32.totalorder %s27, 0
      %p132 = por %p130, %p131
      %p133 = scmp.ne.s32.totalorder %s121, %s122
      %p134 = scmp.eq.s32.totalorder %s28, 1
      %p135 = por %p133, %p134
      %p137 = scmp.ne.s32.totalorder %s122, %s136
      %p138 = scmp.eq.s32.totalorder %s28, 0
      %p139 = por %p137, %p138
      %s141 = sadd.s32 %s140, 1
      %p144 = scmp.eq.s32.totalorder %s22, 1
      %p145 = scmp.ne.s32.totalorder %s140, %s142
      %p146 = scmp.eq.s32.totalorder %s22, 0
      %p147 = por %p145, %p146
      %p148 = scmp.ne.s32.totalorder %s140, %s142
      %p149 = scmp.eq.s32.totalorder %s27, 1
      %p150 = por %p148, %p149
      %p151 = scmp.ne.s32.totalorder %s142, %s143
      %p152 = scmp.eq.s32.totalorder %s27, 0
      %p153 = por %p151, %p152
      %p154 = scmp.ne.s32.totalorder %s142, %s143
      %p155 = scmp.eq.s32.totalorder %s28, 1
      %p156 = por %p154, %p155
      %p158 = scmp.ne.s32.totalorder %s143, %s157
      %p159 = scmp.eq.s32.totalorder %s28, 0
      %p160 = por %p158, %p159
      %s162 = sadd.s32 %s161, 1
      %p165 = scmp.eq.s32.totalorder %s22, 1
      %p166 = scmp.ne.s32.totalorder %s161, %s163
      %p167 = scmp.eq.s32.totalorder %s22, 0
      %p168 = por %p166, %p167
      %p169 = scmp.ne.s32.totalorder %s161, %s163
      %p170 = scmp.eq.s32.totalorder %s27, 1
      %p171 = por %p169, %p170
      %p172 = scmp.ne.s32.totalorder %s163, %s164
      %p173 = scmp.eq.s32.totalorder %s27, 0
      %p174 = por %p172, %p173
      %p175 = scmp.ne.s32.totalorder %s163, %s164
      %p176 = scmp.eq.s32.totalorder %s28, 1
      %p177 = por %p175, %p176
      %p179 = scmp.ne.s32.totalorder %s164, %s178
      %p180 = scmp.eq.s32.totalorder %s28, 0
      %p181 = por %p179, %p180
      %s183 = sadd.s32 %s182, 1
      %p186 = scmp.eq.s32.totalorder %s22, 1
      %p187 = scmp.ne.s32.totalorder %s182, %s184
      %p188 = scmp.eq.s32.totalorder %s22, 0
      %p189 = por %p187, %p188
      %p190 = scmp.ne.s32.totalorder %s182, %s184
      %p191 = scmp.eq.s32.totalorder %s27, 1
      %p192 = por %p190, %p191
      %p193 = scmp.ne.s32.totalorder %s184, %s185
      %p194 = scmp.eq.s32.totalorder %s27, 0
      %p195 = por %p193, %p194
      %p196 = scmp.ne.s32.totalorder %s184, %s185
      %p197 = scmp.eq.s32.totalorder %s28, 1
      %p198 = por %p196, %p197
      %p200 = scmp.ne.s32.totalorder %s185, %s199
      %p201 = scmp.eq.s32.totalorder %s28, 0
      %p202 = por %p200, %p201
      %s204 = sadd.s32 %s203, 1
      %p207 = scmp.eq.s32.totalorder %s22, 1
      %p208 = scmp.ne.s32.totalorder %s203, %s205
      %p209 = scmp.eq.s32.totalorder %s22, 0
      %p210 = por %p208, %p209
      %p211 = scmp.ne.s32.totalorder %s203, %s205
      %p212 = scmp.eq.s32.totalorder %s27, 1
      %p213 = por %p211, %p212
      %p214 = scmp.ne.s32.totalorder %s205, %s206
      %p215 = scmp.eq.s32.totalorder %s27, 0
      %p216 = por %p214, %p215
      %p217 = scmp.ne.s32.totalorder %s205, %s206
      %p218 = scmp.eq.s32.totalorder %s28, 1
      %p219 = por %p217, %p218
      %p221 = scmp.ne.s32.totalorder %s206, %s220
      %p222 = scmp.eq.s32.totalorder %s28, 0
      %p223 = por %p221, %p222
      %s225 = sadd.s32 %s224, 1
      %p228 = scmp.eq.s32.totalorder %s22, 1
      %p229 = scmp.ne.s32.totalorder %s224, %s226
      %p230 = scmp.eq.s32.totalorder %s22, 0
      %p231 = por %p229, %p230
      %p232 = scmp.ne.s32.totalorder %s224, %s226
      %p233 = scmp.eq.s32.totalorder %s27, 1
      %p234 = por %p232, %p233
      %p235 = scmp.ne.s32.totalorder %s226, %s227
      %p236 = scmp.eq.s32.totalorder %s27, 0
      %p237 = por %p235, %p236
      %p238 = scmp.ne.s32.totalorder %s226, %s227
      %p239 = scmp.eq.s32.totalorder %s28, 1
      %p240 = por %p238, %p239
      %p242 = scmp.ne.s32.totalorder %s227, %s241
      %p243 = scmp.eq.s32.totalorder %s28, 0
      %p244 = por %p242, %p243
      %s246 = sadd.s32 %s245, 1
      %p249 = scmp.eq.s32.totalorder %s22, 1
      %p250 = scmp.ne.s32.totalorder %s245, %s247
      %p251 = scmp.eq.s32.totalorder %s22, 0
      %p252 = por %p250, %p251
      %p253 = scmp.ne.s32.totalorder %s245, %s247
      %p254 = scmp.eq.s32.totalorder %s27, 1
      %p255 = por %p253, %p254
      %p256 = scmp.ne.s32.totalorder %s247, %s248
      %p257 = scmp.eq.s32.totalorder %s27, 0
      %p258 = por %p256, %p257
      %p259 = scmp.ne.s32.totalorder %s247, %s248
      %p260 = scmp.eq.s32.totalorder %s28, 1
      %p261 = por %p259, %p260
      %p263 = scmp.ne.s32.totalorder %s248, %s262
      %p264 = scmp.eq.s32.totalorder %s28, 0
      %p265 = por %p263, %p264
      %s267 = sadd.s32 %s266, 1
      %p270 = scmp.eq.s32.totalorder %s22, 1
      %p271 = scmp.ne.s32.totalorder %s266, %s268
      %p272 = scmp.eq.s32.totalorder %s22, 0
      %p273 = por %p271, %p272
      %p274 = scmp.ne.s32.totalorder %s266, %s268
      %p275 = scmp.eq.s32.totalorder %s27, 1
      %p276 = por %p274, %p275
      %p277 = scmp.ne.s32.totalorder %s268, %s269
      %p278 = scmp.eq.s32.totalorder %s27, 0
      %p279 = por %p277, %p278
      %p280 = scmp.ne.s32.totalorder %s268, %s269
      %p281 = scmp.eq.s32.totalorder %s28, 1
      %p282 = por %p280, %p281
      %p284 = scmp.ne.s32.totalorder %s269, %s283
      %p285 = scmp.eq.s32.totalorder %s28, 0
      %p286 = por %p284, %p285
      %s288 = sadd.s32 %s287, 1
      %p291 = scmp.eq.s32.totalorder %s22, 1
      %p292 = scmp.ne.s32.totalorder %s287, %s289
      %p293 = scmp.eq.s32.totalorder %s22, 0
      %p294 = por %p292, %p293
      %p295 = scmp.ne.s32.totalorder %s287, %s289
      %p296 = scmp.eq.s32.totalorder %s27, 1
      %p297 = por %p295, %p296
      %p298 = scmp.ne.s32.totalorder %s289, %s290
      %p299 = scmp.eq.s32.totalorder %s27, 0
      %p300 = por %p298, %p299
      %p301 = scmp.ne.s32.totalorder %s289, %s290
      %p302 = scmp.eq.s32.totalorder %s28, 1
      %p303 = por %p301, %p302
      %p305 = scmp.ne.s32.totalorder %s290, %s304
      %p306 = scmp.eq.s32.totalorder %s28, 0
      %p307 = por %p305, %p306
      %s309 = sadd.s32 %s308, 1
      %p312 = scmp.eq.s32.totalorder %s22, 1
      %p313 = scmp.ne.s32.totalorder %s308, %s310
      %p314 = scmp.eq.s32.totalorder %s22, 0
      %p315 = por %p313, %p314
      %p316 = scmp.ne.s32.totalorder %s308, %s310
      %p317 = scmp.eq.s32.totalorder %s27, 1
      %p318 = por %p316, %p317
      %p319 = scmp.ne.s32.totalorder %s310, %s311
      %p320 = scmp.eq.s32.totalorder %s27, 0
      %p321 = por %p319, %p320
      %p322 = scmp.ne.s32.totalorder %s310, %s311
      %p323 = scmp.eq.s32.totalorder %s28, 1
      %p324 = por %p322, %p323
      %p326 = scmp.ne.s32.totalorder %s311, %s325
      %p327 = scmp.eq.s32.totalorder %s28, 0
      %p328 = por %p326, %p327
      %s330 = sadd.s32 %s329, 1
      %p333 = scmp.eq.s32.totalorder %s22, 1
      %p334 = scmp.ne.s32.totalorder %s329, %s331
      %p335 = scmp.eq.s32.totalorder %s22, 0
      %p336 = por %p334, %p335
      %p337 = scmp.ne.s32.totalorder %s329, %s331
      %p338 = scmp.eq.s32.totalorder %s27, 1
      %p339 = por %p337, %p338
      %p340 = scmp.ne.s32.totalorder %s331, %s332
      %p341 = scmp.eq.s32.totalorder %s27, 0
      %p342 = por %p340, %p341
      %p343 = scmp.ne.s32.totalorder %s331, %s332
      %p344 = scmp.eq.s32.totalorder %s28, 1
      %p345 = por %p343, %p344
      %p347 = scmp.ne.s32.totalorder %s332, %s346
      %p348 = scmp.eq.s32.totalorder %s28, 0
      %p349 = por %p347, %p348
      %s350 = ssub.s32 %s22, %s29
      %p351 = scmp.eq.s32.totalorder %s350, 0
      %s353 = sadd.s32 %s352, 1
      %s354 = scalar_select %p351, %s352, %s353
      %p357 = pneg %p351
      %p358 = scmp.eq.s32.totalorder %s22, 1
      %p359 = por %p357, %p358
      %p360 = scmp.ne.s32.totalorder %s352, %s355
      %p361 = scmp.eq.s32.totalorder %s22, 0
      %p362 = por %p360, %p361
      %p363 = scmp.ne.s32.totalorder %s352, %s355
      %p364 = scmp.eq.s32.totalorder %s27, 1
      %p365 = por %p363, %p364
      %p366 = scmp.ne.s32.totalorder %s355, %s356
      %p367 = scmp.eq.s32.totalorder %s27, 0
      %p368 = por %p366, %p367
      %p369 = scmp.ne.s32.totalorder %s355, %s356
      %p370 = scmp.eq.s32.totalorder %s28, 1
      %p371 = por %p369, %p370
      %p373 = scmp.ne.s32.totalorder %s356, %s372
      %p374 = scmp.eq.s32.totalorder %s28, 0
      %p375 = por %p373, %p374
      %p376 = scmp.le.s32.totalorder 1, %s22
      %p377 = scmp.lt.s32.totalorder %s22, 3
      %p378 = pnand %p376, %p377
      %p379 = pneg %p378
      // Predicated region
      $region9: #{tpu_custom_call.1} parent=5 // pred_check
        _
      $region10: #{tpu_custom_call.1} parent=5 // pred_check_branch
        %381 = sbr.rel (%p378) target = $region12
      $region11: #{tpu_custom_call.1} parent=5 // pred_region
        %s382 = ssub.s32 %s22, 1
        // Predicated region
        $region13: #{tpu_custom_call.1} parent=11 // pred_check
          %p383 = pneg %p69
        $region14: #{tpu_custom_call.1} parent=11 // pred_check_branch
          %385 = sbr.rel (%p383) target = $region16
        $region15: #{tpu_custom_call.1} parent=11 // pred_region
          _
        $region16: #{tpu_custom_call.1} parent=11 // pred_fallthru
          _
        // Predicated region
        $region17: #{tpu_custom_call.1} parent=11 // pred_check
          %p386 = pneg %p90
        $region18: #{tpu_custom_call.1} parent=11 // pred_check_branch
          %388 = sbr.rel (%p386) target = $region20
        $region19: #{tpu_custom_call.1} parent=11 // pred_region
          _
        $region20: #{tpu_custom_call.1} parent=11 // pred_fallthru
          _
        // Predicated region
        $region21: #{tpu_custom_call.1} parent=11 // pred_check
          %p389 = pneg %p111
        $region22: #{tpu_custom_call.1} parent=11 // pred_check_branch
          %391 = sbr.rel (%p389) target = $region24
        $region23: #{tpu_custom_call.1} parent=11 // pred_region
          _
        $region24: #{tpu_custom_call.1} parent=11 // pred_fallthru
          _
        // Predicated region
        $region25: #{tpu_custom_call.1} parent=11 // pred_check
          %p392 = pneg %p132
        $region26: #{tpu_custom_call.1} parent=11 // pred_check_branch
          %394 = sbr.rel (%p392) target = $region28
        $region27: #{tpu_custom_call.1} parent=11 // pred_region
          %396 = vsyncadd [#allocation3], 0
          %s398 = sshll.u32 %s4, 4
          %s399 = int_to_ptr.vmem [resolvable:$true] %s398
          %401 = dma.vmem_to_smem %s399, 16, [#allocation2], [#allocation3]
        $region28: #{tpu_custom_call.1} parent=11 // pred_fallthru
          _
        // Predicated region
        $region29: #{tpu_custom_call.1} parent=11 // pred_check
          %p402 = pneg %p153
        $region30: #{tpu_custom_call.1} parent=11 // pred_check_branch
          %404 = sbr.rel (%p402) target = $region32
        $region31: #{tpu_custom_call.1} parent=11 // pred_region
          _
        $region32: #{tpu_custom_call.1} parent=11 // pred_fallthru
          _
        // Predicated region
        $region33: #{tpu_custom_call.1} parent=11 // pred_check
          %p405 = pneg %p174
        $region34: #{tpu_custom_call.1} parent=11 // pred_check_branch
          %407 = sbr.rel (%p405) target = $region36
        $region35: #{tpu_custom_call.1} parent=11 // pred_region
          _
        $region36: #{tpu_custom_call.1} parent=11 // pred_fallthru
          _
        // Predicated region
        $region37: #{tpu_custom_call.1} parent=11 // pred_check
          %p408 = pneg %p195
        $region38: #{tpu_custom_call.1} parent=11 // pred_check_branch
          %410 = sbr.rel (%p408) target = $region40
        $region39: #{tpu_custom_call.1} parent=11 // pred_region
          _
        $region40: #{tpu_custom_call.1} parent=11 // pred_fallthru
          _
        // Predicated region
        $region41: #{tpu_custom_call.1} parent=11 // pred_check
          %p411 = pneg %p216
        $region42: #{tpu_custom_call.1} parent=11 // pred_check_branch
          %413 = sbr.rel (%p411) target = $region44
        $region43: #{tpu_custom_call.1} parent=11 // pred_region
          _
        $region44: #{tpu_custom_call.1} parent=11 // pred_fallthru
          _
        // Predicated region
        $region45: #{tpu_custom_call.1} parent=11 // pred_check
          %p414 = pneg %p237
        $region46: #{tpu_custom_call.1} parent=11 // pred_check_branch
          %416 = sbr.rel (%p414) target = $region48
        $region47: #{tpu_custom_call.1} parent=11 // pred_region
          _
        $region48: #{tpu_custom_call.1} parent=11 // pred_fallthru
          _
        // Predicated region
        $region49: #{tpu_custom_call.1} parent=11 // pred_check
          %p417 = pneg %p258
        $region50: #{tpu_custom_call.1} parent=11 // pred_check_branch
          %419 = sbr.rel (%p417) target = $region52
        $region51: #{tpu_custom_call.1} parent=11 // pred_region
          _
        $region52: #{tpu_custom_call.1} parent=11 // pred_fallthru
          _
        // Predicated region
        $region53: #{tpu_custom_call.1} parent=11 // pred_check
          %p420 = pneg %p279
        $region54: #{tpu_custom_call.1} parent=11 // pred_check_branch
          %422 = sbr.rel (%p420) target = $region56
        $region55: #{tpu_custom_call.1} parent=11 // pred_region
          _
        $region56: #{tpu_custom_call.1} parent=11 // pred_fallthru
          _
        // Predicated region
        $region57: #{tpu_custom_call.1} parent=11 // pred_check
          %p423 = pneg %p300
        $region58: #{tpu_custom_call.1} parent=11 // pred_check_branch
          %425 = sbr.rel (%p423) target = $region60
        $region59: #{tpu_custom_call.1} parent=11 // pred_region
          _
        $region60: #{tpu_custom_call.1} parent=11 // pred_fallthru
          _
        // Predicated region
        $region61: #{tpu_custom_call.1} parent=11 // pred_check
          %p426 = pneg %p321
        $region62: #{tpu_custom_call.1} parent=11 // pred_check_branch
          %428 = sbr.rel (%p426) target = $region64
        $region63: #{tpu_custom_call.1} parent=11 // pred_region
          _
        $region64: #{tpu_custom_call.1} parent=11 // pred_fallthru
          _
        // Predicated region
        $region65: #{tpu_custom_call.1} parent=11 // pred_check
          %p429 = pneg %p342
        $region66: #{tpu_custom_call.1} parent=11 // pred_check_branch
          %431 = sbr.rel (%p429) target = $region68
        $region67: #{tpu_custom_call.1} parent=11 // pred_region
          _
        $region68: #{tpu_custom_call.1} parent=11 // pred_fallthru
          _
      $region12: #{tpu_custom_call.1} parent=5 // pred_fallthru
        _
      %p432 = scmp.lt.s32.totalorder %s22, 2
      // Predicated region
      $region69: #{tpu_custom_call.1} parent=5 // pred_check
        %p433 = pneg %p432
      $region70: #{tpu_custom_call.1} parent=5 // pred_check_branch
        %435 = sbr.rel (%p433) target = $region72
      $region71: #{tpu_custom_call.1} parent=5 // pred_region
        // Predicated region
        $region73: #{tpu_custom_call.1} parent=71 // pred_check
          %p436 = pneg %p42
        $region74: #{tpu_custom_call.1} parent=71 // pred_check_branch
          %438 = sbr.rel (%p436) target = $region76
        $region75: #{tpu_custom_call.1} parent=71 // pred_region
          %s439 = smul.u32 8, %s22
          %p440 = scmp.lt.s32.totalorder %s439, 15
          %s441 = scalar_select %p440, %s439, 15
          %s442 = smul.addr %s441, 8
          %s443 = scalar_lea.vmem %s0, %s442
          %s444 = smul.u32 8, %s22
        $region76: #{tpu_custom_call.1} parent=71 // pred_fallthru
          _
      $region72: #{tpu_custom_call.1} parent=5 // pred_fallthru
        _
      %p445 = scmp.le.s32.totalorder 1, %s22
      %p446 = scmp.lt.s32.totalorder %s22, 3
      %p447 = pnand %p445, %p446
      %p448 = pneg %p447
      // Predicated region
      $region77: #{tpu_custom_call.1} parent=5 // pred_check
        _
      $region78: #{tpu_custom_call.1} parent=5 // pred_check_branch
        %450 = sbr.rel (%p447) target = $region80
      $region79: #{tpu_custom_call.1} parent=5 // pred_region
        %s451 = ssub.s32 %s22, 1
        // Predicated region
        $region81: #{tpu_custom_call.1} parent=79 // pred_check
          %p452 = pneg %p132
        $region82: #{tpu_custom_call.1} parent=79 // pred_check_branch
          %454 = sbr.rel (%p452) target = $region84
        $region83: #{tpu_custom_call.1} parent=79 // pred_region
          %456 = dma.done [#allocation3], 16
        $region84: #{tpu_custom_call.1} parent=79 // pred_fallthru
          _
        %457 = sfence
        %s458 = smul.u32 8, %s27
        %p459 = scmp.lt.s32.totalorder %s458, 15
        %s460 = scalar_select %p459, %s458, 15
        %s461 = smul.addr %s460, 8
        %s462 = scalar_lea.vmem %s0, %s461
        %p463 = pneg %p48
        %p464 = pneg %p45
        %p465 = pneg %p69
        %p466 = pneg %p66
        %p467 = pneg %p90
        %p468 = pneg %p87
        %p469 = pneg %p111
        %p470 = pneg %p108
        %p471 = pneg %p132
        %p472 = pneg %p129
        %p473 = pneg %p153
        %p474 = pneg %p150
        %p475 = pneg %p174
        %p476 = pneg %p171
        %p477 = pneg %p195
        %p478 = pneg %p192
        %p479 = pneg %p216
        %p480 = pneg %p213
        %p481 = pneg %p237
        %p482 = pneg %p234
        %p483 = pneg %p258
        %p484 = pneg %p255
        %p485 = pneg %p279
        %p486 = pneg %p276
        %p487 = pneg %p300
        %p488 = pneg %p297
        %p489 = pneg %p321
        %p490 = pneg %p318
        %p491 = pneg %p342
        %p492 = pneg %p339
        %p493 = pneg %p368
        %p494 = pneg %p365
        %s495 = smul.u32 8, %s27
        %p496 = scmp.lt.s32.totalorder %s495, 15
        %s497 = scalar_select %p496, %s495, 15
        %s498 = smul.addr %s497, 8
        %s499 = scalar_lea.vmem %s15, %s498
        %s500 = smul.u32 8, %s27
        %p501 = scmp.lt.s32.totalorder %s500, 15
        %s502 = scalar_select %p501, %s500, 15
        %s503 = smul.addr %s502, 8
        %s504 = scalar_lea.vmem %s0, %s503
        %s505 = smul.u32 8, %s27
        %s506 = smul.u32 8, %s27
        %p507 = scmp.lt.s32.totalorder %s506, 15
        %s508 = scalar_select %p507, %s506, 15
        %s509 = smul.addr %s508, 8
        %s510 = scalar_lea.vmem %s15, %s509
        %s511 = smul.u32 8, %s27
        %v512 = vld [vmem:[%s504] sm:$0xff]
        %v513 = vld [vmem:[%s504 + $0x8] sm:$0xff]
        %v514 = vld [vmem:[%s504 + $0x10] sm:$0xff]
        %v515 = vld [vmem:[%s504 + $0x18] sm:$0xff]
        %v516 = vld [vmem:[%s504 + $0x20] sm:$0xff]
        %v517 = vld [vmem:[%s504 + $0x28] sm:$0xff]
        %v518 = vld [vmem:[%s504 + $0x30] sm:$0xff]
        %v519 = vld [vmem:[%s504 + $0x38] sm:$0xff]
        %v520 = vld [vmem:[%s1] sm:$0xff]
        %v521 = vld [vmem:[%s1 + $0x8] sm:$0xff]
        %v522 = vld [vmem:[%s1 + $0x10] sm:$0xff]
        %v523 = vld [vmem:[%s1 + $0x18] sm:$0xff]
        %v524 = vld [vmem:[%s2] sm:$0x1]
        %v526 = vperm.slane %v524, 0
        %vm528 = vcmask 261120
        %v530 = vsel %vm528, %v512, 0
        %v533 = vsel %vm528, %v513, 0
        %v536 = vsel %vm528, %v514, 0
        %v539 = vsel %vm528, %v515, 0
        %v542 = vsel %vm528, %v516, 0
        %v545 = vsel %vm528, %v517, 0
        %v548 = vsel %vm528, %v518, 0
        %v551 = vsel %vm528, %v519, 0
        %553 = vmatpush.msra.mxu0 0.0
        %554 = vmatpush.msra.mxu0 0.0
        %555 = vmatpush.msra.mxu0 0.0
        %556 = vmatpush.msra.mxu0 0.0
        %557 = vmatpush.msra.mxu0 0.0
        %558 = vmatpush.msra.mxu0 0.0
        %559 = vmatpush.msra.mxu0 0.0
        %560 = vmatpush.msra.mxu0 0.0
        %561 = vmatpush.msra.mxu0 0.0
        %562 = vmatpush.msra.mxu0 0.0
        %563 = vmatpush.msra.mxu0 0.0
        %564 = vmatpush.msra.mxu0 0.0
        %565 = vmatpush.msra.mxu0 %v523
        %566 = vmatpush.msra.mxu0 %v522
        %567 = vmatpush.msra.mxu0 %v521
        %568 = vmatpush.msra.mxu0 %v520
        %569 = vmatmul.f32.gmra.mxu0 %v530
        %v570 = vpop.f32.mrf.mxu0
        %v571 = vadd.f32 %v526, %v570
        %572 = vmatmul.f32.gmra.mxu0 %v533
        %v573 = vpop.f32.mrf.mxu0
        %v574 = vadd.f32 %v526, %v573
        %575 = vmatmul.f32.gmra.mxu0 %v536
        %v576 = vpop.f32.mrf.mxu0
        %v577 = vadd.f32 %v526, %v576
        %578 = vmatmul.f32.gmra.mxu0 %v539
        %v579 = vpop.f32.mrf.mxu0
        %v580 = vadd.f32 %v526, %v579
        %581 = vmatmul.f32.gmra.mxu0 %v542
        %v582 = vpop.f32.mrf.mxu0
        %v583 = vadd.f32 %v526, %v582
        %584 = vmatmul.f32.gmra.mxu0 %v545
        %v585 = vpop.f32.mrf.mxu0
        %v586 = vadd.f32 %v526, %v585
        %587 = vmatmul.f32.gmra.mxu0 %v548
        %v588 = vpop.f32.mrf.mxu0
        %v589 = vadd.f32 %v526, %v588
        %590 = vmatmul.f32.gmra.mxu0 %v551
        %v591 = vpop.f32.mrf.mxu0
        %v592 = vadd.f32 %v526, %v591
        %593 = vdwg.mxu0
        %v594 = vld [vmem:[%s5] sm:$0xff]
        %v595 = vld [vmem:[%s5 + $0x8] sm:$0xff]
        %v596 = vld [vmem:[%s5 + $0x10] sm:$0xff]
        %v597 = vld [vmem:[%s5 + $0x18] sm:$0xff]
        %v598 = vmul.f32 %v571, %v571
        %v599 = vmul.f32 %v574, %v574
        %v600 = vmul.f32 %v577, %v577
        %v601 = vmul.f32 %v580, %v580
        %v602 = vmul.f32 %v583, %v583
        %v603 = vmul.f32 %v586, %v586
        %v604 = vmul.f32 %v589, %v589
        %v605 = vmul.f32 %v592, %v592
        %vm606 = vcmask 64512
        %v607 = vsel %vm606, %v598, 0.0
        %608 = vadd.xlane.f32.xlu0 %v607
        %v609 = vpop.xlane.xlu0 %608
        %v610 = vsel %vm606, %v599, 0.0
        %611 = vadd.xlane.f32.xlu0 %v610
        %v612 = vpop.xlane.xlu0 %611
        %v613 = vsel %vm606, %v600, 0.0
        %614 = vadd.xlane.f32.xlu0 %v613
        %v615 = vpop.xlane.xlu0 %614
        %v616 = vsel %vm606, %v601, 0.0
        %617 = vadd.xlane.f32.xlu0 %v616
        %v618 = vpop.xlane.xlu0 %617
        %v619 = vsel %vm606, %v602, 0.0
        %620 = vadd.xlane.f32.xlu0 %v619
        %v621 = vpop.xlane.xlu0 %620
        %v622 = vsel %vm606, %v603, 0.0
        %623 = vadd.xlane.f32.xlu0 %v622
        %v624 = vpop.xlane.xlu0 %623
        %v625 = vsel %vm606, %v604, 0.0
        %626 = vadd.xlane.f32.xlu0 %v625
        %v627 = vpop.xlane.xlu0 %626
        %v628 = vsel %vm606, %v605, 0.0
        %629 = vadd.xlane.f32.xlu0 %v628
        %v630 = vpop.xlane.xlu0 %629
        %v631 = vmax.f32 %v609, 1e-24
        %v632 = vmax.f32 %v612, 1e-24
        %v633 = vmax.f32 %v615, 1e-24
        %v634 = vmax.f32 %v618, 1e-24
        %v635 = vmax.f32 %v621, 1e-24
        %v636 = vmax.f32 %v624, 1e-24
        %v637 = vmax.f32 %v627, 1e-24
        %v638 = vmax.f32 %v630, 1e-24
        %v639 = vrsqrt.pop %v631
        %v640 = vmul.f32 %v639, %v631
        %v641 = vmul.f32 %v640, %v639
        %v642 = vmul.f32 0.5, %v641
        %v643 = vsub.f32 1.5, %v642
        %v644 = vmul.f32 %v639, %v643
        %vm645 = vweird.f32 %v631
        %vm646 = vweird.f32 %v639
        %vm647 = vmor %vm645, %vm646
        %v648 = vsel %vm647, %v639, %v644
        %v649 = vrsqrt.pop %v632
        %v650 = vmul.f32 %v649, %v632
        %v651 = vmul.f32 %v650, %v649
        %v652 = vmul.f32 0.5, %v651
        %v653 = vsub.f32 1.5, %v652
        %v654 = vmul.f32 %v649, %v653
        %vm655 = vweird.f32 %v632
        %vm656 = vweird.f32 %v649
        %vm657 = vmor %vm655, %vm656
        %v658 = vsel %vm657, %v649, %v654
        %v659 = vrsqrt.pop %v633
        %v660 = vmul.f32 %v659, %v633
        %v661 = vmul.f32 %v660, %v659
        %v662 = vmul.f32 0.5, %v661
        %v663 = vsub.f32 1.5, %v662
        %v664 = vmul.f32 %v659, %v663
        %vm665 = vweird.f32 %v633
        %vm666 = vweird.f32 %v659
        %vm667 = vmor %vm665, %vm666
        %v668 = vsel %vm667, %v659, %v664
        %v669 = vrsqrt.pop %v634
        %v670 = vmul.f32 %v669, %v634
        %v671 = vmul.f32 %v670, %v669
        %v672 = vmul.f32 0.5, %v671
        %v673 = vsub.f32 1.5, %v672
        %v674 = vmul.f32 %v669, %v673
        %vm675 = vweird.f32 %v634
        %vm676 = vweird.f32 %v669
        %vm677 = vmor %vm675, %vm676
        %v678 = vsel %vm677, %v669, %v674
        %v679 = vrsqrt.pop %v635
        %v680 = vmul.f32 %v679, %v635
        %v681 = vmul.f32 %v680, %v679
        %v682 = vmul.f32 0.5, %v681
        %v683 = vsub.f32 1.5, %v682
        %v684 = vmul.f32 %v679, %v683
        %vm685 = vweird.f32 %v635
        %vm686 = vweird.f32 %v679
        %vm687 = vmor %vm685, %vm686
        %v688 = vsel %vm687, %v679, %v684
        %v689 = vrsqrt.pop %v636
        %v690 = vmul.f32 %v689, %v636
        %v691 = vmul.f32 %v690, %v689
        %v692 = vmul.f32 0.5, %v691
        %v693 = vsub.f32 1.5, %v692
        %v694 = vmul.f32 %v689, %v693
        %vm695 = vweird.f32 %v636
        %vm696 = vweird.f32 %v689
        %vm697 = vmor %vm695, %vm696
        %v698 = vsel %vm697, %v689, %v694
        %v699 = vrsqrt.pop %v637
        %v700 = vmul.f32 %v699, %v637
        %v701 = vmul.f32 %v700, %v699
        %v702 = vmul.f32 0.5, %v701
        %v703 = vsub.f32 1.5, %v702
        %v704 = vmul.f32 %v699, %v703
        %vm705 = vweird.f32 %v637
        %vm706 = vweird.f32 %v699
        %vm707 = vmor %vm705, %vm706
        %v708 = vsel %vm707, %v699, %v704
        %v709 = vrsqrt.pop %v638
        %v710 = vmul.f32 %v709, %v638
        %v711 = vmul.f32 %v710, %v709
        %v712 = vmul.f32 0.5, %v711
        %v713 = vsub.f32 1.5, %v712
        %v714 = vmul.f32 %v709, %v713
        %vm715 = vweird.f32 %v638
        %vm716 = vweird.f32 %v709
        %vm717 = vmor %vm715, %vm716
        %v718 = vsel %vm717, %v709, %v714
        %v719 = vmul.f32 %v571, %v648
        %v720 = vmul.f32 %v574, %v658
        %v721 = vmul.f32 %v577, %v668
        %v722 = vmul.f32 %v580, %v678
        %v723 = vmul.f32 %v583, %v688
        %v724 = vmul.f32 %v586, %v698
        %v725 = vmul.f32 %v589, %v708
        %v726 = vmul.f32 %v592, %v718
        %735 = vrot.lane.b32.xlu0 %v598, 96
        %v736 = vpop.permute.xlu0 %735
        %737 = vrot.lane.b32.xlu0 %v599, 96
        %v738 = vpop.permute.xlu0 %737
        %739 = vrot.lane.b32.xlu0 %v600, 96
        %v740 = vpop.permute.xlu0 %739
        %741 = vrot.lane.b32.xlu0 %v601, 96
        %v742 = vpop.permute.xlu0 %741
        %743 = vrot.lane.b32.xlu0 %v602, 96
        %v744 = vpop.permute.xlu0 %743
        %745 = vrot.lane.b32.xlu0 %v603, 96
        %v746 = vpop.permute.xlu0 %745
        %747 = vrot.lane.b32.xlu0 %v604, 96
        %v748 = vpop.permute.xlu0 %747
        %749 = vrot.lane.b32.xlu0 %v605, 96
        %v750 = vpop.permute.xlu0 %749
        %v759 = vsel %vm606, %v736, 0.0
        %760 = vadd.xlane.f32.xlu0 %v759
        %v761 = vpop.xlane.xlu0 %760
        %v762 = vsel %vm606, %v738, 0.0
        %763 = vadd.xlane.f32.xlu0 %v762
        %v764 = vpop.xlane.xlu0 %763
        %v765 = vsel %vm606, %v740, 0.0
        %766 = vadd.xlane.f32.xlu0 %v765
        %v767 = vpop.xlane.xlu0 %766
        %v768 = vsel %vm606, %v742, 0.0
        %769 = vadd.xlane.f32.xlu0 %v768
        %v770 = vpop.xlane.xlu0 %769
        %v771 = vsel %vm606, %v744, 0.0
        %772 = vadd.xlane.f32.xlu0 %v771
        %v773 = vpop.xlane.xlu0 %772
        %v774 = vsel %vm606, %v746, 0.0
        %775 = vadd.xlane.f32.xlu0 %v774
        %v776 = vpop.xlane.xlu0 %775
        %v777 = vsel %vm606, %v748, 0.0
        %778 = vadd.xlane.f32.xlu0 %v777
        %v779 = vpop.xlane.xlu0 %778
        %v780 = vsel %vm606, %v750, 0.0
        %781 = vadd.xlane.f32.xlu0 %v780
        %v782 = vpop.xlane.xlu0 %781
        %v783 = vmax.f32 %v761, 1e-24
        %v784 = vmax.f32 %v764, 1e-24
        %v785 = vmax.f32 %v767, 1e-24
        %v786 = vmax.f32 %v770, 1e-24
        %v787 = vmax.f32 %v773, 1e-24
        %v788 = vmax.f32 %v776, 1e-24
        %v789 = vmax.f32 %v779, 1e-24
        %v790 = vmax.f32 %v782, 1e-24
        %v791 = vrsqrt.pop %v783
        %v792 = vmul.f32 %v791, %v783
        %v793 = vmul.f32 %v792, %v791
        %v794 = vmul.f32 0.5, %v793
        %v795 = vsub.f32 1.5, %v794
        %v796 = vmul.f32 %v791, %v795
        %vm797 = vweird.f32 %v783
        %vm798 = vweird.f32 %v791
        %vm799 = vmor %vm797, %vm798
        %v800 = vsel %vm799, %v791, %v796
        %v801 = vrsqrt.pop %v784
        %v802 = vmul.f32 %v801, %v784
        %v803 = vmul.f32 %v802, %v801
        %v804 = vmul.f32 0.5, %v803
        %v805 = vsub.f32 1.5, %v804
        %v806 = vmul.f32 %v801, %v805
        %vm807 = vweird.f32 %v784
        %vm808 = vweird.f32 %v801
        %vm809 = vmor %vm807, %vm808
        %v810 = vsel %vm809, %v801, %v806
        %v811 = vrsqrt.pop %v785
        %v812 = vmul.f32 %v811, %v785
        %v813 = vmul.f32 %v812, %v811
        %v814 = vmul.f32 0.5, %v813
        %v815 = vsub.f32 1.5, %v814
        %v816 = vmul.f32 %v811, %v815
        %vm817 = vweird.f32 %v785
        %vm818 = vweird.f32 %v811
        %vm819 = vmor %vm817, %vm818
        %v820 = vsel %vm819, %v811, %v816
        %v821 = vrsqrt.pop %v786
        %v822 = vmul.f32 %v821, %v786
        %v823 = vmul.f32 %v822, %v821
        %v824 = vmul.f32 0.5, %v823
        %v825 = vsub.f32 1.5, %v824
        %v826 = vmul.f32 %v821, %v825
        %vm827 = vweird.f32 %v786
        %vm828 = vweird.f32 %v821
        %vm829 = vmor %vm827, %vm828
        %v830 = vsel %vm829, %v821, %v826
        %v831 = vrsqrt.pop %v787
        %v832 = vmul.f32 %v831, %v787
        %v833 = vmul.f32 %v832, %v831
        %v834 = vmul.f32 0.5, %v833
        %v835 = vsub.f32 1.5, %v834
        %v836 = vmul.f32 %v831, %v835
        %vm837 = vweird.f32 %v787
        %vm838 = vweird.f32 %v831
        %vm839 = vmor %vm837, %vm838
        %v840 = vsel %vm839, %v831, %v836
        %v841 = vrsqrt.pop %v788
        %v842 = vmul.f32 %v841, %v788
        %v843 = vmul.f32 %v842, %v841
        %v844 = vmul.f32 0.5, %v843
        %v845 = vsub.f32 1.5, %v844
        %v846 = vmul.f32 %v841, %v845
        %vm847 = vweird.f32 %v788
        %vm848 = vweird.f32 %v841
        %vm849 = vmor %vm847, %vm848
        %v850 = vsel %vm849, %v841, %v846
        %v851 = vrsqrt.pop %v789
        %v852 = vmul.f32 %v851, %v789
        %v853 = vmul.f32 %v852, %v851
        %v854 = vmul.f32 0.5, %v853
        %v855 = vsub.f32 1.5, %v854
        %v856 = vmul.f32 %v851, %v855
        %vm857 = vweird.f32 %v789
        %vm858 = vweird.f32 %v851
        %vm859 = vmor %vm857, %vm858
        %v860 = vsel %vm859, %v851, %v856
        %v861 = vrsqrt.pop %v790
        %v862 = vmul.f32 %v861, %v790
        %v863 = vmul.f32 %v862, %v861
        %v864 = vmul.f32 0.5, %v863
        %v865 = vsub.f32 1.5, %v864
        %v866 = vmul.f32 %v861, %v865
        %vm867 = vweird.f32 %v790
        %vm868 = vweird.f32 %v861
        %vm869 = vmor %vm867, %vm868
        %v870 = vsel %vm869, %v861, %v866
        %v871 = vmul.f32 %v571, %v800
        %v872 = vmul.f32 %v574, %v810
        %v873 = vmul.f32 %v577, %v820
        %v874 = vmul.f32 %v580, %v830
        %v875 = vmul.f32 %v583, %v840
        %v876 = vmul.f32 %v586, %v850
        %v877 = vmul.f32 %v589, %v860
        %v878 = vmul.f32 %v592, %v870
        %s879 = sld [smem:[#allocation2]]
        %v880 = vstv %s879
        %v881 = vmul.f32 %v719, %v880
        %v882 = vmul.f32 %v720, %v880
        %v883 = vmul.f32 %v721, %v880
        %v884 = vmul.f32 %v722, %v880
        %v885 = vmul.f32 %v723, %v880
        %v886 = vmul.f32 %v724, %v880
        %v887 = vmul.f32 %v725, %v880
        %v888 = vmul.f32 %v726, %v880
        %v889 = vld [vmem:[%s3] sm:$0xff]
        %v890 = vld [vmem:[%s3 + $0x8] sm:$0xff]
        %893 = vrot.lane.b32.xlu0 %v871, 96
        %v894 = vpop.permute.xlu0 %893
        %895 = vrot.lane.b32.xlu0 %v872, 96
        %v896 = vpop.permute.xlu0 %895
        %v898 = vsel %vm606, %v881, 0
        %v901 = vsel %vm606, %v882, 0
        %v903 = vsel %vm606, %v894, 0
        %v905 = vsel %vm606, %v896, 0
        %907 = vmatpush.xpose.msra.mxu0 0.0
        %908 = vmatpush.xpose.msra.mxu0 0.0
        %909 = vmatpush.xpose.msra.mxu0 0.0
        %910 = vmatpush.xpose.msra.mxu0 0.0
        %911 = vmatpush.xpose.msra.mxu0 0.0
        %912 = vmatpush.xpose.msra.mxu0 0.0
        %913 = vmatpush.xpose.msra.mxu0 0.0
        %914 = vmatpush.xpose.msra.mxu0 0.0
        %915 = vmatpush.xpose.msra.mxu0 0.0
        %916 = vmatpush.xpose.msra.mxu0 0.0
        %917 = vmatpush.xpose.msra.mxu0 0.0
        %918 = vmatpush.xpose.msra.mxu0 0.0
        %919 = vmatpush.xpose.msra.mxu0 0.0
        %920 = vmatpush.xpose.msra.mxu0 0.0
        %921 = vmatpush.xpose.msra.mxu0 %v905
        %922 = vmatpush.xpose.msra.mxu0 %v903
        %923 = vmatmul.f32.gmra.mxu0 %v898
        %v924 = vpop.f32.mrf.mxu0
        %v925 = vadd.f32 %v889, %v924
        %926 = vmatmul.f32.gmra.mxu0 %v901
        %v927 = vpop.f32.mrf.mxu0
        %v928 = vadd.f32 %v890, %v927
        %929 = vdwg.mxu0
        %932 = vrot.lane.b32.xlu0 %v873, 96
        %v933 = vpop.permute.xlu0 %932
        %934 = vrot.lane.b32.xlu0 %v874, 96
        %v935 = vpop.permute.xlu0 %934
        %v937 = vsel %vm606, %v883, 0
        %v940 = vsel %vm606, %v884, 0
        %v942 = vsel %vm606, %v933, 0
        %v944 = vsel %vm606, %v935, 0
        %946 = vmatpush.xpose.msra.mxu0 0.0
        %947 = vmatpush.xpose.msra.mxu0 0.0
        %948 = vmatpush.xpose.msra.mxu0 0.0
        %949 = vmatpush.xpose.msra.mxu0 0.0
        %950 = vmatpush.xpose.msra.mxu0 0.0
        %951 = vmatpush.xpose.msra.mxu0 0.0
        %952 = vmatpush.xpose.msra.mxu0 0.0
        %953 = vmatpush.xpose.msra.mxu0 0.0
        %954 = vmatpush.xpose.msra.mxu0 0.0
        %955 = vmatpush.xpose.msra.mxu0 0.0
        %956 = vmatpush.xpose.msra.mxu0 0.0
        %957 = vmatpush.xpose.msra.mxu0 0.0
        %958 = vmatpush.xpose.msra.mxu0 0.0
        %959 = vmatpush.xpose.msra.mxu0 0.0
        %960 = vmatpush.xpose.msra.mxu0 %v944
        %961 = vmatpush.xpose.msra.mxu0 %v942
        %962 = vmatmul.f32.gmra.mxu0 %v937
        %v963 = vpop.f32.mrf.mxu0
        %v964 = vadd.f32 %v889, %v963
        %965 = vmatmul.f32.gmra.mxu0 %v940
        %v966 = vpop.f32.mrf.mxu0
        %v967 = vadd.f32 %v890, %v966
        %968 = vdwg.mxu0
        %971 = vrot.lane.b32.xlu0 %v875, 96
        %v972 = vpop.permute.xlu0 %971
        %973 = vrot.lane.b32.xlu0 %v876, 96
        %v974 = vpop.permute.xlu0 %973
        %v976 = vsel %vm606, %v885, 0
        %v979 = vsel %vm606, %v886, 0
        %v981 = vsel %vm606, %v972, 0
        %v983 = vsel %vm606, %v974, 0
        %985 = vmatpush.xpose.msra.mxu0 0.0
        %986 = vmatpush.xpose.msra.mxu0 0.0
        %987 = vmatpush.xpose.msra.mxu0 0.0
        %988 = vmatpush.xpose.msra.mxu0 0.0
        %989 = vmatpush.xpose.msra.mxu0 0.0
        %990 = vmatpush.xpose.msra.mxu0 0.0
        %991 = vmatpush.xpose.msra.mxu0 0.0
        %992 = vmatpush.xpose.msra.mxu0 0.0
        %993 = vmatpush.xpose.msra.mxu0 0.0
        %994 = vmatpush.xpose.msra.mxu0 0.0
        %995 = vmatpush.xpose.msra.mxu0 0.0
        %996 = vmatpush.xpose.msra.mxu0 0.0
        %997 = vmatpush.xpose.msra.mxu0 0.0
        %998 = vmatpush.xpose.msra.mxu0 0.0
        %999 = vmatpush.xpose.msra.mxu0 %v983
        %1000 = vmatpush.xpose.msra.mxu0 %v981
        %1001 = vmatmul.f32.gmra.mxu0 %v976
        %v1002 = vpop.f32.mrf.mxu0
        %v1003 = vadd.f32 %v889, %v1002
        %1004 = vmatmul.f32.gmra.mxu0 %v979
        %v1005 = vpop.f32.mrf.mxu0
        %v1006 = vadd.f32 %v890, %v1005
        %1007 = vdwg.mxu0
        %1010 = vrot.lane.b32.xlu0 %v877, 96
        %v1011 = vpop.permute.xlu0 %1010
        %1012 = vrot.lane.b32.xlu0 %v878, 96
        %v1013 = vpop.permute.xlu0 %1012
        %v1015 = vsel %vm606, %v887, 0
        %v1018 = vsel %vm606, %v888, 0
        %v1020 = vsel %vm606, %v1011, 0
        %v1022 = vsel %vm606, %v1013, 0
        %1024 = vmatpush.xpose.msra.mxu0 0.0
        %1025 = vmatpush.xpose.msra.mxu0 0.0
        %1026 = vmatpush.xpose.msra.mxu0 0.0
        %1027 = vmatpush.xpose.msra.mxu0 0.0
        %1028 = vmatpush.xpose.msra.mxu0 0.0
        %1029 = vmatpush.xpose.msra.mxu0 0.0
        %1030 = vmatpush.xpose.msra.mxu0 0.0
        %1031 = vmatpush.xpose.msra.mxu0 0.0
        %1032 = vmatpush.xpose.msra.mxu0 0.0
        %1033 = vmatpush.xpose.msra.mxu0 0.0
        %1034 = vmatpush.xpose.msra.mxu0 0.0
        %1035 = vmatpush.xpose.msra.mxu0 0.0
        %1036 = vmatpush.xpose.msra.mxu0 0.0
        %1037 = vmatpush.xpose.msra.mxu0 0.0
        %1038 = vmatpush.xpose.msra.mxu0 %v1022
        %1039 = vmatpush.xpose.msra.mxu0 %v1020
        %1040 = vmatmul.f32.gmra.mxu0 %v1015
        %v1041 = vpop.f32.mrf.mxu0
        %v1042 = vadd.f32 %v889, %v1041
        %1043 = vmatmul.f32.gmra.mxu0 %v1018
        %v1044 = vpop.f32.mrf.mxu0
        %v1045 = vadd.f32 %v890, %v1044
        %1046 = vdwg.mxu0
        %vm1047 = vcmask 130048
        %v1048 = vsel %vm1047, %v925, -inf
        %1049 = vmax.xlane.f32.xlu0 %v1048
        %v1050 = vpop.xlane.xlu0 %1049
        %v1051 = vsel %vm1047, %v928, -inf
        %1052 = vmax.xlane.f32.xlu0 %v1051
        %v1053 = vpop.xlane.xlu0 %1052
        %v1054 = vsel %vm1047, %v964, -inf
        %1055 = vmax.xlane.f32.xlu0 %v1054
        %v1056 = vpop.xlane.xlu0 %1055
        %v1057 = vsel %vm1047, %v967, -inf
        %1058 = vmax.xlane.f32.xlu0 %v1057
        %v1059 = vpop.xlane.xlu0 %1058
        %v1060 = vsel %vm1047, %v1003, -inf
        %1061 = vmax.xlane.f32.xlu0 %v1060
        %v1062 = vpop.xlane.xlu0 %1061
        %v1063 = vsel %vm1047, %v1006, -inf
        %1064 = vmax.xlane.f32.xlu0 %v1063
        %v1065 = vpop.xlane.xlu0 %1064
        %v1066 = vsel %vm1047, %v1042, -inf
        %1067 = vmax.xlane.f32.xlu0 %v1066
        %v1068 = vpop.xlane.xlu0 %1067
        %v1069 = vsel %vm1047, %v1045, -inf
        %1070 = vmax.xlane.f32.xlu0 %v1069
        %v1071 = vpop.xlane.xlu0 %1070
        %v1072 = vsub.f32 %v925, %v1050
        %v1073 = vsub.f32 %v928, %v1053
        %v1074 = vsub.f32 %v964, %v1056
        %v1075 = vsub.f32 %v967, %v1059
        %v1076 = vsub.f32 %v1003, %v1062
        %v1077 = vsub.f32 %v1006, %v1065
        %v1078 = vsub.f32 %v1042, %v1068
        %v1079 = vsub.f32 %v1045, %v1071
        %v1080 = vmul.f32 %v1072, 1.442695
        %v1081 = vpow.pop %v1080
        %v1082 = vmul.f32 %v1073, 1.442695
        %v1083 = vpow.pop %v1082
        %v1084 = vmul.f32 %v1074, 1.442695
        %v1085 = vpow.pop %v1084
        %v1086 = vmul.f32 %v1075, 1.442695
        %v1087 = vpow.pop %v1086
        %v1088 = vmul.f32 %v1076, 1.442695
        %v1089 = vpow.pop %v1088
        %v1090 = vmul.f32 %v1077, 1.442695
        %v1091 = vpow.pop %v1090
        %v1092 = vmul.f32 %v1078, 1.442695
        %v1093 = vpow.pop %v1092
        %v1094 = vmul.f32 %v1079, 1.442695
        %v1095 = vpow.pop %v1094
        %v1096 = vsel %vm1047, %v1081, 0.0
        %1097 = vadd.xlane.f32.xlu0 %v1096
        %v1098 = vpop.xlane.xlu0 %1097
        %v1099 = vsel %vm1047, %v1083, 0.0
        %1100 = vadd.xlane.f32.xlu0 %v1099
        %v1101 = vpop.xlane.xlu0 %1100
        %v1102 = vsel %vm1047, %v1085, 0.0
        %1103 = vadd.xlane.f32.xlu0 %v1102
        %v1104 = vpop.xlane.xlu0 %1103
        %v1105 = vsel %vm1047, %v1087, 0.0
        %1106 = vadd.xlane.f32.xlu0 %v1105
        %v1107 = vpop.xlane.xlu0 %1106
        %v1108 = vsel %vm1047, %v1089, 0.0
        %1109 = vadd.xlane.f32.xlu0 %v1108
        %v1110 = vpop.xlane.xlu0 %1109
        %v1111 = vsel %vm1047, %v1091, 0.0
        %1112 = vadd.xlane.f32.xlu0 %v1111
        %v1113 = vpop.xlane.xlu0 %1112
        %v1114 = vsel %vm1047, %v1093, 0.0
        %1115 = vadd.xlane.f32.xlu0 %v1114
        %v1116 = vpop.xlane.xlu0 %1115
        %v1117 = vsel %vm1047, %v1095, 0.0
        %1118 = vadd.xlane.f32.xlu0 %v1117
        %v1119 = vpop.xlane.xlu0 %1118
        %v1120 = vrcp.pop %v1098
        %v1121 = vmul.f32 %v1098, %v1120
        %v1122 = vsub.f32 1.0, %v1121
        %v1123 = vmul.f32 %v1120, %v1122
        %v1124 = vadd.f32 %v1120, %v1123
        %vm1125 = vweird.f32 %v1098
        %vm1126 = vweird.f32 %v1120
        %vm1127 = vmor %vm1125, %vm1126
        %v1128 = vsel %vm1127, %v1120, %v1124
        %v1129 = vand.u32 2147483647, %v1098
        %vm1130 = vcmp.eq.f32.partialorder %v1129, 8.507059e+37
        %v1131 = vand.u32 %v1098, 2147483648
        %v1132 = vor.u32 1.1754944e-38, %v1131
        %v1133 = vsel %vm1130, %v1132, %v1128
        %v1134 = vrcp.pop %v1101
        %v1135 = vmul.f32 %v1101, %v1134
        %v1136 = vsub.f32 1.0, %v1135
        %v1137 = vmul.f32 %v1134, %v1136
        %v1138 = vadd.f32 %v1134, %v1137
        %vm1139 = vweird.f32 %v1101
        %vm1140 = vweird.f32 %v1134
        %vm1141 = vmor %vm1139, %vm1140
        %v1142 = vsel %vm1141, %v1134, %v1138
        %v1143 = vand.u32 2147483647, %v1101
        %vm1144 = vcmp.eq.f32.partialorder %v1143, 8.507059e+37
        %v1145 = vand.u32 %v1101, 2147483648
        %v1146 = vor.u32 1.1754944e-38, %v1145
        %v1147 = vsel %vm1144, %v1146, %v1142
        %v1148 = vrcp.pop %v1104
        %v1149 = vmul.f32 %v1104, %v1148
        %v1150 = vsub.f32 1.0, %v1149
        %v1151 = vmul.f32 %v1148, %v1150
        %v1152 = vadd.f32 %v1148, %v1151
        %vm1153 = vweird.f32 %v1104
        %vm1154 = vweird.f32 %v1148
        %vm1155 = vmor %vm1153, %vm1154
        %v1156 = vsel %vm1155, %v1148, %v1152
        %v1157 = vand.u32 2147483647, %v1104
        %vm1158 = vcmp.eq.f32.partialorder %v1157, 8.507059e+37
        %v1159 = vand.u32 %v1104, 2147483648
        %v1160 = vor.u32 1.1754944e-38, %v1159
        %v1161 = vsel %vm1158, %v1160, %v1156
        %v1162 = vrcp.pop %v1107
        %v1163 = vmul.f32 %v1107, %v1162
        %v1164 = vsub.f32 1.0, %v1163
        %v1165 = vmul.f32 %v1162, %v1164
        %v1166 = vadd.f32 %v1162, %v1165
        %vm1167 = vweird.f32 %v1107
        %vm1168 = vweird.f32 %v1162
        %vm1169 = vmor %vm1167, %vm1168
        %v1170 = vsel %vm1169, %v1162, %v1166
        %v1171 = vand.u32 2147483647, %v1107
        %vm1172 = vcmp.eq.f32.partialorder %v1171, 8.507059e+37
        %v1173 = vand.u32 %v1107, 2147483648
        %v1174 = vor.u32 1.1754944e-38, %v1173
        %v1175 = vsel %vm1172, %v1174, %v1170
        %v1176 = vrcp.pop %v1110
        %v1177 = vmul.f32 %v1110, %v1176
        %v1178 = vsub.f32 1.0, %v1177
        %v1179 = vmul.f32 %v1176, %v1178
        %v1180 = vadd.f32 %v1176, %v1179
        %vm1181 = vweird.f32 %v1110
        %vm1182 = vweird.f32 %v1176
        %vm1183 = vmor %vm1181, %vm1182
        %v1184 = vsel %vm1183, %v1176, %v1180
        %v1185 = vand.u32 2147483647, %v1110
        %vm1186 = vcmp.eq.f32.partialorder %v1185, 8.507059e+37
        %v1187 = vand.u32 %v1110, 2147483648
        %v1188 = vor.u32 1.1754944e-38, %v1187
        %v1189 = vsel %vm1186, %v1188, %v1184
        %v1190 = vrcp.pop %v1113
        %v1191 = vmul.f32 %v1113, %v1190
        %v1192 = vsub.f32 1.0, %v1191
        %v1193 = vmul.f32 %v1190, %v1192
        %v1194 = vadd.f32 %v1190, %v1193
        %vm1195 = vweird.f32 %v1113
        %vm1196 = vweird.f32 %v1190
        %vm1197 = vmor %vm1195, %vm1196
        %v1198 = vsel %vm1197, %v1190, %v1194
        %v1199 = vand.u32 2147483647, %v1113
        %vm1200 = vcmp.eq.f32.partialorder %v1199, 8.507059e+37
        %v1201 = vand.u32 %v1113, 2147483648
        %v1202 = vor.u32 1.1754944e-38, %v1201
        %v1203 = vsel %vm1200, %v1202, %v1198
        %v1204 = vrcp.pop %v1116
        %v1205 = vmul.f32 %v1116, %v1204
        %v1206 = vsub.f32 1.0, %v1205
        %v1207 = vmul.f32 %v1204, %v1206
        %v1208 = vadd.f32 %v1204, %v1207
        %vm1209 = vweird.f32 %v1116
        %vm1210 = vweird.f32 %v1204
        %vm1211 = vmor %vm1209, %vm1210
        %v1212 = vsel %vm1211, %v1204, %v1208
        %v1213 = vand.u32 2147483647, %v1116
        %vm1214 = vcmp.eq.f32.partialorder %v1213, 8.507059e+37
        %v1215 = vand.u32 %v1116, 2147483648
        %v1216 = vor.u32 1.1754944e-38, %v1215
        %v1217 = vsel %vm1214, %v1216, %v1212
        %v1218 = vrcp.pop %v1119
        %v1219 = vmul.f32 %v1119, %v1218
        %v1220 = vsub.f32 1.0, %v1219
        %v1221 = vmul.f32 %v1218, %v1220
        %v1222 = vadd.f32 %v1218, %v1221
        %vm1223 = vweird.f32 %v1119
        %vm1224 = vweird.f32 %v1218
        %vm1225 = vmor %vm1223, %vm1224
        %v1226 = vsel %vm1225, %v1218, %v1222
        %v1227 = vand.u32 2147483647, %v1119
        %vm1228 = vcmp.eq.f32.partialorder %v1227, 8.507059e+37
        %v1229 = vand.u32 %v1119, 2147483648
        %v1230 = vor.u32 1.1754944e-38, %v1229
        %v1231 = vsel %vm1228, %v1230, %v1226
        %v1232 = vmul.f32 %v1081, %v1133
        %v1233 = vmul.f32 %v1083, %v1147
        %v1234 = vmul.f32 %v1085, %v1161
        %v1235 = vmul.f32 %v1087, %v1175
        %v1236 = vmul.f32 %v1089, %v1189
        %v1237 = vmul.f32 %v1091, %v1203
        %v1238 = vmul.f32 %v1093, %v1217
        %v1239 = vmul.f32 %v1095, %v1231
        %1242 = vrot.lane.b32.xlu0 %v571, 64
        %v1243 = vpop.permute.xlu0 %1242
        %1244 = vrot.lane.b32.xlu0 %v574, 64
        %v1245 = vpop.permute.xlu0 %1244
        %v1249 = vsel %vm1047, %v1232, 0
        %v1252 = vsel %vm1047, %v1233, 0
        %1254 = vmatpush.msra.mxu0 0.0
        %1255 = vmatpush.msra.mxu0 0.0
        %1256 = vmatpush.msra.mxu0 0.0
        %1257 = vmatpush.msra.mxu0 0.0
        %1258 = vmatpush.msra.mxu0 0.0
        %1259 = vmatpush.msra.mxu0 0.0
        %1260 = vmatpush.msra.mxu0 0.0
        %1261 = vmatpush.msra.mxu0 0.0
        %1262 = vmatpush.msra.mxu0 0.0
        %1263 = vmatpush.msra.mxu0 0.0
        %1264 = vmatpush.msra.mxu0 0.0
        %1265 = vmatpush.msra.mxu0 0.0
        %1266 = vmatpush.msra.mxu0 0.0
        %1267 = vmatpush.msra.mxu0 0.0
        %1268 = vmatpush.msra.mxu0 %v1245
        %1269 = vmatpush.msra.mxu0 %v1243
        %1270 = vmatmul.f32.gmra.mxu0 %v1249
        %v1271 = vpop.f32.mrf.mxu0
        %v1272 = vadd.f32 0.0, %v1271
        %1273 = vmatmul.f32.gmra.mxu0 %v1252
        %v1274 = vpop.f32.mrf.mxu0
        %v1275 = vadd.f32 0.0, %v1274
        %1276 = vdwg.mxu0
        %1279 = vrot.lane.b32.xlu0 %v577, 64
        %v1280 = vpop.permute.xlu0 %1279
        %1281 = vrot.lane.b32.xlu0 %v580, 64
        %v1282 = vpop.permute.xlu0 %1281
        %v1286 = vsel %vm1047, %v1234, 0
        %v1289 = vsel %vm1047, %v1235, 0
        %1291 = vmatpush.msra.mxu0 0.0
        %1292 = vmatpush.msra.mxu0 0.0
        %1293 = vmatpush.msra.mxu0 0.0
        %1294 = vmatpush.msra.mxu0 0.0
        %1295 = vmatpush.msra.mxu0 0.0
        %1296 = vmatpush.msra.mxu0 0.0
        %1297 = vmatpush.msra.mxu0 0.0
        %1298 = vmatpush.msra.mxu0 0.0
        %1299 = vmatpush.msra.mxu0 0.0
        %1300 = vmatpush.msra.mxu0 0.0
        %1301 = vmatpush.msra.mxu0 0.0
        %1302 = vmatpush.msra.mxu0 0.0
        %1303 = vmatpush.msra.mxu0 0.0
        %1304 = vmatpush.msra.mxu0 0.0
        %1305 = vmatpush.msra.mxu0 %v1282
        %1306 = vmatpush.msra.mxu0 %v1280
        %1307 = vmatmul.f32.gmra.mxu0 %v1286
        %v1308 = vpop.f32.mrf.mxu0
        %v1309 = vadd.f32 0.0, %v1308
        %1310 = vmatmul.f32.gmra.mxu0 %v1289
        %v1311 = vpop.f32.mrf.mxu0
        %v1312 = vadd.f32 0.0, %v1311
        %1313 = vdwg.mxu0
        %1316 = vrot.lane.b32.xlu0 %v583, 64
        %v1317 = vpop.permute.xlu0 %1316
        %1318 = vrot.lane.b32.xlu0 %v586, 64
        %v1319 = vpop.permute.xlu0 %1318
        %v1323 = vsel %vm1047, %v1236, 0
        %v1326 = vsel %vm1047, %v1237, 0
        %1328 = vmatpush.msra.mxu0 0.0
        %1329 = vmatpush.msra.mxu0 0.0
        %1330 = vmatpush.msra.mxu0 0.0
        %1331 = vmatpush.msra.mxu0 0.0
        %1332 = vmatpush.msra.mxu0 0.0
        %1333 = vmatpush.msra.mxu0 0.0
        %1334 = vmatpush.msra.mxu0 0.0
        %1335 = vmatpush.msra.mxu0 0.0
        %1336 = vmatpush.msra.mxu0 0.0
        %1337 = vmatpush.msra.mxu0 0.0
        %1338 = vmatpush.msra.mxu0 0.0
        %1339 = vmatpush.msra.mxu0 0.0
        %1340 = vmatpush.msra.mxu0 0.0
        %1341 = vmatpush.msra.mxu0 0.0
        %1342 = vmatpush.msra.mxu0 %v1319
        %1343 = vmatpush.msra.mxu0 %v1317
        %1344 = vmatmul.f32.gmra.mxu0 %v1323
        %v1345 = vpop.f32.mrf.mxu0
        %v1346 = vadd.f32 0.0, %v1345
        %1347 = vmatmul.f32.gmra.mxu0 %v1326
        %v1348 = vpop.f32.mrf.mxu0
        %v1349 = vadd.f32 0.0, %v1348
        %1350 = vdwg.mxu0
        %1353 = vrot.lane.b32.xlu0 %v589, 64
        %v1354 = vpop.permute.xlu0 %1353
        %1355 = vrot.lane.b32.xlu0 %v592, 64
        %v1356 = vpop.permute.xlu0 %1355
        %v1360 = vsel %vm1047, %v1238, 0
        %v1363 = vsel %vm1047, %v1239, 0
        %1365 = vmatpush.msra.mxu0 0.0
        %1366 = vmatpush.msra.mxu0 0.0
        %1367 = vmatpush.msra.mxu0 0.0
        %1368 = vmatpush.msra.mxu0 0.0
        %1369 = vmatpush.msra.mxu0 0.0
        %1370 = vmatpush.msra.mxu0 0.0
        %1371 = vmatpush.msra.mxu0 0.0
        %1372 = vmatpush.msra.mxu0 0.0
        %1373 = vmatpush.msra.mxu0 0.0
        %1374 = vmatpush.msra.mxu0 0.0
        %1375 = vmatpush.msra.mxu0 0.0
        %1376 = vmatpush.msra.mxu0 0.0
        %1377 = vmatpush.msra.mxu0 0.0
        %1378 = vmatpush.msra.mxu0 0.0
        %1379 = vmatpush.msra.mxu0 %v1356
        %1380 = vmatpush.msra.mxu0 %v1354
        %1381 = vmatmul.f32.gmra.mxu0 %v1360
        %v1382 = vpop.f32.mrf.mxu0
        %v1383 = vadd.f32 0.0, %v1382
        %1384 = vmatmul.f32.gmra.mxu0 %v1363
        %v1385 = vpop.f32.mrf.mxu0
        %v1386 = vadd.f32 0.0, %v1385
        %1387 = vdwg.mxu0
        %1388 = vrot.lane.b32.xlu0 %v598, 120
        %v1389 = vpop.permute.xlu0 %1388
        %1390 = vrot.lane.b32.xlu0 %v599, 120
        %v1391 = vpop.permute.xlu0 %1390
        %1392 = vrot.lane.b32.xlu0 %v600, 120
        %v1393 = vpop.permute.xlu0 %1392
        %1394 = vrot.lane.b32.xlu0 %v601, 120
        %v1395 = vpop.permute.xlu0 %1394
        %1396 = vrot.lane.b32.xlu0 %v602, 120
        %v1397 = vpop.permute.xlu0 %1396
        %1398 = vrot.lane.b32.xlu0 %v603, 120
        %v1399 = vpop.permute.xlu0 %1398
        %1400 = vrot.lane.b32.xlu0 %v604, 120
        %v1401 = vpop.permute.xlu0 %1400
        %1402 = vrot.lane.b32.xlu0 %v605, 120
        %v1403 = vpop.permute.xlu0 %1402
        %v1412 = vsel %vm606, %v1389, 0.0
        %1413 = vadd.xlane.f32.xlu0 %v1412
        %v1414 = vpop.xlane.xlu0 %1413
        %v1415 = vsel %vm606, %v1391, 0.0
        %1416 = vadd.xlane.f32.xlu0 %v1415
        %v1417 = vpop.xlane.xlu0 %1416
        %v1418 = vsel %vm606, %v1393, 0.0
        %1419 = vadd.xlane.f32.xlu0 %v1418
        %v1420 = vpop.xlane.xlu0 %1419
        %v1421 = vsel %vm606, %v1395, 0.0
        %1422 = vadd.xlane.f32.xlu0 %v1421
        %v1423 = vpop.xlane.xlu0 %1422
        %v1424 = vsel %vm606, %v1397, 0.0
        %1425 = vadd.xlane.f32.xlu0 %v1424
        %v1426 = vpop.xlane.xlu0 %1425
        %v1427 = vsel %vm606, %v1399, 0.0
        %1428 = vadd.xlane.f32.xlu0 %v1427
        %v1429 = vpop.xlane.xlu0 %1428
        %v1430 = vsel %vm606, %v1401, 0.0
        %1431 = vadd.xlane.f32.xlu0 %v1430
        %v1432 = vpop.xlane.xlu0 %1431
        %v1433 = vsel %vm606, %v1403, 0.0
        %1434 = vadd.xlane.f32.xlu0 %v1433
        %v1435 = vpop.xlane.xlu0 %1434
        %v1436 = vmax.f32 %v1414, 1e-24
        %v1437 = vmax.f32 %v1417, 1e-24
        %v1438 = vmax.f32 %v1420, 1e-24
        %v1439 = vmax.f32 %v1423, 1e-24
        %v1440 = vmax.f32 %v1426, 1e-24
        %v1441 = vmax.f32 %v1429, 1e-24
        %v1442 = vmax.f32 %v1432, 1e-24
        %v1443 = vmax.f32 %v1435, 1e-24
        %v1444 = vrsqrt.pop %v1436
        %v1445 = vmul.f32 %v1444, %v1436
        %v1446 = vmul.f32 %v1445, %v1444
        %v1447 = vmul.f32 0.5, %v1446
        %v1448 = vsub.f32 1.5, %v1447
        %v1449 = vmul.f32 %v1444, %v1448
        %vm1450 = vweird.f32 %v1436
        %vm1451 = vweird.f32 %v1444
        %vm1452 = vmor %vm1450, %vm1451
        %v1453 = vsel %vm1452, %v1444, %v1449
        %v1454 = vrsqrt.pop %v1437
        %v1455 = vmul.f32 %v1454, %v1437
        %v1456 = vmul.f32 %v1455, %v1454
        %v1457 = vmul.f32 0.5, %v1456
        %v1458 = vsub.f32 1.5, %v1457
        %v1459 = vmul.f32 %v1454, %v1458
        %vm1460 = vweird.f32 %v1437
        %vm1461 = vweird.f32 %v1454
        %vm1462 = vmor %vm1460, %vm1461
        %v1463 = vsel %vm1462, %v1454, %v1459
        %v1464 = vrsqrt.pop %v1438
        %v1465 = vmul.f32 %v1464, %v1438
        %v1466 = vmul.f32 %v1465, %v1464
        %v1467 = vmul.f32 0.5, %v1466
        %v1468 = vsub.f32 1.5, %v1467
        %v1469 = vmul.f32 %v1464, %v1468
        %vm1470 = vweird.f32 %v1438
        %vm1471 = vweird.f32 %v1464
        %vm1472 = vmor %vm1470, %vm1471
        %v1473 = vsel %vm1472, %v1464, %v1469
        %v1474 = vrsqrt.pop %v1439
        %v1475 = vmul.f32 %v1474, %v1439
        %v1476 = vmul.f32 %v1475, %v1474
        %v1477 = vmul.f32 0.5, %v1476
        %v1478 = vsub.f32 1.5, %v1477
        %v1479 = vmul.f32 %v1474, %v1478
        %vm1480 = vweird.f32 %v1439
        %vm1481 = vweird.f32 %v1474
        %vm1482 = vmor %vm1480, %vm1481
        %v1483 = vsel %vm1482, %v1474, %v1479
        %v1484 = vrsqrt.pop %v1440
        %v1485 = vmul.f32 %v1484, %v1440
        %v1486 = vmul.f32 %v1485, %v1484
        %v1487 = vmul.f32 0.5, %v1486
        %v1488 = vsub.f32 1.5, %v1487
        %v1489 = vmul.f32 %v1484, %v1488
        %vm1490 = vweird.f32 %v1440
        %vm1491 = vweird.f32 %v1484
        %vm1492 = vmor %vm1490, %vm1491
        %v1493 = vsel %vm1492, %v1484, %v1489
        %v1494 = vrsqrt.pop %v1441
        %v1495 = vmul.f32 %v1494, %v1441
        %v1496 = vmul.f32 %v1495, %v1494
        %v1497 = vmul.f32 0.5, %v1496
        %v1498 = vsub.f32 1.5, %v1497
        %v1499 = vmul.f32 %v1494, %v1498
        %vm1500 = vweird.f32 %v1441
        %vm1501 = vweird.f32 %v1494
        %vm1502 = vmor %vm1500, %vm1501
        %v1503 = vsel %vm1502, %v1494, %v1499
        %v1504 = vrsqrt.pop %v1442
        %v1505 = vmul.f32 %v1504, %v1442
        %v1506 = vmul.f32 %v1505, %v1504
        %v1507 = vmul.f32 0.5, %v1506
        %v1508 = vsub.f32 1.5, %v1507
        %v1509 = vmul.f32 %v1504, %v1508
        %vm1510 = vweird.f32 %v1442
        %vm1511 = vweird.f32 %v1504
        %vm1512 = vmor %vm1510, %vm1511
        %v1513 = vsel %vm1512, %v1504, %v1509
        %v1514 = vrsqrt.pop %v1443
        %v1515 = vmul.f32 %v1514, %v1443
        %v1516 = vmul.f32 %v1515, %v1514
        %v1517 = vmul.f32 0.5, %v1516
        %v1518 = vsub.f32 1.5, %v1517
        %v1519 = vmul.f32 %v1514, %v1518
        %vm1520 = vweird.f32 %v1443
        %vm1521 = vweird.f32 %v1514
        %vm1522 = vmor %vm1520, %vm1521
        %v1523 = vsel %vm1522, %v1514, %v1519
        %v1524 = vmul.f32 %v571, %v1453
        %v1525 = vmul.f32 %v574, %v1463
        %v1526 = vmul.f32 %v577, %v1473
        %v1527 = vmul.f32 %v580, %v1483
        %v1528 = vmul.f32 %v583, %v1493
        %v1529 = vmul.f32 %v586, %v1503
        %v1530 = vmul.f32 %v589, %v1513
        %v1531 = vmul.f32 %v592, %v1523
        %1532 = vrot.lane.b32.xlu0 %v598, 88
        %v1533 = vpop.permute.xlu0 %1532
        %1534 = vrot.lane.b32.xlu0 %v599, 88
        %v1535 = vpop.permute.xlu0 %1534
        %1536 = vrot.lane.b32.xlu0 %v600, 88
        %v1537 = vpop.permute.xlu0 %1536
        %1538 = vrot.lane.b32.xlu0 %v601, 88
        %v1539 = vpop.permute.xlu0 %1538
        %1540 = vrot.lane.b32.xlu0 %v602, 88
        %v1541 = vpop.permute.xlu0 %1540
        %1542 = vrot.lane.b32.xlu0 %v603, 88
        %v1543 = vpop.permute.xlu0 %1542
        %1544 = vrot.lane.b32.xlu0 %v604, 88
        %v1545 = vpop.permute.xlu0 %1544
        %1546 = vrot.lane.b32.xlu0 %v605, 88
        %v1547 = vpop.permute.xlu0 %1546
        %v1556 = vsel %vm606, %v1533, 0.0
        %1557 = vadd.xlane.f32.xlu0 %v1556
        %v1558 = vpop.xlane.xlu0 %1557
        %v1559 = vsel %vm606, %v1535, 0.0
        %1560 = vadd.xlane.f32.xlu0 %v1559
        %v1561 = vpop.xlane.xlu0 %1560
        %v1562 = vsel %vm606, %v1537, 0.0
        %1563 = vadd.xlane.f32.xlu0 %v1562
        %v1564 = vpop.xlane.xlu0 %1563
        %v1565 = vsel %vm606, %v1539, 0.0
        %1566 = vadd.xlane.f32.xlu0 %v1565
        %v1567 = vpop.xlane.xlu0 %1566
        %v1568 = vsel %vm606, %v1541, 0.0
        %1569 = vadd.xlane.f32.xlu0 %v1568
        %v1570 = vpop.xlane.xlu0 %1569
        %v1571 = vsel %vm606, %v1543, 0.0
        %1572 = vadd.xlane.f32.xlu0 %v1571
        %v1573 = vpop.xlane.xlu0 %1572
        %v1574 = vsel %vm606, %v1545, 0.0
        %1575 = vadd.xlane.f32.xlu0 %v1574
        %v1576 = vpop.xlane.xlu0 %1575
        %v1577 = vsel %vm606, %v1547, 0.0
        %1578 = vadd.xlane.f32.xlu0 %v1577
        %v1579 = vpop.xlane.xlu0 %1578
        %v1580 = vmax.f32 %v1558, 1e-24
        %v1581 = vmax.f32 %v1561, 1e-24
        %v1582 = vmax.f32 %v1564, 1e-24
        %v1583 = vmax.f32 %v1567, 1e-24
        %v1584 = vmax.f32 %v1570, 1e-24
        %v1585 = vmax.f32 %v1573, 1e-24
        %v1586 = vmax.f32 %v1576, 1e-24
        %v1587 = vmax.f32 %v1579, 1e-24
        %v1588 = vrsqrt.pop %v1580
        %v1589 = vmul.f32 %v1588, %v1580
        %v1590 = vmul.f32 %v1589, %v1588
        %v1591 = vmul.f32 0.5, %v1590
        %v1592 = vsub.f32 1.5, %v1591
        %v1593 = vmul.f32 %v1588, %v1592
        %vm1594 = vweird.f32 %v1580
        %vm1595 = vweird.f32 %v1588
        %vm1596 = vmor %vm1594, %vm1595
        %v1597 = vsel %vm1596, %v1588, %v1593
        %v1598 = vrsqrt.pop %v1581
        %v1599 = vmul.f32 %v1598, %v1581
        %v1600 = vmul.f32 %v1599, %v1598
        %v1601 = vmul.f32 0.5, %v1600
        %v1602 = vsub.f32 1.5, %v1601
        %v1603 = vmul.f32 %v1598, %v1602
        %vm1604 = vweird.f32 %v1581
        %vm1605 = vweird.f32 %v1598
        %vm1606 = vmor %vm1604, %vm1605
        %v1607 = vsel %vm1606, %v1598, %v1603
        %v1608 = vrsqrt.pop %v1582
        %v1609 = vmul.f32 %v1608, %v1582
        %v1610 = vmul.f32 %v1609, %v1608
        %v1611 = vmul.f32 0.5, %v1610
        %v1612 = vsub.f32 1.5, %v1611
        %v1613 = vmul.f32 %v1608, %v1612
        %vm1614 = vweird.f32 %v1582
        %vm1615 = vweird.f32 %v1608
        %vm1616 = vmor %vm1614, %vm1615
        %v1617 = vsel %vm1616, %v1608, %v1613
        %v1618 = vrsqrt.pop %v1583
        %v1619 = vmul.f32 %v1618, %v1583
        %v1620 = vmul.f32 %v1619, %v1618
        %v1621 = vmul.f32 0.5, %v1620
        %v1622 = vsub.f32 1.5, %v1621
        %v1623 = vmul.f32 %v1618, %v1622
        %vm1624 = vweird.f32 %v1583
        %vm1625 = vweird.f32 %v1618
        %vm1626 = vmor %vm1624, %vm1625
        %v1627 = vsel %vm1626, %v1618, %v1623
        %v1628 = vrsqrt.pop %v1584
        %v1629 = vmul.f32 %v1628, %v1584
        %v1630 = vmul.f32 %v1629, %v1628
        %v1631 = vmul.f32 0.5, %v1630
        %v1632 = vsub.f32 1.5, %v1631
        %v1633 = vmul.f32 %v1628, %v1632
        %vm1634 = vweird.f32 %v1584
        %vm1635 = vweird.f32 %v1628
        %vm1636 = vmor %vm1634, %vm1635
        %v1637 = vsel %vm1636, %v1628, %v1633
        %v1638 = vrsqrt.pop %v1585
        %v1639 = vmul.f32 %v1638, %v1585
        %v1640 = vmul.f32 %v1639, %v1638
        %v1641 = vmul.f32 0.5, %v1640
        %v1642 = vsub.f32 1.5, %v1641
        %v1643 = vmul.f32 %v1638, %v1642
        %vm1644 = vweird.f32 %v1585
        %vm1645 = vweird.f32 %v1638
        %vm1646 = vmor %vm1644, %vm1645
        %v1647 = vsel %vm1646, %v1638, %v1643
        %v1648 = vrsqrt.pop %v1586
        %v1649 = vmul.f32 %v1648, %v1586
        %v1650 = vmul.f32 %v1649, %v1648
        %v1651 = vmul.f32 0.5, %v1650
        %v1652 = vsub.f32 1.5, %v1651
        %v1653 = vmul.f32 %v1648, %v1652
        %vm1654 = vweird.f32 %v1586
        %vm1655 = vweird.f32 %v1648
        %vm1656 = vmor %vm1654, %vm1655
        %v1657 = vsel %vm1656, %v1648, %v1653
        %v1658 = vrsqrt.pop %v1587
        %v1659 = vmul.f32 %v1658, %v1587
        %v1660 = vmul.f32 %v1659, %v1658
        %v1661 = vmul.f32 0.5, %v1660
        %v1662 = vsub.f32 1.5, %v1661
        %v1663 = vmul.f32 %v1658, %v1662
        %vm1664 = vweird.f32 %v1587
        %vm1665 = vweird.f32 %v1658
        %vm1666 = vmor %vm1664, %vm1665
        %v1667 = vsel %vm1666, %v1658, %v1663
        %v1668 = vmul.f32 %v571, %v1597
        %v1669 = vmul.f32 %v574, %v1607
        %v1670 = vmul.f32 %v577, %v1617
        %v1671 = vmul.f32 %v580, %v1627
        %v1672 = vmul.f32 %v583, %v1637
        %v1673 = vmul.f32 %v586, %v1647
        %v1674 = vmul.f32 %v589, %v1657
        %v1675 = vmul.f32 %v592, %v1667
        %s1676 = sld [smem:[#allocation2 + $0x1]]
        %v1677 = vstv %s1676
        %v1678 = vmul.f32 %v1524, %v1677
        %v1679 = vmul.f32 %v1525, %v1677
        %v1680 = vmul.f32 %v1526, %v1677
        %v1681 = vmul.f32 %v1527, %v1677
        %v1682 = vmul.f32 %v1528, %v1677
        %v1683 = vmul.f32 %v1529, %v1677
        %v1684 = vmul.f32 %v1530, %v1677
        %v1685 = vmul.f32 %v1531, %v1677
        %s1686 = scalar_lea.vmem %s3, 16
        %v1687 = vld [vmem:[%s1686] sm:$0xff]
        %v1688 = vld [vmem:[%s1686 + $0x8] sm:$0xff]
        %1691 = vrot.lane.b32.xlu0 %v1678, 120
        %v1692 = vpop.permute.xlu0 %1691
        %1693 = vrot.lane.b32.xlu0 %v1679, 120
        %v1694 = vpop.permute.xlu0 %1693
        %1697 = vrot.lane.b32.xlu0 %v1668, 88
        %v1698 = vpop.permute.xlu0 %1697
        %1699 = vrot.lane.b32.xlu0 %v1669, 88
        %v1700 = vpop.permute.xlu0 %1699
        %v1701 = vsel %vm606, %v1692, 0
        %v1703 = vsel %vm606, %v1694, 0
        %v1705 = vsel %vm606, %v1698, 0
        %v1707 = vsel %vm606, %v1700, 0
        %1709 = vmatpush.xpose.msra.mxu0 0.0
        %1710 = vmatpush.xpose.msra.mxu0 0.0
        %1711 = vmatpush.xpose.msra.mxu0 0.0
        %1712 = vmatpush.xpose.msra.mxu0 0.0
        %1713 = vmatpush.xpose.msra.mxu0 0.0
        %1714 = vmatpush.xpose.msra.mxu0 0.0
        %1715 = vmatpush.xpose.msra.mxu0 0.0
        %1716 = vmatpush.xpose.msra.mxu0 0.0
        %1717 = vmatpush.xpose.msra.mxu0 0.0
        %1718 = vmatpush.xpose.msra.mxu0 0.0
        %1719 = vmatpush.xpose.msra.mxu0 0.0
        %1720 = vmatpush.xpose.msra.mxu0 0.0
        %1721 = vmatpush.xpose.msra.mxu0 0.0
        %1722 = vmatpush.xpose.msra.mxu0 0.0
        %1723 = vmatpush.xpose.msra.mxu0 %v1707
        %1724 = vmatpush.xpose.msra.mxu0 %v1705
        %1725 = vmatmul.f32.gmra.mxu0 %v1701
        %v1726 = vpop.f32.mrf.mxu0
        %v1727 = vadd.f32 %v1687, %v1726
        %1728 = vmatmul.f32.gmra.mxu0 %v1703
        %v1729 = vpop.f32.mrf.mxu0
        %v1730 = vadd.f32 %v1688, %v1729
        %1731 = vdwg.mxu0
        %1734 = vrot.lane.b32.xlu0 %v1680, 120
        %v1735 = vpop.permute.xlu0 %1734
        %1736 = vrot.lane.b32.xlu0 %v1681, 120
        %v1737 = vpop.permute.xlu0 %1736
        %1740 = vrot.lane.b32.xlu0 %v1670, 88
        %v1741 = vpop.permute.xlu0 %1740
        %1742 = vrot.lane.b32.xlu0 %v1671, 88
        %v1743 = vpop.permute.xlu0 %1742
        %v1744 = vsel %vm606, %v1735, 0
        %v1746 = vsel %vm606, %v1737, 0
        %v1748 = vsel %vm606, %v1741, 0
        %v1750 = vsel %vm606, %v1743, 0
        %1752 = vmatpush.xpose.msra.mxu0 0.0
        %1753 = vmatpush.xpose.msra.mxu0 0.0
        %1754 = vmatpush.xpose.msra.mxu0 0.0
        %1755 = vmatpush.xpose.msra.mxu0 0.0
        %1756 = vmatpush.xpose.msra.mxu0 0.0
        %1757 = vmatpush.xpose.msra.mxu0 0.0
        %1758 = vmatpush.xpose.msra.mxu0 0.0
        %1759 = vmatpush.xpose.msra.mxu0 0.0
        %1760 = vmatpush.xpose.msra.mxu0 0.0
        %1761 = vmatpush.xpose.msra.mxu0 0.0
        %1762 = vmatpush.xpose.msra.mxu0 0.0
        %1763 = vmatpush.xpose.msra.mxu0 0.0
        %1764 = vmatpush.xpose.msra.mxu0 0.0
        %1765 = vmatpush.xpose.msra.mxu0 0.0
        %1766 = vmatpush.xpose.msra.mxu0 %v1750
        %1767 = vmatpush.xpose.msra.mxu0 %v1748
        %1768 = vmatmul.f32.gmra.mxu0 %v1744
        %v1769 = vpop.f32.mrf.mxu0
        %v1770 = vadd.f32 %v1687, %v1769
        %1771 = vmatmul.f32.gmra.mxu0 %v1746
        %v1772 = vpop.f32.mrf.mxu0
        %v1773 = vadd.f32 %v1688, %v1772
        %1774 = vdwg.mxu0
        %1777 = vrot.lane.b32.xlu0 %v1682, 120
        %v1778 = vpop.permute.xlu0 %1777
        %1779 = vrot.lane.b32.xlu0 %v1683, 120
        %v1780 = vpop.permute.xlu0 %1779
        %1783 = vrot.lane.b32.xlu0 %v1672, 88
        %v1784 = vpop.permute.xlu0 %1783
        %1785 = vrot.lane.b32.xlu0 %v1673, 88
        %v1786 = vpop.permute.xlu0 %1785
        %v1787 = vsel %vm606, %v1778, 0
        %v1789 = vsel %vm606, %v1780, 0
        %v1791 = vsel %vm606, %v1784, 0
        %v1793 = vsel %vm606, %v1786, 0
        %1795 = vmatpush.xpose.msra.mxu0 0.0
        %1796 = vmatpush.xpose.msra.mxu0 0.0
        %1797 = vmatpush.xpose.msra.mxu0 0.0
        %1798 = vmatpush.xpose.msra.mxu0 0.0
        %1799 = vmatpush.xpose.msra.mxu0 0.0
        %1800 = vmatpush.xpose.msra.mxu0 0.0
        %1801 = vmatpush.xpose.msra.mxu0 0.0
        %1802 = vmatpush.xpose.msra.mxu0 0.0
        %1803 = vmatpush.xpose.msra.mxu0 0.0
        %1804 = vmatpush.xpose.msra.mxu0 0.0
        %1805 = vmatpush.xpose.msra.mxu0 0.0
        %1806 = vmatpush.xpose.msra.mxu0 0.0
        %1807 = vmatpush.xpose.msra.mxu0 0.0
        %1808 = vmatpush.xpose.msra.mxu0 0.0
        %1809 = vmatpush.xpose.msra.mxu0 %v1793
        %1810 = vmatpush.xpose.msra.mxu0 %v1791
        %1811 = vmatmul.f32.gmra.mxu0 %v1787
        %v1812 = vpop.f32.mrf.mxu0
        %v1813 = vadd.f32 %v1687, %v1812
        %1814 = vmatmul.f32.gmra.mxu0 %v1789
        %v1815 = vpop.f32.mrf.mxu0
        %v1816 = vadd.f32 %v1688, %v1815
        %1817 = vdwg.mxu0
        %1820 = vrot.lane.b32.xlu0 %v1684, 120
        %v1821 = vpop.permute.xlu0 %1820
        %1822 = vrot.lane.b32.xlu0 %v1685, 120
        %v1823 = vpop.permute.xlu0 %1822
        %1826 = vrot.lane.b32.xlu0 %v1674, 88
        %v1827 = vpop.permute.xlu0 %1826
        %1828 = vrot.lane.b32.xlu0 %v1675, 88
        %v1829 = vpop.permute.xlu0 %1828
        %v1830 = vsel %vm606, %v1821, 0
        %v1832 = vsel %vm606, %v1823, 0
        %v1834 = vsel %vm606, %v1827, 0
        %v1836 = vsel %vm606, %v1829, 0
        %1838 = vmatpush.xpose.msra.mxu0 0.0
        %1839 = vmatpush.xpose.msra.mxu0 0.0
        %1840 = vmatpush.xpose.msra.mxu0 0.0
        %1841 = vmatpush.xpose.msra.mxu0 0.0
        %1842 = vmatpush.xpose.msra.mxu0 0.0
        %1843 = vmatpush.xpose.msra.mxu0 0.0
        %1844 = vmatpush.xpose.msra.mxu0 0.0
        %1845 = vmatpush.xpose.msra.mxu0 0.0
        %1846 = vmatpush.xpose.msra.mxu0 0.0
        %1847 = vmatpush.xpose.msra.mxu0 0.0
        %1848 = vmatpush.xpose.msra.mxu0 0.0
        %1849 = vmatpush.xpose.msra.mxu0 0.0
        %1850 = vmatpush.xpose.msra.mxu0 0.0
        %1851 = vmatpush.xpose.msra.mxu0 0.0
        %1852 = vmatpush.xpose.msra.mxu0 %v1836
        %1853 = vmatpush.xpose.msra.mxu0 %v1834
        %1854 = vmatmul.f32.gmra.mxu0 %v1830
        %v1855 = vpop.f32.mrf.mxu0
        %v1856 = vadd.f32 %v1687, %v1855
        %1857 = vmatmul.f32.gmra.mxu0 %v1832
        %v1858 = vpop.f32.mrf.mxu0
        %v1859 = vadd.f32 %v1688, %v1858
        %1860 = vdwg.mxu0
        %v1861 = vsel %vm1047, %v1727, -inf
        %1862 = vmax.xlane.f32.xlu0 %v1861
        %v1863 = vpop.xlane.xlu0 %1862
        %v1864 = vsel %vm1047, %v1730, -inf
        %1865 = vmax.xlane.f32.xlu0 %v1864
        %v1866 = vpop.xlane.xlu0 %1865
        %v1867 = vsel %vm1047, %v1770, -inf
        %1868 = vmax.xlane.f32.xlu0 %v1867
        %v1869 = vpop.xlane.xlu0 %1868
        %v1870 = vsel %vm1047, %v1773, -inf
        %1871 = vmax.xlane.f32.xlu0 %v1870
        %v1872 = vpop.xlane.xlu0 %1871
        %v1873 = vsel %vm1047, %v1813, -inf
        %1874 = vmax.xlane.f32.xlu0 %v1873
        %v1875 = vpop.xlane.xlu0 %1874
        %v1876 = vsel %vm1047, %v1816, -inf
        %1877 = vmax.xlane.f32.xlu0 %v1876
        %v1878 = vpop.xlane.xlu0 %1877
        %v1879 = vsel %vm1047, %v1856, -inf
        %1880 = vmax.xlane.f32.xlu0 %v1879
        %v1881 = vpop.xlane.xlu0 %1880
        %v1882 = vsel %vm1047, %v1859, -inf
        %1883 = vmax.xlane.f32.xlu0 %v1882
        %v1884 = vpop.xlane.xlu0 %1883
        %v1885 = vsub.f32 %v1727, %v1863
        %v1886 = vsub.f32 %v1730, %v1866
        %v1887 = vsub.f32 %v1770, %v1869
        %v1888 = vsub.f32 %v1773, %v1872
        %v1889 = vsub.f32 %v1813, %v1875
        %v1890 = vsub.f32 %v1816, %v1878
        %v1891 = vsub.f32 %v1856, %v1881
        %v1892 = vsub.f32 %v1859, %v1884
        %v1893 = vmul.f32 %v1885, 1.442695
        %v1894 = vpow.pop %v1893
        %v1895 = vmul.f32 %v1886, 1.442695
        %v1896 = vpow.pop %v1895
        %v1897 = vmul.f32 %v1887, 1.442695
        %v1898 = vpow.pop %v1897
        %v1899 = vmul.f32 %v1888, 1.442695
        %v1900 = vpow.pop %v1899
        %v1901 = vmul.f32 %v1889, 1.442695
        %v1902 = vpow.pop %v1901
        %v1903 = vmul.f32 %v1890, 1.442695
        %v1904 = vpow.pop %v1903
        %v1905 = vmul.f32 %v1891, 1.442695
        %v1906 = vpow.pop %v1905
        %v1907 = vmul.f32 %v1892, 1.442695
        %v1908 = vpow.pop %v1907
        %v1909 = vsel %vm1047, %v1894, 0.0
        %1910 = vadd.xlane.f32.xlu0 %v1909
        %v1911 = vpop.xlane.xlu0 %1910
        %v1912 = vsel %vm1047, %v1896, 0.0
        %1913 = vadd.xlane.f32.xlu0 %v1912
        %v1914 = vpop.xlane.xlu0 %1913
        %v1915 = vsel %vm1047, %v1898, 0.0
        %1916 = vadd.xlane.f32.xlu0 %v1915
        %v1917 = vpop.xlane.xlu0 %1916
        %v1918 = vsel %vm1047, %v1900, 0.0
        %1919 = vadd.xlane.f32.xlu0 %v1918
        %v1920 = vpop.xlane.xlu0 %1919
        %v1921 = vsel %vm1047, %v1902, 0.0
        %1922 = vadd.xlane.f32.xlu0 %v1921
        %v1923 = vpop.xlane.xlu0 %1922
        %v1924 = vsel %vm1047, %v1904, 0.0
        %1925 = vadd.xlane.f32.xlu0 %v1924
        %v1926 = vpop.xlane.xlu0 %1925
        %v1927 = vsel %vm1047, %v1906, 0.0
        %1928 = vadd.xlane.f32.xlu0 %v1927
        %v1929 = vpop.xlane.xlu0 %1928
        %v1930 = vsel %vm1047, %v1908, 0.0
        %1931 = vadd.xlane.f32.xlu0 %v1930
        %v1932 = vpop.xlane.xlu0 %1931
        %v1933 = vrcp.pop %v1911
        %v1934 = vmul.f32 %v1911, %v1933
        %v1935 = vsub.f32 1.0, %v1934
        %v1936 = vmul.f32 %v1933, %v1935
        %v1937 = vadd.f32 %v1933, %v1936
        %vm1938 = vweird.f32 %v1911
        %vm1939 = vweird.f32 %v1933
        %vm1940 = vmor %vm1938, %vm1939
        %v1941 = vsel %vm1940, %v1933, %v1937
        %v1942 = vand.u32 2147483647, %v1911
        %vm1943 = vcmp.eq.f32.partialorder %v1942, 8.507059e+37
        %v1944 = vand.u32 %v1911, 2147483648
        %v1945 = vor.u32 1.1754944e-38, %v1944
        %v1946 = vsel %vm1943, %v1945, %v1941
        %v1947 = vrcp.pop %v1914
        %v1948 = vmul.f32 %v1914, %v1947
        %v1949 = vsub.f32 1.0, %v1948
        %v1950 = vmul.f32 %v1947, %v1949
        %v1951 = vadd.f32 %v1947, %v1950
        %vm1952 = vweird.f32 %v1914
        %vm1953 = vweird.f32 %v1947
        %vm1954 = vmor %vm1952, %vm1953
        %v1955 = vsel %vm1954, %v1947, %v1951
        %v1956 = vand.u32 2147483647, %v1914
        %vm1957 = vcmp.eq.f32.partialorder %v1956, 8.507059e+37
        %v1958 = vand.u32 %v1914, 2147483648
        %v1959 = vor.u32 1.1754944e-38, %v1958
        %v1960 = vsel %vm1957, %v1959, %v1955
        %v1961 = vrcp.pop %v1917
        %v1962 = vmul.f32 %v1917, %v1961
        %v1963 = vsub.f32 1.0, %v1962
        %v1964 = vmul.f32 %v1961, %v1963
        %v1965 = vadd.f32 %v1961, %v1964
        %vm1966 = vweird.f32 %v1917
        %vm1967 = vweird.f32 %v1961
        %vm1968 = vmor %vm1966, %vm1967
        %v1969 = vsel %vm1968, %v1961, %v1965
        %v1970 = vand.u32 2147483647, %v1917
        %vm1971 = vcmp.eq.f32.partialorder %v1970, 8.507059e+37
        %v1972 = vand.u32 %v1917, 2147483648
        %v1973 = vor.u32 1.1754944e-38, %v1972
        %v1974 = vsel %vm1971, %v1973, %v1969
        %v1975 = vrcp.pop %v1920
        %v1976 = vmul.f32 %v1920, %v1975
        %v1977 = vsub.f32 1.0, %v1976
        %v1978 = vmul.f32 %v1975, %v1977
        %v1979 = vadd.f32 %v1975, %v1978
        %vm1980 = vweird.f32 %v1920
        %vm1981 = vweird.f32 %v1975
        %vm1982 = vmor %vm1980, %vm1981
        %v1983 = vsel %vm1982, %v1975, %v1979
        %v1984 = vand.u32 2147483647, %v1920
        %vm1985 = vcmp.eq.f32.partialorder %v1984, 8.507059e+37
        %v1986 = vand.u32 %v1920, 2147483648
        %v1987 = vor.u32 1.1754944e-38, %v1986
        %v1988 = vsel %vm1985, %v1987, %v1983
        %v1989 = vrcp.pop %v1923
        %v1990 = vmul.f32 %v1923, %v1989
        %v1991 = vsub.f32 1.0, %v1990
        %v1992 = vmul.f32 %v1989, %v1991
        %v1993 = vadd.f32 %v1989, %v1992
        %vm1994 = vweird.f32 %v1923
        %vm1995 = vweird.f32 %v1989
        %vm1996 = vmor %vm1994, %vm1995
        %v1997 = vsel %vm1996, %v1989, %v1993
        %v1998 = vand.u32 2147483647, %v1923
        %vm1999 = vcmp.eq.f32.partialorder %v1998, 8.507059e+37
        %v2000 = vand.u32 %v1923, 2147483648
        %v2001 = vor.u32 1.1754944e-38, %v2000
        %v2002 = vsel %vm1999, %v2001, %v1997
        %v2003 = vrcp.pop %v1926
        %v2004 = vmul.f32 %v1926, %v2003
        %v2005 = vsub.f32 1.0, %v2004
        %v2006 = vmul.f32 %v2003, %v2005
        %v2007 = vadd.f32 %v2003, %v2006
        %vm2008 = vweird.f32 %v1926
        %vm2009 = vweird.f32 %v2003
        %vm2010 = vmor %vm2008, %vm2009
        %v2011 = vsel %vm2010, %v2003, %v2007
        %v2012 = vand.u32 2147483647, %v1926
        %vm2013 = vcmp.eq.f32.partialorder %v2012, 8.507059e+37
        %v2014 = vand.u32 %v1926, 2147483648
        %v2015 = vor.u32 1.1754944e-38, %v2014
        %v2016 = vsel %vm2013, %v2015, %v2011
        %v2017 = vrcp.pop %v1929
        %v2018 = vmul.f32 %v1929, %v2017
        %v2019 = vsub.f32 1.0, %v2018
        %v2020 = vmul.f32 %v2017, %v2019
        %v2021 = vadd.f32 %v2017, %v2020
        %vm2022 = vweird.f32 %v1929
        %vm2023 = vweird.f32 %v2017
        %vm2024 = vmor %vm2022, %vm2023
        %v2025 = vsel %vm2024, %v2017, %v2021
        %v2026 = vand.u32 2147483647, %v1929
        %vm2027 = vcmp.eq.f32.partialorder %v2026, 8.507059e+37
        %v2028 = vand.u32 %v1929, 2147483648
        %v2029 = vor.u32 1.1754944e-38, %v2028
        %v2030 = vsel %vm2027, %v2029, %v2025
        %v2031 = vrcp.pop %v1932
        %v2032 = vmul.f32 %v1932, %v2031
        %v2033 = vsub.f32 1.0, %v2032
        %v2034 = vmul.f32 %v2031, %v2033
        %v2035 = vadd.f32 %v2031, %v2034
        %vm2036 = vweird.f32 %v1932
        %vm2037 = vweird.f32 %v2031
        %vm2038 = vmor %vm2036, %vm2037
        %v2039 = vsel %vm2038, %v2031, %v2035
        %v2040 = vand.u32 2147483647, %v1932
        %vm2041 = vcmp.eq.f32.partialorder %v2040, 8.507059e+37
        %v2042 = vand.u32 %v1932, 2147483648
        %v2043 = vor.u32 1.1754944e-38, %v2042
        %v2044 = vsel %vm2041, %v2043, %v2039
        %v2045 = vmul.f32 %v1894, %v1946
        %v2046 = vmul.f32 %v1896, %v1960
        %v2047 = vmul.f32 %v1898, %v1974
        %v2048 = vmul.f32 %v1900, %v1988
        %v2049 = vmul.f32 %v1902, %v2002
        %v2050 = vmul.f32 %v1904, %v2016
        %v2051 = vmul.f32 %v1906, %v2030
        %v2052 = vmul.f32 %v1908, %v2044
        %2053 = vrot.lane.b32.xlu0 %v571, 56
        %v2054 = vpop.permute.xlu0 %2053
        %2055 = vrot.lane.b32.xlu0 %v574, 56
        %v2056 = vpop.permute.xlu0 %2055
        %v2060 = vsel %vm1047, %v2045, 0
        %v2063 = vsel %vm1047, %v2046, 0
        %2065 = vmatpush.msra.mxu0 0.0
        %2066 = vmatpush.msra.mxu0 0.0
        %2067 = vmatpush.msra.mxu0 0.0
        %2068 = vmatpush.msra.mxu0 0.0
        %2069 = vmatpush.msra.mxu0 0.0
        %2070 = vmatpush.msra.mxu0 0.0
        %2071 = vmatpush.msra.mxu0 0.0
        %2072 = vmatpush.msra.mxu0 0.0
        %2073 = vmatpush.msra.mxu0 0.0
        %2074 = vmatpush.msra.mxu0 0.0
        %2075 = vmatpush.msra.mxu0 0.0
        %2076 = vmatpush.msra.mxu0 0.0
        %2077 = vmatpush.msra.mxu0 0.0
        %2078 = vmatpush.msra.mxu0 0.0
        %2079 = vmatpush.msra.mxu0 %v2056
        %2080 = vmatpush.msra.mxu0 %v2054
        %2081 = vmatmul.f32.gmra.mxu0 %v2060
        %v2082 = vpop.f32.mrf.mxu0
        %v2083 = vadd.f32 0.0, %v2082
        %2084 = vmatmul.f32.gmra.mxu0 %v2063
        %v2085 = vpop.f32.mrf.mxu0
        %v2086 = vadd.f32 0.0, %v2085
        %2087 = vdwg.mxu0
        %2088 = vrot.lane.b32.xlu0 %v577, 56
        %v2089 = vpop.permute.xlu0 %2088
        %2090 = vrot.lane.b32.xlu0 %v580, 56
        %v2091 = vpop.permute.xlu0 %2090
        %v2095 = vsel %vm1047, %v2047, 0
        %v2098 = vsel %vm1047, %v2048, 0
        %2100 = vmatpush.msra.mxu0 0.0
        %2101 = vmatpush.msra.mxu0 0.0
        %2102 = vmatpush.msra.mxu0 0.0
        %2103 = vmatpush.msra.mxu0 0.0
        %2104 = vmatpush.msra.mxu0 0.0
        %2105 = vmatpush.msra.mxu0 0.0
        %2106 = vmatpush.msra.mxu0 0.0
        %2107 = vmatpush.msra.mxu0 0.0
        %2108 = vmatpush.msra.mxu0 0.0
        %2109 = vmatpush.msra.mxu0 0.0
        %2110 = vmatpush.msra.mxu0 0.0
        %2111 = vmatpush.msra.mxu0 0.0
        %2112 = vmatpush.msra.mxu0 0.0
        %2113 = vmatpush.msra.mxu0 0.0
        %2114 = vmatpush.msra.mxu0 %v2091
        %2115 = vmatpush.msra.mxu0 %v2089
        %2116 = vmatmul.f32.gmra.mxu0 %v2095
        %v2117 = vpop.f32.mrf.mxu0
        %v2118 = vadd.f32 0.0, %v2117
        %2119 = vmatmul.f32.gmra.mxu0 %v2098
        %v2120 = vpop.f32.mrf.mxu0
        %v2121 = vadd.f32 0.0, %v2120
        %2122 = vdwg.mxu0
        %2123 = vrot.lane.b32.xlu0 %v583, 56
        %v2124 = vpop.permute.xlu0 %2123
        %2125 = vrot.lane.b32.xlu0 %v586, 56
        %v2126 = vpop.permute.xlu0 %2125
        %v2130 = vsel %vm1047, %v2049, 0
        %v2133 = vsel %vm1047, %v2050, 0
        %2135 = vmatpush.msra.mxu0 0.0
        %2136 = vmatpush.msra.mxu0 0.0
        %2137 = vmatpush.msra.mxu0 0.0
        %2138 = vmatpush.msra.mxu0 0.0
        %2139 = vmatpush.msra.mxu0 0.0
        %2140 = vmatpush.msra.mxu0 0.0
        %2141 = vmatpush.msra.mxu0 0.0
        %2142 = vmatpush.msra.mxu0 0.0
        %2143 = vmatpush.msra.mxu0 0.0
        %2144 = vmatpush.msra.mxu0 0.0
        %2145 = vmatpush.msra.mxu0 0.0
        %2146 = vmatpush.msra.mxu0 0.0
        %2147 = vmatpush.msra.mxu0 0.0
        %2148 = vmatpush.msra.mxu0 0.0
        %2149 = vmatpush.msra.mxu0 %v2126
        %2150 = vmatpush.msra.mxu0 %v2124
        %2151 = vmatmul.f32.gmra.mxu0 %v2130
        %v2152 = vpop.f32.mrf.mxu0
        %v2153 = vadd.f32 0.0, %v2152
        %2154 = vmatmul.f32.gmra.mxu0 %v2133
        %v2155 = vpop.f32.mrf.mxu0
        %v2156 = vadd.f32 0.0, %v2155
        %2157 = vdwg.mxu0
        %2158 = vrot.lane.b32.xlu0 %v589, 56
        %v2159 = vpop.permute.xlu0 %2158
        %2160 = vrot.lane.b32.xlu0 %v592, 56
        %v2161 = vpop.permute.xlu0 %2160
        %v2165 = vsel %vm1047, %v2051, 0
        %v2168 = vsel %vm1047, %v2052, 0
        %2170 = vmatpush.msra.mxu0 0.0
        %2171 = vmatpush.msra.mxu0 0.0
        %2172 = vmatpush.msra.mxu0 0.0
        %2173 = vmatpush.msra.mxu0 0.0
        %2174 = vmatpush.msra.mxu0 0.0
        %2175 = vmatpush.msra.mxu0 0.0
        %2176 = vmatpush.msra.mxu0 0.0
        %2177 = vmatpush.msra.mxu0 0.0
        %2178 = vmatpush.msra.mxu0 0.0
        %2179 = vmatpush.msra.mxu0 0.0
        %2180 = vmatpush.msra.mxu0 0.0
        %2181 = vmatpush.msra.mxu0 0.0
        %2182 = vmatpush.msra.mxu0 0.0
        %2183 = vmatpush.msra.mxu0 0.0
        %2184 = vmatpush.msra.mxu0 %v2161
        %2185 = vmatpush.msra.mxu0 %v2159
        %2186 = vmatmul.f32.gmra.mxu0 %v2165
        %v2187 = vpop.f32.mrf.mxu0
        %v2188 = vadd.f32 0.0, %v2187
        %2189 = vmatmul.f32.gmra.mxu0 %v2168
        %v2190 = vpop.f32.mrf.mxu0
        %v2191 = vadd.f32 0.0, %v2190
        %2192 = vdwg.mxu0
        %v2194 = vsel %vm606, %v2083, 0
        %v2197 = vsel %vm606, %v2086, 0
        %v2200 = vsel %vm606, %v2118, 0
        %v2203 = vsel %vm606, %v2121, 0
        %v2206 = vsel %vm606, %v2153, 0
        %v2209 = vsel %vm606, %v2156, 0
        %v2212 = vsel %vm606, %v2188, 0
        %v2215 = vsel %vm606, %v2191, 0
        %2217 = vmatpush.msra.mxu0 0.0
        %2218 = vmatpush.msra.mxu0 0.0
        %2219 = vmatpush.msra.mxu0 0.0
        %2220 = vmatpush.msra.mxu0 0.0
        %2221 = vmatpush.msra.mxu0 0.0
        %2222 = vmatpush.msra.mxu0 0.0
        %2223 = vmatpush.msra.mxu0 0.0
        %2224 = vmatpush.msra.mxu0 0.0
        %2225 = vmatpush.msra.mxu0 0.0
        %2226 = vmatpush.msra.mxu0 0.0
        %2227 = vmatpush.msra.mxu0 0.0
        %2228 = vmatpush.msra.mxu0 0.0
        %2229 = vmatpush.msra.mxu0 0.0
        %2230 = vmatpush.msra.mxu0 0.0
        %2231 = vmatpush.msra.mxu0 0.0
        %2232 = vmatpush.msra.mxu0 %v595
        %2233 = vmatmul.f32.gmra.mxu0 %v2194
        %v2234 = vpop.f32.mrf.mxu0
        %v2235 = vadd.f32 0.0, %v2234
        %2236 = vmatmul.f32.gmra.mxu0 %v2197
        %v2237 = vpop.f32.mrf.mxu0
        %v2238 = vadd.f32 0.0, %v2237
        %2239 = vmatmul.f32.gmra.mxu0 %v2200
        %v2240 = vpop.f32.mrf.mxu0
        %v2241 = vadd.f32 0.0, %v2240
        %2242 = vmatmul.f32.gmra.mxu0 %v2203
        %v2243 = vpop.f32.mrf.mxu0
        %v2244 = vadd.f32 0.0, %v2243
        %2245 = vmatmul.f32.gmra.mxu0 %v2206
        %v2246 = vpop.f32.mrf.mxu0
        %v2247 = vadd.f32 0.0, %v2246
        %2248 = vmatmul.f32.gmra.mxu0 %v2209
        %v2249 = vpop.f32.mrf.mxu0
        %v2250 = vadd.f32 0.0, %v2249
        %2251 = vmatmul.f32.gmra.mxu0 %v2212
        %v2252 = vpop.f32.mrf.mxu0
        %v2253 = vadd.f32 0.0, %v2252
        %2254 = vmatmul.f32.gmra.mxu0 %v2215
        %v2255 = vpop.f32.mrf.mxu0
        %v2256 = vadd.f32 0.0, %v2255
        %2257 = vdwg.mxu0
        %v2259 = vsel %vm606, %v1272, 0
        %v2262 = vsel %vm606, %v1275, 0
        %v2265 = vsel %vm606, %v1309, 0
        %v2268 = vsel %vm606, %v1312, 0
        %v2271 = vsel %vm606, %v1346, 0
        %v2274 = vsel %vm606, %v1349, 0
        %v2277 = vsel %vm606, %v1383, 0
        %v2280 = vsel %vm606, %v1386, 0
        %2282 = vmatpush.msra.mxu0 0.0
        %2283 = vmatpush.msra.mxu0 0.0
        %2284 = vmatpush.msra.mxu0 0.0
        %2285 = vmatpush.msra.mxu0 0.0
        %2286 = vmatpush.msra.mxu0 0.0
        %2287 = vmatpush.msra.mxu0 0.0
        %2288 = vmatpush.msra.mxu0 0.0
        %2289 = vmatpush.msra.mxu0 0.0
        %2290 = vmatpush.msra.mxu0 0.0
        %2291 = vmatpush.msra.mxu0 0.0
        %2292 = vmatpush.msra.mxu0 0.0
        %2293 = vmatpush.msra.mxu0 0.0
        %2294 = vmatpush.msra.mxu0 0.0
        %2295 = vmatpush.msra.mxu0 0.0
        %2296 = vmatpush.msra.mxu0 0.0
        %2297 = vmatpush.msra.mxu0 %v594
        %2298 = vmatmul.f32.gmra.mxu0 %v2259
        %v2299 = vpop.f32.mrf.mxu0
        %v2300 = vadd.f32 %v2235, %v2299
        %2301 = vmatmul.f32.gmra.mxu0 %v2262
        %v2302 = vpop.f32.mrf.mxu0
        %v2303 = vadd.f32 %v2238, %v2302
        %2304 = vmatmul.f32.gmra.mxu0 %v2265
        %v2305 = vpop.f32.mrf.mxu0
        %v2306 = vadd.f32 %v2241, %v2305
        %2307 = vmatmul.f32.gmra.mxu0 %v2268
        %v2308 = vpop.f32.mrf.mxu0
        %v2309 = vadd.f32 %v2244, %v2308
        %2310 = vmatmul.f32.gmra.mxu0 %v2271
        %v2311 = vpop.f32.mrf.mxu0
        %v2312 = vadd.f32 %v2247, %v2311
        %2313 = vmatmul.f32.gmra.mxu0 %v2274
        %v2314 = vpop.f32.mrf.mxu0
        %v2315 = vadd.f32 %v2250, %v2314
        %2316 = vmatmul.f32.gmra.mxu0 %v2277
        %v2317 = vpop.f32.mrf.mxu0
        %v2318 = vadd.f32 %v2253, %v2317
        %2319 = vmatmul.f32.gmra.mxu0 %v2280
        %v2320 = vpop.f32.mrf.mxu0
        %v2321 = vadd.f32 %v2256, %v2320
        %2322 = vdwg.mxu0
        %2323 = vrot.lane.b32.xlu0 %v598, 112
        %v2324 = vpop.permute.xlu0 %2323
        %2325 = vrot.lane.b32.xlu0 %v599, 112
        %v2326 = vpop.permute.xlu0 %2325
        %2327 = vrot.lane.b32.xlu0 %v600, 112
        %v2328 = vpop.permute.xlu0 %2327
        %2329 = vrot.lane.b32.xlu0 %v601, 112
        %v2330 = vpop.permute.xlu0 %2329
        %2331 = vrot.lane.b32.xlu0 %v602, 112
        %v2332 = vpop.permute.xlu0 %2331
        %2333 = vrot.lane.b32.xlu0 %v603, 112
        %v2334 = vpop.permute.xlu0 %2333
        %2335 = vrot.lane.b32.xlu0 %v604, 112
        %v2336 = vpop.permute.xlu0 %2335
        %2337 = vrot.lane.b32.xlu0 %v605, 112
        %v2338 = vpop.permute.xlu0 %2337
        %v2347 = vsel %vm606, %v2324, 0.0
        %2348 = vadd.xlane.f32.xlu0 %v2347
        %v2349 = vpop.xlane.xlu0 %2348
        %v2350 = vsel %vm606, %v2326, 0.0
        %2351 = vadd.xlane.f32.xlu0 %v2350
        %v2352 = vpop.xlane.xlu0 %2351
        %v2353 = vsel %vm606, %v2328, 0.0
        %2354 = vadd.xlane.f32.xlu0 %v2353
        %v2355 = vpop.xlane.xlu0 %2354
        %v2356 = vsel %vm606, %v2330, 0.0
        %2357 = vadd.xlane.f32.xlu0 %v2356
        %v2358 = vpop.xlane.xlu0 %2357
        %v2359 = vsel %vm606, %v2332, 0.0
        %2360 = vadd.xlane.f32.xlu0 %v2359
        %v2361 = vpop.xlane.xlu0 %2360
        %v2362 = vsel %vm606, %v2334, 0.0
        %2363 = vadd.xlane.f32.xlu0 %v2362
        %v2364 = vpop.xlane.xlu0 %2363
        %v2365 = vsel %vm606, %v2336, 0.0
        %2366 = vadd.xlane.f32.xlu0 %v2365
        %v2367 = vpop.xlane.xlu0 %2366
        %v2368 = vsel %vm606, %v2338, 0.0
        %2369 = vadd.xlane.f32.xlu0 %v2368
        %v2370 = vpop.xlane.xlu0 %2369
        %v2371 = vmax.f32 %v2349, 1e-24
        %v2372 = vmax.f32 %v2352, 1e-24
        %v2373 = vmax.f32 %v2355, 1e-24
        %v2374 = vmax.f32 %v2358, 1e-24
        %v2375 = vmax.f32 %v2361, 1e-24
        %v2376 = vmax.f32 %v2364, 1e-24
        %v2377 = vmax.f32 %v2367, 1e-24
        %v2378 = vmax.f32 %v2370, 1e-24
        %v2379 = vrsqrt.pop %v2371
        %v2380 = vmul.f32 %v2379, %v2371
        %v2381 = vmul.f32 %v2380, %v2379
        %v2382 = vmul.f32 0.5, %v2381
        %v2383 = vsub.f32 1.5, %v2382
        %v2384 = vmul.f32 %v2379, %v2383
        %vm2385 = vweird.f32 %v2371
        %vm2386 = vweird.f32 %v2379
        %vm2387 = vmor %vm2385, %vm2386
        %v2388 = vsel %vm2387, %v2379, %v2384
        %v2389 = vrsqrt.pop %v2372
        %v2390 = vmul.f32 %v2389, %v2372
        %v2391 = vmul.f32 %v2390, %v2389
        %v2392 = vmul.f32 0.5, %v2391
        %v2393 = vsub.f32 1.5, %v2392
        %v2394 = vmul.f32 %v2389, %v2393
        %vm2395 = vweird.f32 %v2372
        %vm2396 = vweird.f32 %v2389
        %vm2397 = vmor %vm2395, %vm2396
        %v2398 = vsel %vm2397, %v2389, %v2394
        %v2399 = vrsqrt.pop %v2373
        %v2400 = vmul.f32 %v2399, %v2373
        %v2401 = vmul.f32 %v2400, %v2399
        %v2402 = vmul.f32 0.5, %v2401
        %v2403 = vsub.f32 1.5, %v2402
        %v2404 = vmul.f32 %v2399, %v2403
        %vm2405 = vweird.f32 %v2373
        %vm2406 = vweird.f32 %v2399
        %vm2407 = vmor %vm2405, %vm2406
        %v2408 = vsel %vm2407, %v2399, %v2404
        %v2409 = vrsqrt.pop %v2374
        %v2410 = vmul.f32 %v2409, %v2374
        %v2411 = vmul.f32 %v2410, %v2409
        %v2412 = vmul.f32 0.5, %v2411
        %v2413 = vsub.f32 1.5, %v2412
        %v2414 = vmul.f32 %v2409, %v2413
        %vm2415 = vweird.f32 %v2374
        %vm2416 = vweird.f32 %v2409
        %vm2417 = vmor %vm2415, %vm2416
        %v2418 = vsel %vm2417, %v2409, %v2414
        %v2419 = vrsqrt.pop %v2375
        %v2420 = vmul.f32 %v2419, %v2375
        %v2421 = vmul.f32 %v2420, %v2419
        %v2422 = vmul.f32 0.5, %v2421
        %v2423 = vsub.f32 1.5, %v2422
        %v2424 = vmul.f32 %v2419, %v2423
        %vm2425 = vweird.f32 %v2375
        %vm2426 = vweird.f32 %v2419
        %vm2427 = vmor %vm2425, %vm2426
        %v2428 = vsel %vm2427, %v2419, %v2424
        %v2429 = vrsqrt.pop %v2376
        %v2430 = vmul.f32 %v2429, %v2376
        %v2431 = vmul.f32 %v2430, %v2429
        %v2432 = vmul.f32 0.5, %v2431
        %v2433 = vsub.f32 1.5, %v2432
        %v2434 = vmul.f32 %v2429, %v2433
        %vm2435 = vweird.f32 %v2376
        %vm2436 = vweird.f32 %v2429
        %vm2437 = vmor %vm2435, %vm2436
        %v2438 = vsel %vm2437, %v2429, %v2434
        %v2439 = vrsqrt.pop %v2377
        %v2440 = vmul.f32 %v2439, %v2377
        %v2441 = vmul.f32 %v2440, %v2439
        %v2442 = vmul.f32 0.5, %v2441
        %v2443 = vsub.f32 1.5, %v2442
        %v2444 = vmul.f32 %v2439, %v2443
        %vm2445 = vweird.f32 %v2377
        %vm2446 = vweird.f32 %v2439
        %vm2447 = vmor %vm2445, %vm2446
        %v2448 = vsel %vm2447, %v2439, %v2444
        %v2449 = vrsqrt.pop %v2378
        %v2450 = vmul.f32 %v2449, %v2378
        %v2451 = vmul.f32 %v2450, %v2449
        %v2452 = vmul.f32 0.5, %v2451
        %v2453 = vsub.f32 1.5, %v2452
        %v2454 = vmul.f32 %v2449, %v2453
        %vm2455 = vweird.f32 %v2378
        %vm2456 = vweird.f32 %v2449
        %vm2457 = vmor %vm2455, %vm2456
        %v2458 = vsel %vm2457, %v2449, %v2454
        %v2459 = vmul.f32 %v571, %v2388
        %v2460 = vmul.f32 %v574, %v2398
        %v2461 = vmul.f32 %v577, %v2408
        %v2462 = vmul.f32 %v580, %v2418
        %v2463 = vmul.f32 %v583, %v2428
        %v2464 = vmul.f32 %v586, %v2438
        %v2465 = vmul.f32 %v589, %v2448
        %v2466 = vmul.f32 %v592, %v2458
        %2467 = vrot.lane.b32.xlu0 %v598, 80
        %v2468 = vpop.permute.xlu0 %2467
        %2469 = vrot.lane.b32.xlu0 %v599, 80
        %v2470 = vpop.permute.xlu0 %2469
        %2471 = vrot.lane.b32.xlu0 %v600, 80
        %v2472 = vpop.permute.xlu0 %2471
        %2473 = vrot.lane.b32.xlu0 %v601, 80
        %v2474 = vpop.permute.xlu0 %2473
        %2475 = vrot.lane.b32.xlu0 %v602, 80
        %v2476 = vpop.permute.xlu0 %2475
        %2477 = vrot.lane.b32.xlu0 %v603, 80
        %v2478 = vpop.permute.xlu0 %2477
        %2479 = vrot.lane.b32.xlu0 %v604, 80
        %v2480 = vpop.permute.xlu0 %2479
        %2481 = vrot.lane.b32.xlu0 %v605, 80
        %v2482 = vpop.permute.xlu0 %2481
        %v2491 = vsel %vm606, %v2468, 0.0
        %2492 = vadd.xlane.f32.xlu0 %v2491
        %v2493 = vpop.xlane.xlu0 %2492
        %v2494 = vsel %vm606, %v2470, 0.0
        %2495 = vadd.xlane.f32.xlu0 %v2494
        %v2496 = vpop.xlane.xlu0 %2495
        %v2497 = vsel %vm606, %v2472, 0.0
        %2498 = vadd.xlane.f32.xlu0 %v2497
        %v2499 = vpop.xlane.xlu0 %2498
        %v2500 = vsel %vm606, %v2474, 0.0
        %2501 = vadd.xlane.f32.xlu0 %v2500
        %v2502 = vpop.xlane.xlu0 %2501
        %v2503 = vsel %vm606, %v2476, 0.0
        %2504 = vadd.xlane.f32.xlu0 %v2503
        %v2505 = vpop.xlane.xlu0 %2504
        %v2506 = vsel %vm606, %v2478, 0.0
        %2507 = vadd.xlane.f32.xlu0 %v2506
        %v2508 = vpop.xlane.xlu0 %2507
        %v2509 = vsel %vm606, %v2480, 0.0
        %2510 = vadd.xlane.f32.xlu0 %v2509
        %v2511 = vpop.xlane.xlu0 %2510
        %v2512 = vsel %vm606, %v2482, 0.0
        %2513 = vadd.xlane.f32.xlu0 %v2512
        %v2514 = vpop.xlane.xlu0 %2513
        %v2515 = vmax.f32 %v2493, 1e-24
        %v2516 = vmax.f32 %v2496, 1e-24
        %v2517 = vmax.f32 %v2499, 1e-24
        %v2518 = vmax.f32 %v2502, 1e-24
        %v2519 = vmax.f32 %v2505, 1e-24
        %v2520 = vmax.f32 %v2508, 1e-24
        %v2521 = vmax.f32 %v2511, 1e-24
        %v2522 = vmax.f32 %v2514, 1e-24
        %v2523 = vrsqrt.pop %v2515
        %v2524 = vmul.f32 %v2523, %v2515
        %v2525 = vmul.f32 %v2524, %v2523
        %v2526 = vmul.f32 0.5, %v2525
        %v2527 = vsub.f32 1.5, %v2526
        %v2528 = vmul.f32 %v2523, %v2527
        %vm2529 = vweird.f32 %v2515
        %vm2530 = vweird.f32 %v2523
        %vm2531 = vmor %vm2529, %vm2530
        %v2532 = vsel %vm2531, %v2523, %v2528
        %v2533 = vrsqrt.pop %v2516
        %v2534 = vmul.f32 %v2533, %v2516
        %v2535 = vmul.f32 %v2534, %v2533
        %v2536 = vmul.f32 0.5, %v2535
        %v2537 = vsub.f32 1.5, %v2536
        %v2538 = vmul.f32 %v2533, %v2537
        %vm2539 = vweird.f32 %v2516
        %vm2540 = vweird.f32 %v2533
        %vm2541 = vmor %vm2539, %vm2540
        %v2542 = vsel %vm2541, %v2533, %v2538
        %v2543 = vrsqrt.pop %v2517
        %v2544 = vmul.f32 %v2543, %v2517
        %v2545 = vmul.f32 %v2544, %v2543
        %v2546 = vmul.f32 0.5, %v2545
        %v2547 = vsub.f32 1.5, %v2546
        %v2548 = vmul.f32 %v2543, %v2547
        %vm2549 = vweird.f32 %v2517
        %vm2550 = vweird.f32 %v2543
        %vm2551 = vmor %vm2549, %vm2550
        %v2552 = vsel %vm2551, %v2543, %v2548
        %v2553 = vrsqrt.pop %v2518
        %v2554 = vmul.f32 %v2553, %v2518
        %v2555 = vmul.f32 %v2554, %v2553
        %v2556 = vmul.f32 0.5, %v2555
        %v2557 = vsub.f32 1.5, %v2556
        %v2558 = vmul.f32 %v2553, %v2557
        %vm2559 = vweird.f32 %v2518
        %vm2560 = vweird.f32 %v2553
        %vm2561 = vmor %vm2559, %vm2560
        %v2562 = vsel %vm2561, %v2553, %v2558
        %v2563 = vrsqrt.pop %v2519
        %v2564 = vmul.f32 %v2563, %v2519
        %v2565 = vmul.f32 %v2564, %v2563
        %v2566 = vmul.f32 0.5, %v2565
        %v2567 = vsub.f32 1.5, %v2566
        %v2568 = vmul.f32 %v2563, %v2567
        %vm2569 = vweird.f32 %v2519
        %vm2570 = vweird.f32 %v2563
        %vm2571 = vmor %vm2569, %vm2570
        %v2572 = vsel %vm2571, %v2563, %v2568
        %v2573 = vrsqrt.pop %v2520
        %v2574 = vmul.f32 %v2573, %v2520
        %v2575 = vmul.f32 %v2574, %v2573
        %v2576 = vmul.f32 0.5, %v2575
        %v2577 = vsub.f32 1.5, %v2576
        %v2578 = vmul.f32 %v2573, %v2577
        %vm2579 = vweird.f32 %v2520
        %vm2580 = vweird.f32 %v2573
        %vm2581 = vmor %vm2579, %vm2580
        %v2582 = vsel %vm2581, %v2573, %v2578
        %v2583 = vrsqrt.pop %v2521
        %v2584 = vmul.f32 %v2583, %v2521
        %v2585 = vmul.f32 %v2584, %v2583
        %v2586 = vmul.f32 0.5, %v2585
        %v2587 = vsub.f32 1.5, %v2586
        %v2588 = vmul.f32 %v2583, %v2587
        %vm2589 = vweird.f32 %v2521
        %vm2590 = vweird.f32 %v2583
        %vm2591 = vmor %vm2589, %vm2590
        %v2592 = vsel %vm2591, %v2583, %v2588
        %v2593 = vrsqrt.pop %v2522
        %v2594 = vmul.f32 %v2593, %v2522
        %v2595 = vmul.f32 %v2594, %v2593
        %v2596 = vmul.f32 0.5, %v2595
        %v2597 = vsub.f32 1.5, %v2596
        %v2598 = vmul.f32 %v2593, %v2597
        %vm2599 = vweird.f32 %v2522
        %vm2600 = vweird.f32 %v2593
        %vm2601 = vmor %vm2599, %vm2600
        %v2602 = vsel %vm2601, %v2593, %v2598
        %v2603 = vmul.f32 %v571, %v2532
        %v2604 = vmul.f32 %v574, %v2542
        %v2605 = vmul.f32 %v577, %v2552
        %v2606 = vmul.f32 %v580, %v2562
        %v2607 = vmul.f32 %v583, %v2572
        %v2608 = vmul.f32 %v586, %v2582
        %v2609 = vmul.f32 %v589, %v2592
        %v2610 = vmul.f32 %v592, %v2602
        %s2611 = sld [smem:[#allocation2 + $0x2]]
        %v2612 = vstv %s2611
        %v2613 = vmul.f32 %v2459, %v2612
        %v2614 = vmul.f32 %v2460, %v2612
        %v2615 = vmul.f32 %v2461, %v2612
        %v2616 = vmul.f32 %v2462, %v2612
        %v2617 = vmul.f32 %v2463, %v2612
        %v2618 = vmul.f32 %v2464, %v2612
        %v2619 = vmul.f32 %v2465, %v2612
        %v2620 = vmul.f32 %v2466, %v2612
        %s2621 = scalar_lea.vmem %s3, 32
        %v2622 = vld [vmem:[%s2621] sm:$0xff]
        %v2623 = vld [vmem:[%s2621 + $0x8] sm:$0xff]
        %2626 = vrot.lane.b32.xlu0 %v2613, 112
        %v2627 = vpop.permute.xlu0 %2626
        %2628 = vrot.lane.b32.xlu0 %v2614, 112
        %v2629 = vpop.permute.xlu0 %2628
        %2632 = vrot.lane.b32.xlu0 %v2603, 80
        %v2633 = vpop.permute.xlu0 %2632
        %2634 = vrot.lane.b32.xlu0 %v2604, 80
        %v2635 = vpop.permute.xlu0 %2634
        %v2636 = vsel %vm606, %v2627, 0
        %v2638 = vsel %vm606, %v2629, 0
        %v2640 = vsel %vm606, %v2633, 0
        %v2642 = vsel %vm606, %v2635, 0
        %2644 = vmatpush.xpose.msra.mxu0 0.0
        %2645 = vmatpush.xpose.msra.mxu0 0.0
        %2646 = vmatpush.xpose.msra.mxu0 0.0
        %2647 = vmatpush.xpose.msra.mxu0 0.0
        %2648 = vmatpush.xpose.msra.mxu0 0.0
        %2649 = vmatpush.xpose.msra.mxu0 0.0
        %2650 = vmatpush.xpose.msra.mxu0 0.0
        %2651 = vmatpush.xpose.msra.mxu0 0.0
        %2652 = vmatpush.xpose.msra.mxu0 0.0
        %2653 = vmatpush.xpose.msra.mxu0 0.0
        %2654 = vmatpush.xpose.msra.mxu0 0.0
        %2655 = vmatpush.xpose.msra.mxu0 0.0
        %2656 = vmatpush.xpose.msra.mxu0 0.0
        %2657 = vmatpush.xpose.msra.mxu0 0.0
        %2658 = vmatpush.xpose.msra.mxu0 %v2642
        %2659 = vmatpush.xpose.msra.mxu0 %v2640
        %2660 = vmatmul.f32.gmra.mxu0 %v2636
        %v2661 = vpop.f32.mrf.mxu0
        %v2662 = vadd.f32 %v2622, %v2661
        %2663 = vmatmul.f32.gmra.mxu0 %v2638
        %v2664 = vpop.f32.mrf.mxu0
        %v2665 = vadd.f32 %v2623, %v2664
        %2666 = vdwg.mxu0
        %2669 = vrot.lane.b32.xlu0 %v2615, 112
        %v2670 = vpop.permute.xlu0 %2669
        %2671 = vrot.lane.b32.xlu0 %v2616, 112
        %v2672 = vpop.permute.xlu0 %2671
        %2675 = vrot.lane.b32.xlu0 %v2605, 80
        %v2676 = vpop.permute.xlu0 %2675
        %2677 = vrot.lane.b32.xlu0 %v2606, 80
        %v2678 = vpop.permute.xlu0 %2677
        %v2679 = vsel %vm606, %v2670, 0
        %v2681 = vsel %vm606, %v2672, 0
        %v2683 = vsel %vm606, %v2676, 0
        %v2685 = vsel %vm606, %v2678, 0
        %2687 = vmatpush.xpose.msra.mxu0 0.0
        %2688 = vmatpush.xpose.msra.mxu0 0.0
        %2689 = vmatpush.xpose.msra.mxu0 0.0
        %2690 = vmatpush.xpose.msra.mxu0 0.0
        %2691 = vmatpush.xpose.msra.mxu0 0.0
        %2692 = vmatpush.xpose.msra.mxu0 0.0
        %2693 = vmatpush.xpose.msra.mxu0 0.0
        %2694 = vmatpush.xpose.msra.mxu0 0.0
        %2695 = vmatpush.xpose.msra.mxu0 0.0
        %2696 = vmatpush.xpose.msra.mxu0 0.0
        %2697 = vmatpush.xpose.msra.mxu0 0.0
        %2698 = vmatpush.xpose.msra.mxu0 0.0
        %2699 = vmatpush.xpose.msra.mxu0 0.0
        %2700 = vmatpush.xpose.msra.mxu0 0.0
        %2701 = vmatpush.xpose.msra.mxu0 %v2685
        %2702 = vmatpush.xpose.msra.mxu0 %v2683
        %2703 = vmatmul.f32.gmra.mxu0 %v2679
        %v2704 = vpop.f32.mrf.mxu0
        %v2705 = vadd.f32 %v2622, %v2704
        %2706 = vmatmul.f32.gmra.mxu0 %v2681
        %v2707 = vpop.f32.mrf.mxu0
        %v2708 = vadd.f32 %v2623, %v2707
        %2709 = vdwg.mxu0
        %2712 = vrot.lane.b32.xlu0 %v2617, 112
        %v2713 = vpop.permute.xlu0 %2712
        %2714 = vrot.lane.b32.xlu0 %v2618, 112
        %v2715 = vpop.permute.xlu0 %2714
        %2718 = vrot.lane.b32.xlu0 %v2607, 80
        %v2719 = vpop.permute.xlu0 %2718
        %2720 = vrot.lane.b32.xlu0 %v2608, 80
        %v2721 = vpop.permute.xlu0 %2720
        %v2722 = vsel %vm606, %v2713, 0
        %v2724 = vsel %vm606, %v2715, 0
        %v2726 = vsel %vm606, %v2719, 0
        %v2728 = vsel %vm606, %v2721, 0
        %2730 = vmatpush.xpose.msra.mxu0 0.0
        %2731 = vmatpush.xpose.msra.mxu0 0.0
        %2732 = vmatpush.xpose.msra.mxu0 0.0
        %2733 = vmatpush.xpose.msra.mxu0 0.0
        %2734 = vmatpush.xpose.msra.mxu0 0.0
        %2735 = vmatpush.xpose.msra.mxu0 0.0
        %2736 = vmatpush.xpose.msra.mxu0 0.0
        %2737 = vmatpush.xpose.msra.mxu0 0.0
        %2738 = vmatpush.xpose.msra.mxu0 0.0
        %2739 = vmatpush.xpose.msra.mxu0 0.0
        %2740 = vmatpush.xpose.msra.mxu0 0.0
        %2741 = vmatpush.xpose.msra.mxu0 0.0
        %2742 = vmatpush.xpose.msra.mxu0 0.0
        %2743 = vmatpush.xpose.msra.mxu0 0.0
        %2744 = vmatpush.xpose.msra.mxu0 %v2728
        %2745 = vmatpush.xpose.msra.mxu0 %v2726
        %2746 = vmatmul.f32.gmra.mxu0 %v2722
        %v2747 = vpop.f32.mrf.mxu0
        %v2748 = vadd.f32 %v2622, %v2747
        %2749 = vmatmul.f32.gmra.mxu0 %v2724
        %v2750 = vpop.f32.mrf.mxu0
        %v2751 = vadd.f32 %v2623, %v2750
        %2752 = vdwg.mxu0
        %2755 = vrot.lane.b32.xlu0 %v2619, 112
        %v2756 = vpop.permute.xlu0 %2755
        %2757 = vrot.lane.b32.xlu0 %v2620, 112
        %v2758 = vpop.permute.xlu0 %2757
        %2761 = vrot.lane.b32.xlu0 %v2609, 80
        %v2762 = vpop.permute.xlu0 %2761
        %2763 = vrot.lane.b32.xlu0 %v2610, 80
        %v2764 = vpop.permute.xlu0 %2763
        %v2765 = vsel %vm606, %v2756, 0
        %v2767 = vsel %vm606, %v2758, 0
        %v2769 = vsel %vm606, %v2762, 0
        %v2771 = vsel %vm606, %v2764, 0
        %2773 = vmatpush.xpose.msra.mxu0 0.0
        %2774 = vmatpush.xpose.msra.mxu0 0.0
        %2775 = vmatpush.xpose.msra.mxu0 0.0
        %2776 = vmatpush.xpose.msra.mxu0 0.0
        %2777 = vmatpush.xpose.msra.mxu0 0.0
        %2778 = vmatpush.xpose.msra.mxu0 0.0
        %2779 = vmatpush.xpose.msra.mxu0 0.0
        %2780 = vmatpush.xpose.msra.mxu0 0.0
        %2781 = vmatpush.xpose.msra.mxu0 0.0
        %2782 = vmatpush.xpose.msra.mxu0 0.0
        %2783 = vmatpush.xpose.msra.mxu0 0.0
        %2784 = vmatpush.xpose.msra.mxu0 0.0
        %2785 = vmatpush.xpose.msra.mxu0 0.0
        %2786 = vmatpush.xpose.msra.mxu0 0.0
        %2787 = vmatpush.xpose.msra.mxu0 %v2771
        %2788 = vmatpush.xpose.msra.mxu0 %v2769
        %2789 = vmatmul.f32.gmra.mxu0 %v2765
        %v2790 = vpop.f32.mrf.mxu0
        %v2791 = vadd.f32 %v2622, %v2790
        %2792 = vmatmul.f32.gmra.mxu0 %v2767
        %v2793 = vpop.f32.mrf.mxu0
        %v2794 = vadd.f32 %v2623, %v2793
        %2795 = vdwg.mxu0
        %v2796 = vsel %vm1047, %v2662, -inf
        %2797 = vmax.xlane.f32.xlu0 %v2796
        %v2798 = vpop.xlane.xlu0 %2797
        %v2799 = vsel %vm1047, %v2665, -inf
        %2800 = vmax.xlane.f32.xlu0 %v2799
        %v2801 = vpop.xlane.xlu0 %2800
        %v2802 = vsel %vm1047, %v2705, -inf
        %2803 = vmax.xlane.f32.xlu0 %v2802
        %v2804 = vpop.xlane.xlu0 %2803
        %v2805 = vsel %vm1047, %v2708, -inf
        %2806 = vmax.xlane.f32.xlu0 %v2805
        %v2807 = vpop.xlane.xlu0 %2806
        %v2808 = vsel %vm1047, %v2748, -inf
        %2809 = vmax.xlane.f32.xlu0 %v2808
        %v2810 = vpop.xlane.xlu0 %2809
        %v2811 = vsel %vm1047, %v2751, -inf
        %2812 = vmax.xlane.f32.xlu0 %v2811
        %v2813 = vpop.xlane.xlu0 %2812
        %v2814 = vsel %vm1047, %v2791, -inf
        %2815 = vmax.xlane.f32.xlu0 %v2814
        %v2816 = vpop.xlane.xlu0 %2815
        %v2817 = vsel %vm1047, %v2794, -inf
        %2818 = vmax.xlane.f32.xlu0 %v2817
        %v2819 = vpop.xlane.xlu0 %2818
        %v2820 = vsub.f32 %v2662, %v2798
        %v2821 = vsub.f32 %v2665, %v2801
        %v2822 = vsub.f32 %v2705, %v2804
        %v2823 = vsub.f32 %v2708, %v2807
        %v2824 = vsub.f32 %v2748, %v2810
        %v2825 = vsub.f32 %v2751, %v2813
        %v2826 = vsub.f32 %v2791, %v2816
        %v2827 = vsub.f32 %v2794, %v2819
        %v2828 = vmul.f32 %v2820, 1.442695
        %v2829 = vpow.pop %v2828
        %v2830 = vmul.f32 %v2821, 1.442695
        %v2831 = vpow.pop %v2830
        %v2832 = vmul.f32 %v2822, 1.442695
        %v2833 = vpow.pop %v2832
        %v2834 = vmul.f32 %v2823, 1.442695
        %v2835 = vpow.pop %v2834
        %v2836 = vmul.f32 %v2824, 1.442695
        %v2837 = vpow.pop %v2836
        %v2838 = vmul.f32 %v2825, 1.442695
        %v2839 = vpow.pop %v2838
        %v2840 = vmul.f32 %v2826, 1.442695
        %v2841 = vpow.pop %v2840
        %v2842 = vmul.f32 %v2827, 1.442695
        %v2843 = vpow.pop %v2842
        %v2844 = vsel %vm1047, %v2829, 0.0
        %2845 = vadd.xlane.f32.xlu0 %v2844
        %v2846 = vpop.xlane.xlu0 %2845
        %v2847 = vsel %vm1047, %v2831, 0.0
        %2848 = vadd.xlane.f32.xlu0 %v2847
        %v2849 = vpop.xlane.xlu0 %2848
        %v2850 = vsel %vm1047, %v2833, 0.0
        %2851 = vadd.xlane.f32.xlu0 %v2850
        %v2852 = vpop.xlane.xlu0 %2851
        %v2853 = vsel %vm1047, %v2835, 0.0
        %2854 = vadd.xlane.f32.xlu0 %v2853
        %v2855 = vpop.xlane.xlu0 %2854
        %v2856 = vsel %vm1047, %v2837, 0.0
        %2857 = vadd.xlane.f32.xlu0 %v2856
        %v2858 = vpop.xlane.xlu0 %2857
        %v2859 = vsel %vm1047, %v2839, 0.0
        %2860 = vadd.xlane.f32.xlu0 %v2859
        %v2861 = vpop.xlane.xlu0 %2860
        %v2862 = vsel %vm1047, %v2841, 0.0
        %2863 = vadd.xlane.f32.xlu0 %v2862
        %v2864 = vpop.xlane.xlu0 %2863
        %v2865 = vsel %vm1047, %v2843, 0.0
        %2866 = vadd.xlane.f32.xlu0 %v2865
        %v2867 = vpop.xlane.xlu0 %2866
        %v2868 = vrcp.pop %v2846
        %v2869 = vmul.f32 %v2846, %v2868
        %v2870 = vsub.f32 1.0, %v2869
        %v2871 = vmul.f32 %v2868, %v2870
        %v2872 = vadd.f32 %v2868, %v2871
        %vm2873 = vweird.f32 %v2846
        %vm2874 = vweird.f32 %v2868
        %vm2875 = vmor %vm2873, %vm2874
        %v2876 = vsel %vm2875, %v2868, %v2872
        %v2877 = vand.u32 2147483647, %v2846
        %vm2878 = vcmp.eq.f32.partialorder %v2877, 8.507059e+37
        %v2879 = vand.u32 %v2846, 2147483648
        %v2880 = vor.u32 1.1754944e-38, %v2879
        %v2881 = vsel %vm2878, %v2880, %v2876
        %v2882 = vrcp.pop %v2849
        %v2883 = vmul.f32 %v2849, %v2882
        %v2884 = vsub.f32 1.0, %v2883
        %v2885 = vmul.f32 %v2882, %v2884
        %v2886 = vadd.f32 %v2882, %v2885
        %vm2887 = vweird.f32 %v2849
        %vm2888 = vweird.f32 %v2882
        %vm2889 = vmor %vm2887, %vm2888
        %v2890 = vsel %vm2889, %v2882, %v2886
        %v2891 = vand.u32 2147483647, %v2849
        %vm2892 = vcmp.eq.f32.partialorder %v2891, 8.507059e+37
        %v2893 = vand.u32 %v2849, 2147483648
        %v2894 = vor.u32 1.1754944e-38, %v2893
        %v2895 = vsel %vm2892, %v2894, %v2890
        %v2896 = vrcp.pop %v2852
        %v2897 = vmul.f32 %v2852, %v2896
        %v2898 = vsub.f32 1.0, %v2897
        %v2899 = vmul.f32 %v2896, %v2898
        %v2900 = vadd.f32 %v2896, %v2899
        %vm2901 = vweird.f32 %v2852
        %vm2902 = vweird.f32 %v2896
        %vm2903 = vmor %vm2901, %vm2902
        %v2904 = vsel %vm2903, %v2896, %v2900
        %v2905 = vand.u32 2147483647, %v2852
        %vm2906 = vcmp.eq.f32.partialorder %v2905, 8.507059e+37
        %v2907 = vand.u32 %v2852, 2147483648
        %v2908 = vor.u32 1.1754944e-38, %v2907
        %v2909 = vsel %vm2906, %v2908, %v2904
        %v2910 = vrcp.pop %v2855
        %v2911 = vmul.f32 %v2855, %v2910
        %v2912 = vsub.f32 1.0, %v2911
        %v2913 = vmul.f32 %v2910, %v2912
        %v2914 = vadd.f32 %v2910, %v2913
        %vm2915 = vweird.f32 %v2855
        %vm2916 = vweird.f32 %v2910
        %vm2917 = vmor %vm2915, %vm2916
        %v2918 = vsel %vm2917, %v2910, %v2914
        %v2919 = vand.u32 2147483647, %v2855
        %vm2920 = vcmp.eq.f32.partialorder %v2919, 8.507059e+37
        %v2921 = vand.u32 %v2855, 2147483648
        %v2922 = vor.u32 1.1754944e-38, %v2921
        %v2923 = vsel %vm2920, %v2922, %v2918
        %v2924 = vrcp.pop %v2858
        %v2925 = vmul.f32 %v2858, %v2924
        %v2926 = vsub.f32 1.0, %v2925
        %v2927 = vmul.f32 %v2924, %v2926
        %v2928 = vadd.f32 %v2924, %v2927
        %vm2929 = vweird.f32 %v2858
        %vm2930 = vweird.f32 %v2924
        %vm2931 = vmor %vm2929, %vm2930
        %v2932 = vsel %vm2931, %v2924, %v2928
        %v2933 = vand.u32 2147483647, %v2858
        %vm2934 = vcmp.eq.f32.partialorder %v2933, 8.507059e+37
        %v2935 = vand.u32 %v2858, 2147483648
        %v2936 = vor.u32 1.1754944e-38, %v2935
        %v2937 = vsel %vm2934, %v2936, %v2932
        %v2938 = vrcp.pop %v2861
        %v2939 = vmul.f32 %v2861, %v2938
        %v2940 = vsub.f32 1.0, %v2939
        %v2941 = vmul.f32 %v2938, %v2940
        %v2942 = vadd.f32 %v2938, %v2941
        %vm2943 = vweird.f32 %v2861
        %vm2944 = vweird.f32 %v2938
        %vm2945 = vmor %vm2943, %vm2944
        %v2946 = vsel %vm2945, %v2938, %v2942
        %v2947 = vand.u32 2147483647, %v2861
        %vm2948 = vcmp.eq.f32.partialorder %v2947, 8.507059e+37
        %v2949 = vand.u32 %v2861, 2147483648
        %v2950 = vor.u32 1.1754944e-38, %v2949
        %v2951 = vsel %vm2948, %v2950, %v2946
        %v2952 = vrcp.pop %v2864
        %v2953 = vmul.f32 %v2864, %v2952
        %v2954 = vsub.f32 1.0, %v2953
        %v2955 = vmul.f32 %v2952, %v2954
        %v2956 = vadd.f32 %v2952, %v2955
        %vm2957 = vweird.f32 %v2864
        %vm2958 = vweird.f32 %v2952
        %vm2959 = vmor %vm2957, %vm2958
        %v2960 = vsel %vm2959, %v2952, %v2956
        %v2961 = vand.u32 2147483647, %v2864
        %vm2962 = vcmp.eq.f32.partialorder %v2961, 8.507059e+37
        %v2963 = vand.u32 %v2864, 2147483648
        %v2964 = vor.u32 1.1754944e-38, %v2963
        %v2965 = vsel %vm2962, %v2964, %v2960
        %v2966 = vrcp.pop %v2867
        %v2967 = vmul.f32 %v2867, %v2966
        %v2968 = vsub.f32 1.0, %v2967
        %v2969 = vmul.f32 %v2966, %v2968
        %v2970 = vadd.f32 %v2966, %v2969
        %vm2971 = vweird.f32 %v2867
        %vm2972 = vweird.f32 %v2966
        %vm2973 = vmor %vm2971, %vm2972
        %v2974 = vsel %vm2973, %v2966, %v2970
        %v2975 = vand.u32 2147483647, %v2867
        %vm2976 = vcmp.eq.f32.partialorder %v2975, 8.507059e+37
        %v2977 = vand.u32 %v2867, 2147483648
        %v2978 = vor.u32 1.1754944e-38, %v2977
        %v2979 = vsel %vm2976, %v2978, %v2974
        %v2980 = vmul.f32 %v2829, %v2881
        %v2981 = vmul.f32 %v2831, %v2895
        %v2982 = vmul.f32 %v2833, %v2909
        %v2983 = vmul.f32 %v2835, %v2923
        %v2984 = vmul.f32 %v2837, %v2937
        %v2985 = vmul.f32 %v2839, %v2951
        %v2986 = vmul.f32 %v2841, %v2965
        %v2987 = vmul.f32 %v2843, %v2979
        %2988 = vrot.lane.b32.xlu0 %v571, 48
        %v2989 = vpop.permute.xlu0 %2988
        %2990 = vrot.lane.b32.xlu0 %v574, 48
        %v2991 = vpop.permute.xlu0 %2990
        %v2995 = vsel %vm1047, %v2980, 0
        %v2998 = vsel %vm1047, %v2981, 0
        %3000 = vmatpush.msra.mxu0 0.0
        %3001 = vmatpush.msra.mxu0 0.0
        %3002 = vmatpush.msra.mxu0 0.0
        %3003 = vmatpush.msra.mxu0 0.0
        %3004 = vmatpush.msra.mxu0 0.0
        %3005 = vmatpush.msra.mxu0 0.0
        %3006 = vmatpush.msra.mxu0 0.0
        %3007 = vmatpush.msra.mxu0 0.0
        %3008 = vmatpush.msra.mxu0 0.0
        %3009 = vmatpush.msra.mxu0 0.0
        %3010 = vmatpush.msra.mxu0 0.0
        %3011 = vmatpush.msra.mxu0 0.0
        %3012 = vmatpush.msra.mxu0 0.0
        %3013 = vmatpush.msra.mxu0 0.0
        %3014 = vmatpush.msra.mxu0 %v2991
        %3015 = vmatpush.msra.mxu0 %v2989
        %3016 = vmatmul.f32.gmra.mxu0 %v2995
        %v3017 = vpop.f32.mrf.mxu0
        %v3018 = vadd.f32 0.0, %v3017
        %3019 = vmatmul.f32.gmra.mxu0 %v2998
        %v3020 = vpop.f32.mrf.mxu0
        %v3021 = vadd.f32 0.0, %v3020
        %3022 = vdwg.mxu0
        %3023 = vrot.lane.b32.xlu0 %v577, 48
        %v3024 = vpop.permute.xlu0 %3023
        %3025 = vrot.lane.b32.xlu0 %v580, 48
        %v3026 = vpop.permute.xlu0 %3025
        %v3030 = vsel %vm1047, %v2982, 0
        %v3033 = vsel %vm1047, %v2983, 0
        %3035 = vmatpush.msra.mxu0 0.0
        %3036 = vmatpush.msra.mxu0 0.0
        %3037 = vmatpush.msra.mxu0 0.0
        %3038 = vmatpush.msra.mxu0 0.0
        %3039 = vmatpush.msra.mxu0 0.0
        %3040 = vmatpush.msra.mxu0 0.0
        %3041 = vmatpush.msra.mxu0 0.0
        %3042 = vmatpush.msra.mxu0 0.0
        %3043 = vmatpush.msra.mxu0 0.0
        %3044 = vmatpush.msra.mxu0 0.0
        %3045 = vmatpush.msra.mxu0 0.0
        %3046 = vmatpush.msra.mxu0 0.0
        %3047 = vmatpush.msra.mxu0 0.0
        %3048 = vmatpush.msra.mxu0 0.0
        %3049 = vmatpush.msra.mxu0 %v3026
        %3050 = vmatpush.msra.mxu0 %v3024
        %3051 = vmatmul.f32.gmra.mxu0 %v3030
        %v3052 = vpop.f32.mrf.mxu0
        %v3053 = vadd.f32 0.0, %v3052
        %3054 = vmatmul.f32.gmra.mxu0 %v3033
        %v3055 = vpop.f32.mrf.mxu0
        %v3056 = vadd.f32 0.0, %v3055
        %3057 = vdwg.mxu0
        %3058 = vrot.lane.b32.xlu0 %v583, 48
        %v3059 = vpop.permute.xlu0 %3058
        %3060 = vrot.lane.b32.xlu0 %v586, 48
        %v3061 = vpop.permute.xlu0 %3060
        %v3065 = vsel %vm1047, %v2984, 0
        %v3068 = vsel %vm1047, %v2985, 0
        %3070 = vmatpush.msra.mxu0 0.0
        %3071 = vmatpush.msra.mxu0 0.0
        %3072 = vmatpush.msra.mxu0 0.0
        %3073 = vmatpush.msra.mxu0 0.0
        %3074 = vmatpush.msra.mxu0 0.0
        %3075 = vmatpush.msra.mxu0 0.0
        %3076 = vmatpush.msra.mxu0 0.0
        %3077 = vmatpush.msra.mxu0 0.0
        %3078 = vmatpush.msra.mxu0 0.0
        %3079 = vmatpush.msra.mxu0 0.0
        %3080 = vmatpush.msra.mxu0 0.0
        %3081 = vmatpush.msra.mxu0 0.0
        %3082 = vmatpush.msra.mxu0 0.0
        %3083 = vmatpush.msra.mxu0 0.0
        %3084 = vmatpush.msra.mxu0 %v3061
        %3085 = vmatpush.msra.mxu0 %v3059
        %3086 = vmatmul.f32.gmra.mxu0 %v3065
        %v3087 = vpop.f32.mrf.mxu0
        %v3088 = vadd.f32 0.0, %v3087
        %3089 = vmatmul.f32.gmra.mxu0 %v3068
        %v3090 = vpop.f32.mrf.mxu0
        %v3091 = vadd.f32 0.0, %v3090
        %3092 = vdwg.mxu0
        %3093 = vrot.lane.b32.xlu0 %v589, 48
        %v3094 = vpop.permute.xlu0 %3093
        %3095 = vrot.lane.b32.xlu0 %v592, 48
        %v3096 = vpop.permute.xlu0 %3095
        %v3100 = vsel %vm1047, %v2986, 0
        %v3103 = vsel %vm1047, %v2987, 0
        %3105 = vmatpush.msra.mxu0 0.0
        %3106 = vmatpush.msra.mxu0 0.0
        %3107 = vmatpush.msra.mxu0 0.0
        %3108 = vmatpush.msra.mxu0 0.0
        %3109 = vmatpush.msra.mxu0 0.0
        %3110 = vmatpush.msra.mxu0 0.0
        %3111 = vmatpush.msra.mxu0 0.0
        %3112 = vmatpush.msra.mxu0 0.0
        %3113 = vmatpush.msra.mxu0 0.0
        %3114 = vmatpush.msra.mxu0 0.0
        %3115 = vmatpush.msra.mxu0 0.0
        %3116 = vmatpush.msra.mxu0 0.0
        %3117 = vmatpush.msra.mxu0 0.0
        %3118 = vmatpush.msra.mxu0 0.0
        %3119 = vmatpush.msra.mxu0 %v3096
        %3120 = vmatpush.msra.mxu0 %v3094
        %3121 = vmatmul.f32.gmra.mxu0 %v3100
        %v3122 = vpop.f32.mrf.mxu0
        %v3123 = vadd.f32 0.0, %v3122
        %3124 = vmatmul.f32.gmra.mxu0 %v3103
        %v3125 = vpop.f32.mrf.mxu0
        %v3126 = vadd.f32 0.0, %v3125
        %3127 = vdwg.mxu0
        %v3129 = vsel %vm606, %v3018, 0
        %v3132 = vsel %vm606, %v3021, 0
        %v3135 = vsel %vm606, %v3053, 0
        %v3138 = vsel %vm606, %v3056, 0
        %v3141 = vsel %vm606, %v3088, 0
        %v3144 = vsel %vm606, %v3091, 0
        %v3147 = vsel %vm606, %v3123, 0
        %v3150 = vsel %vm606, %v3126, 0
        %3152 = vmatpush.msra.mxu0 0.0
        %3153 = vmatpush.msra.mxu0 0.0
        %3154 = vmatpush.msra.mxu0 0.0
        %3155 = vmatpush.msra.mxu0 0.0
        %3156 = vmatpush.msra.mxu0 0.0
        %3157 = vmatpush.msra.mxu0 0.0
        %3158 = vmatpush.msra.mxu0 0.0
        %3159 = vmatpush.msra.mxu0 0.0
        %3160 = vmatpush.msra.mxu0 0.0
        %3161 = vmatpush.msra.mxu0 0.0
        %3162 = vmatpush.msra.mxu0 0.0
        %3163 = vmatpush.msra.mxu0 0.0
        %3164 = vmatpush.msra.mxu0 0.0
        %3165 = vmatpush.msra.mxu0 0.0
        %3166 = vmatpush.msra.mxu0 0.0
        %3167 = vmatpush.msra.mxu0 %v596
        %3168 = vmatmul.f32.gmra.mxu0 %v3129
        %v3169 = vpop.f32.mrf.mxu0
        %v3170 = vadd.f32 0.0, %v3169
        %3171 = vmatmul.f32.gmra.mxu0 %v3132
        %v3172 = vpop.f32.mrf.mxu0
        %v3173 = vadd.f32 0.0, %v3172
        %3174 = vmatmul.f32.gmra.mxu0 %v3135
        %v3175 = vpop.f32.mrf.mxu0
        %v3176 = vadd.f32 0.0, %v3175
        %3177 = vmatmul.f32.gmra.mxu0 %v3138
        %v3178 = vpop.f32.mrf.mxu0
        %v3179 = vadd.f32 0.0, %v3178
        %3180 = vmatmul.f32.gmra.mxu0 %v3141
        %v3181 = vpop.f32.mrf.mxu0
        %v3182 = vadd.f32 0.0, %v3181
        %3183 = vmatmul.f32.gmra.mxu0 %v3144
        %v3184 = vpop.f32.mrf.mxu0
        %v3185 = vadd.f32 0.0, %v3184
        %3186 = vmatmul.f32.gmra.mxu0 %v3147
        %v3187 = vpop.f32.mrf.mxu0
        %v3188 = vadd.f32 0.0, %v3187
        %3189 = vmatmul.f32.gmra.mxu0 %v3150
        %v3190 = vpop.f32.mrf.mxu0
        %v3191 = vadd.f32 0.0, %v3190
        %3192 = vdwg.mxu0
        %v3193 = vadd.f32 %v2300, %v3170
        %v3194 = vadd.f32 %v2303, %v3173
        %v3195 = vadd.f32 %v2306, %v3176
        %v3196 = vadd.f32 %v2309, %v3179
        %v3197 = vadd.f32 %v2312, %v3182
        %v3198 = vadd.f32 %v2315, %v3185
        %v3199 = vadd.f32 %v2318, %v3188
        %v3200 = vadd.f32 %v2321, %v3191
        %3201 = vrot.lane.b32.xlu0 %v598, 104
        %v3202 = vpop.permute.xlu0 %3201
        %3203 = vrot.lane.b32.xlu0 %v599, 104
        %v3204 = vpop.permute.xlu0 %3203
        %3205 = vrot.lane.b32.xlu0 %v600, 104
        %v3206 = vpop.permute.xlu0 %3205
        %3207 = vrot.lane.b32.xlu0 %v601, 104
        %v3208 = vpop.permute.xlu0 %3207
        %3209 = vrot.lane.b32.xlu0 %v602, 104
        %v3210 = vpop.permute.xlu0 %3209
        %3211 = vrot.lane.b32.xlu0 %v603, 104
        %v3212 = vpop.permute.xlu0 %3211
        %3213 = vrot.lane.b32.xlu0 %v604, 104
        %v3214 = vpop.permute.xlu0 %3213
        %3215 = vrot.lane.b32.xlu0 %v605, 104
        %v3216 = vpop.permute.xlu0 %3215
        %v3225 = vsel %vm606, %v3202, 0.0
        %3226 = vadd.xlane.f32.xlu0 %v3225
        %v3227 = vpop.xlane.xlu0 %3226
        %v3228 = vsel %vm606, %v3204, 0.0
        %3229 = vadd.xlane.f32.xlu0 %v3228
        %v3230 = vpop.xlane.xlu0 %3229
        %v3231 = vsel %vm606, %v3206, 0.0
        %3232 = vadd.xlane.f32.xlu0 %v3231
        %v3233 = vpop.xlane.xlu0 %3232
        %v3234 = vsel %vm606, %v3208, 0.0
        %3235 = vadd.xlane.f32.xlu0 %v3234
        %v3236 = vpop.xlane.xlu0 %3235
        %v3237 = vsel %vm606, %v3210, 0.0
        %3238 = vadd.xlane.f32.xlu0 %v3237
        %v3239 = vpop.xlane.xlu0 %3238
        %v3240 = vsel %vm606, %v3212, 0.0
        %3241 = vadd.xlane.f32.xlu0 %v3240
        %v3242 = vpop.xlane.xlu0 %3241
        %v3243 = vsel %vm606, %v3214, 0.0
        %3244 = vadd.xlane.f32.xlu0 %v3243
        %v3245 = vpop.xlane.xlu0 %3244
        %v3246 = vsel %vm606, %v3216, 0.0
        %3247 = vadd.xlane.f32.xlu0 %v3246
        %v3248 = vpop.xlane.xlu0 %3247
        %v3249 = vmax.f32 %v3227, 1e-24
        %v3250 = vmax.f32 %v3230, 1e-24
        %v3251 = vmax.f32 %v3233, 1e-24
        %v3252 = vmax.f32 %v3236, 1e-24
        %v3253 = vmax.f32 %v3239, 1e-24
        %v3254 = vmax.f32 %v3242, 1e-24
        %v3255 = vmax.f32 %v3245, 1e-24
        %v3256 = vmax.f32 %v3248, 1e-24
        %v3257 = vrsqrt.pop %v3249
        %v3258 = vmul.f32 %v3257, %v3249
        %v3259 = vmul.f32 %v3258, %v3257
        %v3260 = vmul.f32 0.5, %v3259
        %v3261 = vsub.f32 1.5, %v3260
        %v3262 = vmul.f32 %v3257, %v3261
        %vm3263 = vweird.f32 %v3249
        %vm3264 = vweird.f32 %v3257
        %vm3265 = vmor %vm3263, %vm3264
        %v3266 = vsel %vm3265, %v3257, %v3262
        %v3267 = vrsqrt.pop %v3250
        %v3268 = vmul.f32 %v3267, %v3250
        %v3269 = vmul.f32 %v3268, %v3267
        %v3270 = vmul.f32 0.5, %v3269
        %v3271 = vsub.f32 1.5, %v3270
        %v3272 = vmul.f32 %v3267, %v3271
        %vm3273 = vweird.f32 %v3250
        %vm3274 = vweird.f32 %v3267
        %vm3275 = vmor %vm3273, %vm3274
        %v3276 = vsel %vm3275, %v3267, %v3272
        %v3277 = vrsqrt.pop %v3251
        %v3278 = vmul.f32 %v3277, %v3251
        %v3279 = vmul.f32 %v3278, %v3277
        %v3280 = vmul.f32 0.5, %v3279
        %v3281 = vsub.f32 1.5, %v3280
        %v3282 = vmul.f32 %v3277, %v3281
        %vm3283 = vweird.f32 %v3251
        %vm3284 = vweird.f32 %v3277
        %vm3285 = vmor %vm3283, %vm3284
        %v3286 = vsel %vm3285, %v3277, %v3282
        %v3287 = vrsqrt.pop %v3252
        %v3288 = vmul.f32 %v3287, %v3252
        %v3289 = vmul.f32 %v3288, %v3287
        %v3290 = vmul.f32 0.5, %v3289
        %v3291 = vsub.f32 1.5, %v3290
        %v3292 = vmul.f32 %v3287, %v3291
        %vm3293 = vweird.f32 %v3252
        %vm3294 = vweird.f32 %v3287
        %vm3295 = vmor %vm3293, %vm3294
        %v3296 = vsel %vm3295, %v3287, %v3292
        %v3297 = vrsqrt.pop %v3253
        %v3298 = vmul.f32 %v3297, %v3253
        %v3299 = vmul.f32 %v3298, %v3297
        %v3300 = vmul.f32 0.5, %v3299
        %v3301 = vsub.f32 1.5, %v3300
        %v3302 = vmul.f32 %v3297, %v3301
        %vm3303 = vweird.f32 %v3253
        %vm3304 = vweird.f32 %v3297
        %vm3305 = vmor %vm3303, %vm3304
        %v3306 = vsel %vm3305, %v3297, %v3302
        %v3307 = vrsqrt.pop %v3254
        %v3308 = vmul.f32 %v3307, %v3254
        %v3309 = vmul.f32 %v3308, %v3307
        %v3310 = vmul.f32 0.5, %v3309
        %v3311 = vsub.f32 1.5, %v3310
        %v3312 = vmul.f32 %v3307, %v3311
        %vm3313 = vweird.f32 %v3254
        %vm3314 = vweird.f32 %v3307
        %vm3315 = vmor %vm3313, %vm3314
        %v3316 = vsel %vm3315, %v3307, %v3312
        %v3317 = vrsqrt.pop %v3255
        %v3318 = vmul.f32 %v3317, %v3255
        %v3319 = vmul.f32 %v3318, %v3317
        %v3320 = vmul.f32 0.5, %v3319
        %v3321 = vsub.f32 1.5, %v3320
        %v3322 = vmul.f32 %v3317, %v3321
        %vm3323 = vweird.f32 %v3255
        %vm3324 = vweird.f32 %v3317
        %vm3325 = vmor %vm3323, %vm3324
        %v3326 = vsel %vm3325, %v3317, %v3322
        %v3327 = vrsqrt.pop %v3256
        %v3328 = vmul.f32 %v3327, %v3256
        %v3329 = vmul.f32 %v3328, %v3327
        %v3330 = vmul.f32 0.5, %v3329
        %v3331 = vsub.f32 1.5, %v3330
        %v3332 = vmul.f32 %v3327, %v3331
        %vm3333 = vweird.f32 %v3256
        %vm3334 = vweird.f32 %v3327
        %vm3335 = vmor %vm3333, %vm3334
        %v3336 = vsel %vm3335, %v3327, %v3332
        %v3337 = vmul.f32 %v571, %v3266
        %v3338 = vmul.f32 %v574, %v3276
        %v3339 = vmul.f32 %v577, %v3286
        %v3340 = vmul.f32 %v580, %v3296
        %v3341 = vmul.f32 %v583, %v3306
        %v3342 = vmul.f32 %v586, %v3316
        %v3343 = vmul.f32 %v589, %v3326
        %v3344 = vmul.f32 %v592, %v3336
        %3345 = vrot.lane.b32.xlu0 %v598, 72
        %v3346 = vpop.permute.xlu0 %3345
        %3347 = vrot.lane.b32.xlu0 %v599, 72
        %v3348 = vpop.permute.xlu0 %3347
        %3349 = vrot.lane.b32.xlu0 %v600, 72
        %v3350 = vpop.permute.xlu0 %3349
        %3351 = vrot.lane.b32.xlu0 %v601, 72
        %v3352 = vpop.permute.xlu0 %3351
        %3353 = vrot.lane.b32.xlu0 %v602, 72
        %v3354 = vpop.permute.xlu0 %3353
        %3355 = vrot.lane.b32.xlu0 %v603, 72
        %v3356 = vpop.permute.xlu0 %3355
        %3357 = vrot.lane.b32.xlu0 %v604, 72
        %v3358 = vpop.permute.xlu0 %3357
        %3359 = vrot.lane.b32.xlu0 %v605, 72
        %v3360 = vpop.permute.xlu0 %3359
        %v3369 = vsel %vm606, %v3346, 0.0
        %3370 = vadd.xlane.f32.xlu0 %v3369
        %v3371 = vpop.xlane.xlu0 %3370
        %v3372 = vsel %vm606, %v3348, 0.0
        %3373 = vadd.xlane.f32.xlu0 %v3372
        %v3374 = vpop.xlane.xlu0 %3373
        %v3375 = vsel %vm606, %v3350, 0.0
        %3376 = vadd.xlane.f32.xlu0 %v3375
        %v3377 = vpop.xlane.xlu0 %3376
        %v3378 = vsel %vm606, %v3352, 0.0
        %3379 = vadd.xlane.f32.xlu0 %v3378
        %v3380 = vpop.xlane.xlu0 %3379
        %v3381 = vsel %vm606, %v3354, 0.0
        %3382 = vadd.xlane.f32.xlu0 %v3381
        %v3383 = vpop.xlane.xlu0 %3382
        %v3384 = vsel %vm606, %v3356, 0.0
        %3385 = vadd.xlane.f32.xlu0 %v3384
        %v3386 = vpop.xlane.xlu0 %3385
        %v3387 = vsel %vm606, %v3358, 0.0
        %3388 = vadd.xlane.f32.xlu0 %v3387
        %v3389 = vpop.xlane.xlu0 %3388
        %v3390 = vsel %vm606, %v3360, 0.0
        %3391 = vadd.xlane.f32.xlu0 %v3390
        %v3392 = vpop.xlane.xlu0 %3391
        %v3393 = vmax.f32 %v3371, 1e-24
        %v3394 = vmax.f32 %v3374, 1e-24
        %v3395 = vmax.f32 %v3377, 1e-24
        %v3396 = vmax.f32 %v3380, 1e-24
        %v3397 = vmax.f32 %v3383, 1e-24
        %v3398 = vmax.f32 %v3386, 1e-24
        %v3399 = vmax.f32 %v3389, 1e-24
        %v3400 = vmax.f32 %v3392, 1e-24
        %v3401 = vrsqrt.pop %v3393
        %v3402 = vmul.f32 %v3401, %v3393
        %v3403 = vmul.f32 %v3402, %v3401
        %v3404 = vmul.f32 0.5, %v3403
        %v3405 = vsub.f32 1.5, %v3404
        %v3406 = vmul.f32 %v3401, %v3405
        %vm3407 = vweird.f32 %v3393
        %vm3408 = vweird.f32 %v3401
        %vm3409 = vmor %vm3407, %vm3408
        %v3410 = vsel %vm3409, %v3401, %v3406
        %v3411 = vrsqrt.pop %v3394
        %v3412 = vmul.f32 %v3411, %v3394
        %v3413 = vmul.f32 %v3412, %v3411
        %v3414 = vmul.f32 0.5, %v3413
        %v3415 = vsub.f32 1.5, %v3414
        %v3416 = vmul.f32 %v3411, %v3415
        %vm3417 = vweird.f32 %v3394
        %vm3418 = vweird.f32 %v3411
        %vm3419 = vmor %vm3417, %vm3418
        %v3420 = vsel %vm3419, %v3411, %v3416
        %v3421 = vrsqrt.pop %v3395
        %v3422 = vmul.f32 %v3421, %v3395
        %v3423 = vmul.f32 %v3422, %v3421
        %v3424 = vmul.f32 0.5, %v3423
        %v3425 = vsub.f32 1.5, %v3424
        %v3426 = vmul.f32 %v3421, %v3425
        %vm3427 = vweird.f32 %v3395
        %vm3428 = vweird.f32 %v3421
        %vm3429 = vmor %vm3427, %vm3428
        %v3430 = vsel %vm3429, %v3421, %v3426
        %v3431 = vrsqrt.pop %v3396
        %v3432 = vmul.f32 %v3431, %v3396
        %v3433 = vmul.f32 %v3432, %v3431
        %v3434 = vmul.f32 0.5, %v3433
        %v3435 = vsub.f32 1.5, %v3434
        %v3436 = vmul.f32 %v3431, %v3435
        %vm3437 = vweird.f32 %v3396
        %vm3438 = vweird.f32 %v3431
        %vm3439 = vmor %vm3437, %vm3438
        %v3440 = vsel %vm3439, %v3431, %v3436
        %v3441 = vrsqrt.pop %v3397
        %v3442 = vmul.f32 %v3441, %v3397
        %v3443 = vmul.f32 %v3442, %v3441
        %v3444 = vmul.f32 0.5, %v3443
        %v3445 = vsub.f32 1.5, %v3444
        %v3446 = vmul.f32 %v3441, %v3445
        %vm3447 = vweird.f32 %v3397
        %vm3448 = vweird.f32 %v3441
        %vm3449 = vmor %vm3447, %vm3448
        %v3450 = vsel %vm3449, %v3441, %v3446
        %v3451 = vrsqrt.pop %v3398
        %v3452 = vmul.f32 %v3451, %v3398
        %v3453 = vmul.f32 %v3452, %v3451
        %v3454 = vmul.f32 0.5, %v3453
        %v3455 = vsub.f32 1.5, %v3454
        %v3456 = vmul.f32 %v3451, %v3455
        %vm3457 = vweird.f32 %v3398
        %vm3458 = vweird.f32 %v3451
        %vm3459 = vmor %vm3457, %vm3458
        %v3460 = vsel %vm3459, %v3451, %v3456
        %v3461 = vrsqrt.pop %v3399
        %v3462 = vmul.f32 %v3461, %v3399
        %v3463 = vmul.f32 %v3462, %v3461
        %v3464 = vmul.f32 0.5, %v3463
        %v3465 = vsub.f32 1.5, %v3464
        %v3466 = vmul.f32 %v3461, %v3465
        %vm3467 = vweird.f32 %v3399
        %vm3468 = vweird.f32 %v3461
        %vm3469 = vmor %vm3467, %vm3468
        %v3470 = vsel %vm3469, %v3461, %v3466
        %v3471 = vrsqrt.pop %v3400
        %v3472 = vmul.f32 %v3471, %v3400
        %v3473 = vmul.f32 %v3472, %v3471
        %v3474 = vmul.f32 0.5, %v3473
        %v3475 = vsub.f32 1.5, %v3474
        %v3476 = vmul.f32 %v3471, %v3475
        %vm3477 = vweird.f32 %v3400
        %vm3478 = vweird.f32 %v3471
        %vm3479 = vmor %vm3477, %vm3478
        %v3480 = vsel %vm3479, %v3471, %v3476
        %v3481 = vmul.f32 %v571, %v3410
        %v3482 = vmul.f32 %v574, %v3420
        %v3483 = vmul.f32 %v577, %v3430
        %v3484 = vmul.f32 %v580, %v3440
        %v3485 = vmul.f32 %v583, %v3450
        %v3486 = vmul.f32 %v586, %v3460
        %v3487 = vmul.f32 %v589, %v3470
        %v3488 = vmul.f32 %v592, %v3480
        %s3489 = sld [smem:[#allocation2 + $0x3]]
        %v3490 = vstv %s3489
        %v3491 = vmul.f32 %v3337, %v3490
        %v3492 = vmul.f32 %v3338, %v3490
        %v3493 = vmul.f32 %v3339, %v3490
        %v3494 = vmul.f32 %v3340, %v3490
        %v3495 = vmul.f32 %v3341, %v3490
        %v3496 = vmul.f32 %v3342, %v3490
        %v3497 = vmul.f32 %v3343, %v3490
        %v3498 = vmul.f32 %v3344, %v3490
        %s3499 = scalar_lea.vmem %s3, 48
        %v3500 = vld [vmem:[%s3499] sm:$0xff]
        %v3501 = vld [vmem:[%s3499 + $0x8] sm:$0xff]
        %3504 = vrot.lane.b32.xlu0 %v3491, 104
        %v3505 = vpop.permute.xlu0 %3504
        %3506 = vrot.lane.b32.xlu0 %v3492, 104
        %v3507 = vpop.permute.xlu0 %3506
        %3510 = vrot.lane.b32.xlu0 %v3481, 72
        %v3511 = vpop.permute.xlu0 %3510
        %3512 = vrot.lane.b32.xlu0 %v3482, 72
        %v3513 = vpop.permute.xlu0 %3512
        %v3514 = vsel %vm606, %v3505, 0
        %v3516 = vsel %vm606, %v3507, 0
        %v3518 = vsel %vm606, %v3511, 0
        %v3520 = vsel %vm606, %v3513, 0
        %3522 = vmatpush.xpose.msra.mxu0 0.0
        %3523 = vmatpush.xpose.msra.mxu0 0.0
        %3524 = vmatpush.xpose.msra.mxu0 0.0
        %3525 = vmatpush.xpose.msra.mxu0 0.0
        %3526 = vmatpush.xpose.msra.mxu0 0.0
        %3527 = vmatpush.xpose.msra.mxu0 0.0
        %3528 = vmatpush.xpose.msra.mxu0 0.0
        %3529 = vmatpush.xpose.msra.mxu0 0.0
        %3530 = vmatpush.xpose.msra.mxu0 0.0
        %3531 = vmatpush.xpose.msra.mxu0 0.0
        %3532 = vmatpush.xpose.msra.mxu0 0.0
        %3533 = vmatpush.xpose.msra.mxu0 0.0
        %3534 = vmatpush.xpose.msra.mxu0 0.0
        %3535 = vmatpush.xpose.msra.mxu0 0.0
        %3536 = vmatpush.xpose.msra.mxu0 %v3520
        %3537 = vmatpush.xpose.msra.mxu0 %v3518
        %3538 = vmatmul.f32.gmra.mxu0 %v3514
        %v3539 = vpop.f32.mrf.mxu0
        %v3540 = vadd.f32 %v3500, %v3539
        %3541 = vmatmul.f32.gmra.mxu0 %v3516
        %v3542 = vpop.f32.mrf.mxu0
        %v3543 = vadd.f32 %v3501, %v3542
        %3544 = vdwg.mxu0
        %3547 = vrot.lane.b32.xlu0 %v3493, 104
        %v3548 = vpop.permute.xlu0 %3547
        %3549 = vrot.lane.b32.xlu0 %v3494, 104
        %v3550 = vpop.permute.xlu0 %3549
        %3553 = vrot.lane.b32.xlu0 %v3483, 72
        %v3554 = vpop.permute.xlu0 %3553
        %3555 = vrot.lane.b32.xlu0 %v3484, 72
        %v3556 = vpop.permute.xlu0 %3555
        %v3557 = vsel %vm606, %v3548, 0
        %v3559 = vsel %vm606, %v3550, 0
        %v3561 = vsel %vm606, %v3554, 0
        %v3563 = vsel %vm606, %v3556, 0
        %3565 = vmatpush.xpose.msra.mxu0 0.0
        %3566 = vmatpush.xpose.msra.mxu0 0.0
        %3567 = vmatpush.xpose.msra.mxu0 0.0
        %3568 = vmatpush.xpose.msra.mxu0 0.0
        %3569 = vmatpush.xpose.msra.mxu0 0.0
        %3570 = vmatpush.xpose.msra.mxu0 0.0
        %3571 = vmatpush.xpose.msra.mxu0 0.0
        %3572 = vmatpush.xpose.msra.mxu0 0.0
        %3573 = vmatpush.xpose.msra.mxu0 0.0
        %3574 = vmatpush.xpose.msra.mxu0 0.0
        %3575 = vmatpush.xpose.msra.mxu0 0.0
        %3576 = vmatpush.xpose.msra.mxu0 0.0
        %3577 = vmatpush.xpose.msra.mxu0 0.0
        %3578 = vmatpush.xpose.msra.mxu0 0.0
        %3579 = vmatpush.xpose.msra.mxu0 %v3563
        %3580 = vmatpush.xpose.msra.mxu0 %v3561
        %3581 = vmatmul.f32.gmra.mxu0 %v3557
        %v3582 = vpop.f32.mrf.mxu0
        %v3583 = vadd.f32 %v3500, %v3582
        %3584 = vmatmul.f32.gmra.mxu0 %v3559
        %v3585 = vpop.f32.mrf.mxu0
        %v3586 = vadd.f32 %v3501, %v3585
        %3587 = vdwg.mxu0
        %3590 = vrot.lane.b32.xlu0 %v3495, 104
        %v3591 = vpop.permute.xlu0 %3590
        %3592 = vrot.lane.b32.xlu0 %v3496, 104
        %v3593 = vpop.permute.xlu0 %3592
        %3596 = vrot.lane.b32.xlu0 %v3485, 72
        %v3597 = vpop.permute.xlu0 %3596
        %3598 = vrot.lane.b32.xlu0 %v3486, 72
        %v3599 = vpop.permute.xlu0 %3598
        %v3600 = vsel %vm606, %v3591, 0
        %v3602 = vsel %vm606, %v3593, 0
        %v3604 = vsel %vm606, %v3597, 0
        %v3606 = vsel %vm606, %v3599, 0
        %3608 = vmatpush.xpose.msra.mxu0 0.0
        %3609 = vmatpush.xpose.msra.mxu0 0.0
        %3610 = vmatpush.xpose.msra.mxu0 0.0
        %3611 = vmatpush.xpose.msra.mxu0 0.0
        %3612 = vmatpush.xpose.msra.mxu0 0.0
        %3613 = vmatpush.xpose.msra.mxu0 0.0
        %3614 = vmatpush.xpose.msra.mxu0 0.0
        %3615 = vmatpush.xpose.msra.mxu0 0.0
        %3616 = vmatpush.xpose.msra.mxu0 0.0
        %3617 = vmatpush.xpose.msra.mxu0 0.0
        %3618 = vmatpush.xpose.msra.mxu0 0.0
        %3619 = vmatpush.xpose.msra.mxu0 0.0
        %3620 = vmatpush.xpose.msra.mxu0 0.0
        %3621 = vmatpush.xpose.msra.mxu0 0.0
        %3622 = vmatpush.xpose.msra.mxu0 %v3606
        %3623 = vmatpush.xpose.msra.mxu0 %v3604
        %3624 = vmatmul.f32.gmra.mxu0 %v3600
        %v3625 = vpop.f32.mrf.mxu0
        %v3626 = vadd.f32 %v3500, %v3625
        %3627 = vmatmul.f32.gmra.mxu0 %v3602
        %v3628 = vpop.f32.mrf.mxu0
        %v3629 = vadd.f32 %v3501, %v3628
        %3630 = vdwg.mxu0
        %3633 = vrot.lane.b32.xlu0 %v3497, 104
        %v3634 = vpop.permute.xlu0 %3633
        %3635 = vrot.lane.b32.xlu0 %v3498, 104
        %v3636 = vpop.permute.xlu0 %3635
        %3639 = vrot.lane.b32.xlu0 %v3487, 72
        %v3640 = vpop.permute.xlu0 %3639
        %3641 = vrot.lane.b32.xlu0 %v3488, 72
        %v3642 = vpop.permute.xlu0 %3641
        %v3643 = vsel %vm606, %v3634, 0
        %v3645 = vsel %vm606, %v3636, 0
        %v3647 = vsel %vm606, %v3640, 0
        %v3649 = vsel %vm606, %v3642, 0
        %3651 = vmatpush.xpose.msra.mxu0 0.0
        %3652 = vmatpush.xpose.msra.mxu0 0.0
        %3653 = vmatpush.xpose.msra.mxu0 0.0
        %3654 = vmatpush.xpose.msra.mxu0 0.0
        %3655 = vmatpush.xpose.msra.mxu0 0.0
        %3656 = vmatpush.xpose.msra.mxu0 0.0
        %3657 = vmatpush.xpose.msra.mxu0 0.0
        %3658 = vmatpush.xpose.msra.mxu0 0.0
        %3659 = vmatpush.xpose.msra.mxu0 0.0
        %3660 = vmatpush.xpose.msra.mxu0 0.0
        %3661 = vmatpush.xpose.msra.mxu0 0.0
        %3662 = vmatpush.xpose.msra.mxu0 0.0
        %3663 = vmatpush.xpose.msra.mxu0 0.0
        %3664 = vmatpush.xpose.msra.mxu0 0.0
        %3665 = vmatpush.xpose.msra.mxu0 %v3649
        %3666 = vmatpush.xpose.msra.mxu0 %v3647
        %3667 = vmatmul.f32.gmra.mxu0 %v3643
        %v3668 = vpop.f32.mrf.mxu0
        %v3669 = vadd.f32 %v3500, %v3668
        %3670 = vmatmul.f32.gmra.mxu0 %v3645
        %v3671 = vpop.f32.mrf.mxu0
        %v3672 = vadd.f32 %v3501, %v3671
        %3673 = vdwg.mxu0
        %v3674 = vsel %vm1047, %v3540, -inf
        %3675 = vmax.xlane.f32.xlu0 %v3674
        %v3676 = vpop.xlane.xlu0 %3675
        %v3677 = vsel %vm1047, %v3543, -inf
        %3678 = vmax.xlane.f32.xlu0 %v3677
        %v3679 = vpop.xlane.xlu0 %3678
        %v3680 = vsel %vm1047, %v3583, -inf
        %3681 = vmax.xlane.f32.xlu0 %v3680
        %v3682 = vpop.xlane.xlu0 %3681
        %v3683 = vsel %vm1047, %v3586, -inf
        %3684 = vmax.xlane.f32.xlu0 %v3683
        %v3685 = vpop.xlane.xlu0 %3684
        %v3686 = vsel %vm1047, %v3626, -inf
        %3687 = vmax.xlane.f32.xlu0 %v3686
        %v3688 = vpop.xlane.xlu0 %3687
        %v3689 = vsel %vm1047, %v3629, -inf
        %3690 = vmax.xlane.f32.xlu0 %v3689
        %v3691 = vpop.xlane.xlu0 %3690
        %v3692 = vsel %vm1047, %v3669, -inf
        %3693 = vmax.xlane.f32.xlu0 %v3692
        %v3694 = vpop.xlane.xlu0 %3693
        %v3695 = vsel %vm1047, %v3672, -inf
        %3696 = vmax.xlane.f32.xlu0 %v3695
        %v3697 = vpop.xlane.xlu0 %3696
        %v3698 = vsub.f32 %v3540, %v3676
        %v3699 = vsub.f32 %v3543, %v3679
        %v3700 = vsub.f32 %v3583, %v3682
        %v3701 = vsub.f32 %v3586, %v3685
        %v3702 = vsub.f32 %v3626, %v3688
        %v3703 = vsub.f32 %v3629, %v3691
        %v3704 = vsub.f32 %v3669, %v3694
        %v3705 = vsub.f32 %v3672, %v3697
        %v3706 = vmul.f32 %v3698, 1.442695
        %v3707 = vpow.pop %v3706
        %v3708 = vmul.f32 %v3699, 1.442695
        %v3709 = vpow.pop %v3708
        %v3710 = vmul.f32 %v3700, 1.442695
        %v3711 = vpow.pop %v3710
        %v3712 = vmul.f32 %v3701, 1.442695
        %v3713 = vpow.pop %v3712
        %v3714 = vmul.f32 %v3702, 1.442695
        %v3715 = vpow.pop %v3714
        %v3716 = vmul.f32 %v3703, 1.442695
        %v3717 = vpow.pop %v3716
        %v3718 = vmul.f32 %v3704, 1.442695
        %v3719 = vpow.pop %v3718
        %v3720 = vmul.f32 %v3705, 1.442695
        %v3721 = vpow.pop %v3720
        %v3722 = vsel %vm1047, %v3707, 0.0
        %3723 = vadd.xlane.f32.xlu0 %v3722
        %v3724 = vpop.xlane.xlu0 %3723
        %v3725 = vsel %vm1047, %v3709, 0.0
        %3726 = vadd.xlane.f32.xlu0 %v3725
        %v3727 = vpop.xlane.xlu0 %3726
        %v3728 = vsel %vm1047, %v3711, 0.0
        %3729 = vadd.xlane.f32.xlu0 %v3728
        %v3730 = vpop.xlane.xlu0 %3729
        %v3731 = vsel %vm1047, %v3713, 0.0
        %3732 = vadd.xlane.f32.xlu0 %v3731
        %v3733 = vpop.xlane.xlu0 %3732
        %v3734 = vsel %vm1047, %v3715, 0.0
        %3735 = vadd.xlane.f32.xlu0 %v3734
        %v3736 = vpop.xlane.xlu0 %3735
        %v3737 = vsel %vm1047, %v3717, 0.0
        %3738 = vadd.xlane.f32.xlu0 %v3737
        %v3739 = vpop.xlane.xlu0 %3738
        %v3740 = vsel %vm1047, %v3719, 0.0
        %3741 = vadd.xlane.f32.xlu0 %v3740
        %v3742 = vpop.xlane.xlu0 %3741
        %v3743 = vsel %vm1047, %v3721, 0.0
        %3744 = vadd.xlane.f32.xlu0 %v3743
        %v3745 = vpop.xlane.xlu0 %3744
        %v3746 = vrcp.pop %v3724
        %v3747 = vmul.f32 %v3724, %v3746
        %v3748 = vsub.f32 1.0, %v3747
        %v3749 = vmul.f32 %v3746, %v3748
        %v3750 = vadd.f32 %v3746, %v3749
        %vm3751 = vweird.f32 %v3724
        %vm3752 = vweird.f32 %v3746
        %vm3753 = vmor %vm3751, %vm3752
        %v3754 = vsel %vm3753, %v3746, %v3750
        %v3755 = vand.u32 2147483647, %v3724
        %vm3756 = vcmp.eq.f32.partialorder %v3755, 8.507059e+37
        %v3757 = vand.u32 %v3724, 2147483648
        %v3758 = vor.u32 1.1754944e-38, %v3757
        %v3759 = vsel %vm3756, %v3758, %v3754
        %v3760 = vrcp.pop %v3727
        %v3761 = vmul.f32 %v3727, %v3760
        %v3762 = vsub.f32 1.0, %v3761
        %v3763 = vmul.f32 %v3760, %v3762
        %v3764 = vadd.f32 %v3760, %v3763
        %vm3765 = vweird.f32 %v3727
        %vm3766 = vweird.f32 %v3760
        %vm3767 = vmor %vm3765, %vm3766
        %v3768 = vsel %vm3767, %v3760, %v3764
        %v3769 = vand.u32 2147483647, %v3727
        %vm3770 = vcmp.eq.f32.partialorder %v3769, 8.507059e+37
        %v3771 = vand.u32 %v3727, 2147483648
        %v3772 = vor.u32 1.1754944e-38, %v3771
        %v3773 = vsel %vm3770, %v3772, %v3768
        %v3774 = vrcp.pop %v3730
        %v3775 = vmul.f32 %v3730, %v3774
        %v3776 = vsub.f32 1.0, %v3775
        %v3777 = vmul.f32 %v3774, %v3776
        %v3778 = vadd.f32 %v3774, %v3777
        %vm3779 = vweird.f32 %v3730
        %vm3780 = vweird.f32 %v3774
        %vm3781 = vmor %vm3779, %vm3780
        %v3782 = vsel %vm3781, %v3774, %v3778
        %v3783 = vand.u32 2147483647, %v3730
        %vm3784 = vcmp.eq.f32.partialorder %v3783, 8.507059e+37
        %v3785 = vand.u32 %v3730, 2147483648
        %v3786 = vor.u32 1.1754944e-38, %v3785
        %v3787 = vsel %vm3784, %v3786, %v3782
        %v3788 = vrcp.pop %v3733
        %v3789 = vmul.f32 %v3733, %v3788
        %v3790 = vsub.f32 1.0, %v3789
        %v3791 = vmul.f32 %v3788, %v3790
        %v3792 = vadd.f32 %v3788, %v3791
        %vm3793 = vweird.f32 %v3733
        %vm3794 = vweird.f32 %v3788
        %vm3795 = vmor %vm3793, %vm3794
        %v3796 = vsel %vm3795, %v3788, %v3792
        %v3797 = vand.u32 2147483647, %v3733
        %vm3798 = vcmp.eq.f32.partialorder %v3797, 8.507059e+37
        %v3799 = vand.u32 %v3733, 2147483648
        %v3800 = vor.u32 1.1754944e-38, %v3799
        %v3801 = vsel %vm3798, %v3800, %v3796
        %v3802 = vrcp.pop %v3736
        %v3803 = vmul.f32 %v3736, %v3802
        %v3804 = vsub.f32 1.0, %v3803
        %v3805 = vmul.f32 %v3802, %v3804
        %v3806 = vadd.f32 %v3802, %v3805
        %vm3807 = vweird.f32 %v3736
        %vm3808 = vweird.f32 %v3802
        %vm3809 = vmor %vm3807, %vm3808
        %v3810 = vsel %vm3809, %v3802, %v3806
        %v3811 = vand.u32 2147483647, %v3736
        %vm3812 = vcmp.eq.f32.partialorder %v3811, 8.507059e+37
        %v3813 = vand.u32 %v3736, 2147483648
        %v3814 = vor.u32 1.1754944e-38, %v3813
        %v3815 = vsel %vm3812, %v3814, %v3810
        %v3816 = vrcp.pop %v3739
        %v3817 = vmul.f32 %v3739, %v3816
        %v3818 = vsub.f32 1.0, %v3817
        %v3819 = vmul.f32 %v3816, %v3818
        %v3820 = vadd.f32 %v3816, %v3819
        %vm3821 = vweird.f32 %v3739
        %vm3822 = vweird.f32 %v3816
        %vm3823 = vmor %vm3821, %vm3822
        %v3824 = vsel %vm3823, %v3816, %v3820
        %v3825 = vand.u32 2147483647, %v3739
        %vm3826 = vcmp.eq.f32.partialorder %v3825, 8.507059e+37
        %v3827 = vand.u32 %v3739, 2147483648
        %v3828 = vor.u32 1.1754944e-38, %v3827
        %v3829 = vsel %vm3826, %v3828, %v3824
        %v3830 = vrcp.pop %v3742
        %v3831 = vmul.f32 %v3742, %v3830
        %v3832 = vsub.f32 1.0, %v3831
        %v3833 = vmul.f32 %v3830, %v3832
        %v3834 = vadd.f32 %v3830, %v3833
        %vm3835 = vweird.f32 %v3742
        %vm3836 = vweird.f32 %v3830
        %vm3837 = vmor %vm3835, %vm3836
        %v3838 = vsel %vm3837, %v3830, %v3834
        %v3839 = vand.u32 2147483647, %v3742
        %vm3840 = vcmp.eq.f32.partialorder %v3839, 8.507059e+37
        %v3841 = vand.u32 %v3742, 2147483648
        %v3842 = vor.u32 1.1754944e-38, %v3841
        %v3843 = vsel %vm3840, %v3842, %v3838
        %v3844 = vrcp.pop %v3745
        %v3845 = vmul.f32 %v3745, %v3844
        %v3846 = vsub.f32 1.0, %v3845
        %v3847 = vmul.f32 %v3844, %v3846
        %v3848 = vadd.f32 %v3844, %v3847
        %vm3849 = vweird.f32 %v3745
        %vm3850 = vweird.f32 %v3844
        %vm3851 = vmor %vm3849, %vm3850
        %v3852 = vsel %vm3851, %v3844, %v3848
        %v3853 = vand.u32 2147483647, %v3745
        %vm3854 = vcmp.eq.f32.partialorder %v3853, 8.507059e+37
        %v3855 = vand.u32 %v3745, 2147483648
        %v3856 = vor.u32 1.1754944e-38, %v3855
        %v3857 = vsel %vm3854, %v3856, %v3852
        %v3858 = vmul.f32 %v3707, %v3759
        %v3859 = vmul.f32 %v3709, %v3773
        %v3860 = vmul.f32 %v3711, %v3787
        %v3861 = vmul.f32 %v3713, %v3801
        %v3862 = vmul.f32 %v3715, %v3815
        %v3863 = vmul.f32 %v3717, %v3829
        %v3864 = vmul.f32 %v3719, %v3843
        %v3865 = vmul.f32 %v3721, %v3857
        %3866 = vrot.lane.b32.xlu0 %v571, 40
        %v3867 = vpop.permute.xlu0 %3866
        %3868 = vrot.lane.b32.xlu0 %v574, 40
        %v3869 = vpop.permute.xlu0 %3868
        %v3873 = vsel %vm1047, %v3858, 0
        %v3876 = vsel %vm1047, %v3859, 0
        %3878 = vmatpush.msra.mxu0 0.0
        %3879 = vmatpush.msra.mxu0 0.0
        %3880 = vmatpush.msra.mxu0 0.0
        %3881 = vmatpush.msra.mxu0 0.0
        %3882 = vmatpush.msra.mxu0 0.0
        %3883 = vmatpush.msra.mxu0 0.0
        %3884 = vmatpush.msra.mxu0 0.0
        %3885 = vmatpush.msra.mxu0 0.0
        %3886 = vmatpush.msra.mxu0 0.0
        %3887 = vmatpush.msra.mxu0 0.0
        %3888 = vmatpush.msra.mxu0 0.0
        %3889 = vmatpush.msra.mxu0 0.0
        %3890 = vmatpush.msra.mxu0 0.0
        %3891 = vmatpush.msra.mxu0 0.0
        %3892 = vmatpush.msra.mxu0 %v3869
        %3893 = vmatpush.msra.mxu0 %v3867
        %3894 = vmatmul.f32.gmra.mxu0 %v3873
        %v3895 = vpop.f32.mrf.mxu0
        %v3896 = vadd.f32 0.0, %v3895
        %3897 = vmatmul.f32.gmra.mxu0 %v3876
        %v3898 = vpop.f32.mrf.mxu0
        %v3899 = vadd.f32 0.0, %v3898
        %3900 = vdwg.mxu0
        %3901 = vrot.lane.b32.xlu0 %v577, 40
        %v3902 = vpop.permute.xlu0 %3901
        %3903 = vrot.lane.b32.xlu0 %v580, 40
        %v3904 = vpop.permute.xlu0 %3903
        %v3908 = vsel %vm1047, %v3860, 0
        %v3911 = vsel %vm1047, %v3861, 0
        %3913 = vmatpush.msra.mxu0 0.0
        %3914 = vmatpush.msra.mxu0 0.0
        %3915 = vmatpush.msra.mxu0 0.0
        %3916 = vmatpush.msra.mxu0 0.0
        %3917 = vmatpush.msra.mxu0 0.0
        %3918 = vmatpush.msra.mxu0 0.0
        %3919 = vmatpush.msra.mxu0 0.0
        %3920 = vmatpush.msra.mxu0 0.0
        %3921 = vmatpush.msra.mxu0 0.0
        %3922 = vmatpush.msra.mxu0 0.0
        %3923 = vmatpush.msra.mxu0 0.0
        %3924 = vmatpush.msra.mxu0 0.0
        %3925 = vmatpush.msra.mxu0 0.0
        %3926 = vmatpush.msra.mxu0 0.0
        %3927 = vmatpush.msra.mxu0 %v3904
        %3928 = vmatpush.msra.mxu0 %v3902
        %3929 = vmatmul.f32.gmra.mxu0 %v3908
        %v3930 = vpop.f32.mrf.mxu0
        %v3931 = vadd.f32 0.0, %v3930
        %3932 = vmatmul.f32.gmra.mxu0 %v3911
        %v3933 = vpop.f32.mrf.mxu0
        %v3934 = vadd.f32 0.0, %v3933
        %3935 = vdwg.mxu0
        %3936 = vrot.lane.b32.xlu0 %v583, 40
        %v3937 = vpop.permute.xlu0 %3936
        %3938 = vrot.lane.b32.xlu0 %v586, 40
        %v3939 = vpop.permute.xlu0 %3938
        %v3943 = vsel %vm1047, %v3862, 0
        %v3946 = vsel %vm1047, %v3863, 0
        %3948 = vmatpush.msra.mxu0 0.0
        %3949 = vmatpush.msra.mxu0 0.0
        %3950 = vmatpush.msra.mxu0 0.0
        %3951 = vmatpush.msra.mxu0 0.0
        %3952 = vmatpush.msra.mxu0 0.0
        %3953 = vmatpush.msra.mxu0 0.0
        %3954 = vmatpush.msra.mxu0 0.0
        %3955 = vmatpush.msra.mxu0 0.0
        %3956 = vmatpush.msra.mxu0 0.0
        %3957 = vmatpush.msra.mxu0 0.0
        %3958 = vmatpush.msra.mxu0 0.0
        %3959 = vmatpush.msra.mxu0 0.0
        %3960 = vmatpush.msra.mxu0 0.0
        %3961 = vmatpush.msra.mxu0 0.0
        %3962 = vmatpush.msra.mxu0 %v3939
        %3963 = vmatpush.msra.mxu0 %v3937
        %3964 = vmatmul.f32.gmra.mxu0 %v3943
        %v3965 = vpop.f32.mrf.mxu0
        %v3966 = vadd.f32 0.0, %v3965
        %3967 = vmatmul.f32.gmra.mxu0 %v3946
        %v3968 = vpop.f32.mrf.mxu0
        %v3969 = vadd.f32 0.0, %v3968
        %3970 = vdwg.mxu0
        %3971 = vrot.lane.b32.xlu0 %v589, 40
        %v3972 = vpop.permute.xlu0 %3971
        %3973 = vrot.lane.b32.xlu0 %v592, 40
        %v3974 = vpop.permute.xlu0 %3973
        %v3978 = vsel %vm1047, %v3864, 0
        %v3981 = vsel %vm1047, %v3865, 0
        %3983 = vmatpush.msra.mxu0 0.0
        %3984 = vmatpush.msra.mxu0 0.0
        %3985 = vmatpush.msra.mxu0 0.0
        %3986 = vmatpush.msra.mxu0 0.0
        %3987 = vmatpush.msra.mxu0 0.0
        %3988 = vmatpush.msra.mxu0 0.0
        %3989 = vmatpush.msra.mxu0 0.0
        %3990 = vmatpush.msra.mxu0 0.0
        %3991 = vmatpush.msra.mxu0 0.0
        %3992 = vmatpush.msra.mxu0 0.0
        %3993 = vmatpush.msra.mxu0 0.0
        %3994 = vmatpush.msra.mxu0 0.0
        %3995 = vmatpush.msra.mxu0 0.0
        %3996 = vmatpush.msra.mxu0 0.0
        %3997 = vmatpush.msra.mxu0 %v3974
        %3998 = vmatpush.msra.mxu0 %v3972
        %3999 = vmatmul.f32.gmra.mxu0 %v3978
        %v4000 = vpop.f32.mrf.mxu0
        %v4001 = vadd.f32 0.0, %v4000
        %4002 = vmatmul.f32.gmra.mxu0 %v3981
        %v4003 = vpop.f32.mrf.mxu0
        %v4004 = vadd.f32 0.0, %v4003
        %4005 = vdwg.mxu0
        %v4007 = vsel %vm606, %v3896, 0
        %v4010 = vsel %vm606, %v3899, 0
        %v4013 = vsel %vm606, %v3931, 0
        %v4016 = vsel %vm606, %v3934, 0
        %v4019 = vsel %vm606, %v3966, 0
        %v4022 = vsel %vm606, %v3969, 0
        %v4025 = vsel %vm606, %v4001, 0
        %v4028 = vsel %vm606, %v4004, 0
        %4030 = vmatpush.msra.mxu0 0.0
        %4031 = vmatpush.msra.mxu0 0.0
        %4032 = vmatpush.msra.mxu0 0.0
        %4033 = vmatpush.msra.mxu0 0.0
        %4034 = vmatpush.msra.mxu0 0.0
        %4035 = vmatpush.msra.mxu0 0.0
        %4036 = vmatpush.msra.mxu0 0.0
        %4037 = vmatpush.msra.mxu0 0.0
        %4038 = vmatpush.msra.mxu0 0.0
        %4039 = vmatpush.msra.mxu0 0.0
        %4040 = vmatpush.msra.mxu0 0.0
        %4041 = vmatpush.msra.mxu0 0.0
        %4042 = vmatpush.msra.mxu0 0.0
        %4043 = vmatpush.msra.mxu0 0.0
        %4044 = vmatpush.msra.mxu0 0.0
        %4045 = vmatpush.msra.mxu0 %v597
        %4046 = vmatmul.f32.gmra.mxu0 %v4007
        %v4047 = vpop.f32.mrf.mxu0
        %v4048 = vadd.f32 0.0, %v4047
        %4049 = vmatmul.f32.gmra.mxu0 %v4010
        %v4050 = vpop.f32.mrf.mxu0
        %v4051 = vadd.f32 0.0, %v4050
        %4052 = vmatmul.f32.gmra.mxu0 %v4013
        %v4053 = vpop.f32.mrf.mxu0
        %v4054 = vadd.f32 0.0, %v4053
        %4055 = vmatmul.f32.gmra.mxu0 %v4016
        %v4056 = vpop.f32.mrf.mxu0
        %v4057 = vadd.f32 0.0, %v4056
        %4058 = vmatmul.f32.gmra.mxu0 %v4019
        %v4059 = vpop.f32.mrf.mxu0
        %v4060 = vadd.f32 0.0, %v4059
        %4061 = vmatmul.f32.gmra.mxu0 %v4022
        %v4062 = vpop.f32.mrf.mxu0
        %v4063 = vadd.f32 0.0, %v4062
        %4064 = vmatmul.f32.gmra.mxu0 %v4025
        %v4065 = vpop.f32.mrf.mxu0
        %v4066 = vadd.f32 0.0, %v4065
        %4067 = vmatmul.f32.gmra.mxu0 %v4028
        %v4068 = vpop.f32.mrf.mxu0
        %v4069 = vadd.f32 0.0, %v4068
        %4070 = vdwg.mxu0
        %v4071 = vadd.f32 %v3193, %v4048
        %v4072 = vadd.f32 %v3194, %v4051
        %v4073 = vadd.f32 %v3195, %v4054
        %v4074 = vadd.f32 %v3196, %v4057
        %v4075 = vadd.f32 %v3197, %v4060
        %v4076 = vadd.f32 %v3198, %v4063
        %v4077 = vadd.f32 %v3199, %v4066
        %v4078 = vadd.f32 %v3200, %v4069
        %v4079 = vld [vmem:[%s6] sm:$0x1]
        %v4081 = vperm.slane %v4079, 0
        %v4083 = vadd.f32 %v4071, %v4081
        %v4084 = vadd.f32 %v4072, %v4081
        %v4085 = vadd.f32 %v4073, %v4081
        %v4086 = vadd.f32 %v4074, %v4081
        %v4087 = vadd.f32 %v4075, %v4081
        %v4088 = vadd.f32 %v4076, %v4081
        %v4089 = vadd.f32 %v4077, %v4081
        %v4090 = vadd.f32 %v4078, %v4081
        %v4091 = vld [vmem:[%s7] sm:$0x1]
        %v4092 = vld [vmem:[%s8] sm:$0x1]
        %v4093 = vsel %vm528, %v4083, 0.0
        %4094 = vadd.xlane.f32.xlu0 %v4093
        %v4095 = vpop.xlane.xlu0 %4094
        %v4096 = vsel %vm528, %v4084, 0.0
        %4097 = vadd.xlane.f32.xlu0 %v4096
        %v4098 = vpop.xlane.xlu0 %4097
        %v4099 = vsel %vm528, %v4085, 0.0
        %4100 = vadd.xlane.f32.xlu0 %v4099
        %v4101 = vpop.xlane.xlu0 %4100
        %v4102 = vsel %vm528, %v4086, 0.0
        %4103 = vadd.xlane.f32.xlu0 %v4102
        %v4104 = vpop.xlane.xlu0 %4103
        %v4105 = vsel %vm528, %v4087, 0.0
        %4106 = vadd.xlane.f32.xlu0 %v4105
        %v4107 = vpop.xlane.xlu0 %4106
        %v4108 = vsel %vm528, %v4088, 0.0
        %4109 = vadd.xlane.f32.xlu0 %v4108
        %v4110 = vpop.xlane.xlu0 %4109
        %v4111 = vsel %vm528, %v4089, 0.0
        %4112 = vadd.xlane.f32.xlu0 %v4111
        %v4113 = vpop.xlane.xlu0 %4112
        %v4114 = vsel %vm528, %v4090, 0.0
        %4115 = vadd.xlane.f32.xlu0 %v4114
        %v4116 = vpop.xlane.xlu0 %4115
        %v4117 = vrcp.pop 32.0
        %v4118 = vmul.f32 32.0, %v4117
        %v4119 = vsub.f32 1.0, %v4118
        %v4120 = vmul.f32 %v4117, %v4119
        %v4121 = vadd.f32 %v4117, %v4120
        %vm4122 = vweird.f32 %v4117
        %v4123 = vsel %vm4122, %v4117, %v4121
        %v4124 = vmul.f32 %v4095, %v4123
        %v4125 = vmul.f32 %v4098, %v4123
        %v4126 = vmul.f32 %v4101, %v4123
        %v4127 = vmul.f32 %v4104, %v4123
        %v4128 = vmul.f32 %v4107, %v4123
        %v4129 = vmul.f32 %v4110, %v4123
        %v4130 = vmul.f32 %v4113, %v4123
        %v4131 = vmul.f32 %v4116, %v4123
        %v4132 = vsub.f32 %v4083, %v4124
        %v4133 = vsub.f32 %v4084, %v4125
        %v4134 = vsub.f32 %v4085, %v4126
        %v4135 = vsub.f32 %v4086, %v4127
        %v4136 = vsub.f32 %v4087, %v4128
        %v4137 = vsub.f32 %v4088, %v4129
        %v4138 = vsub.f32 %v4089, %v4130
        %v4139 = vsub.f32 %v4090, %v4131
        %v4140 = vmul.f32 %v4132, %v4132
        %v4141 = vmul.f32 %v4133, %v4133
        %v4142 = vmul.f32 %v4134, %v4134
        %v4143 = vmul.f32 %v4135, %v4135
        %v4144 = vmul.f32 %v4136, %v4136
        %v4145 = vmul.f32 %v4137, %v4137
        %v4146 = vmul.f32 %v4138, %v4138
        %v4147 = vmul.f32 %v4139, %v4139
        %v4148 = vsel %vm528, %v4140, 0.0
        %4149 = vadd.xlane.f32.xlu0 %v4148
        %v4150 = vpop.xlane.xlu0 %4149
        %v4151 = vsel %vm528, %v4141, 0.0
        %4152 = vadd.xlane.f32.xlu0 %v4151
        %v4153 = vpop.xlane.xlu0 %4152
        %v4154 = vsel %vm528, %v4142, 0.0
        %4155 = vadd.xlane.f32.xlu0 %v4154
        %v4156 = vpop.xlane.xlu0 %4155
        %v4157 = vsel %vm528, %v4143, 0.0
        %4158 = vadd.xlane.f32.xlu0 %v4157
        %v4159 = vpop.xlane.xlu0 %4158
        %v4160 = vsel %vm528, %v4144, 0.0
        %4161 = vadd.xlane.f32.xlu0 %v4160
        %v4162 = vpop.xlane.xlu0 %4161
        %v4163 = vsel %vm528, %v4145, 0.0
        %4164 = vadd.xlane.f32.xlu0 %v4163
        %v4165 = vpop.xlane.xlu0 %4164
        %v4166 = vsel %vm528, %v4146, 0.0
        %4167 = vadd.xlane.f32.xlu0 %v4166
        %v4168 = vpop.xlane.xlu0 %4167
        %v4169 = vsel %vm528, %v4147, 0.0
        %4170 = vadd.xlane.f32.xlu0 %v4169
        %v4171 = vpop.xlane.xlu0 %4170
        %v4172 = vmul.f32 %v4150, %v4123
        %v4173 = vmul.f32 %v4153, %v4123
        %v4174 = vmul.f32 %v4156, %v4123
        %v4175 = vmul.f32 %v4159, %v4123
        %v4176 = vmul.f32 %v4162, %v4123
        %v4177 = vmul.f32 %v4165, %v4123
        %v4178 = vmul.f32 %v4168, %v4123
        %v4179 = vmul.f32 %v4171, %v4123
        %v4180 = vadd.f32 %v4172, 1e-05
        %v4181 = vadd.f32 %v4173, 1e-05
        %v4182 = vadd.f32 %v4174, 1e-05
        %v4183 = vadd.f32 %v4175, 1e-05
        %v4184 = vadd.f32 %v4176, 1e-05
        %v4185 = vadd.f32 %v4177, 1e-05
        %v4186 = vadd.f32 %v4178, 1e-05
        %v4187 = vadd.f32 %v4179, 1e-05
        %v4188 = vrsqrt.pop %v4180
        %v4189 = vmul.f32 %v4188, %v4180
        %v4190 = vmul.f32 %v4189, %v4188
        %v4191 = vmul.f32 0.5, %v4190
        %v4192 = vsub.f32 1.5, %v4191
        %v4193 = vmul.f32 %v4188, %v4192
        %vm4194 = vweird.f32 %v4180
        %vm4195 = vweird.f32 %v4188
        %vm4196 = vmor %vm4194, %vm4195
        %v4197 = vsel %vm4196, %v4188, %v4193
        %v4198 = vrsqrt.pop %v4181
        %v4199 = vmul.f32 %v4198, %v4181
        %v4200 = vmul.f32 %v4199, %v4198
        %v4201 = vmul.f32 0.5, %v4200
        %v4202 = vsub.f32 1.5, %v4201
        %v4203 = vmul.f32 %v4198, %v4202
        %vm4204 = vweird.f32 %v4181
        %vm4205 = vweird.f32 %v4198
        %vm4206 = vmor %vm4204, %vm4205
        %v4207 = vsel %vm4206, %v4198, %v4203
        %v4208 = vrsqrt.pop %v4182
        %v4209 = vmul.f32 %v4208, %v4182
        %v4210 = vmul.f32 %v4209, %v4208
        %v4211 = vmul.f32 0.5, %v4210
        %v4212 = vsub.f32 1.5, %v4211
        %v4213 = vmul.f32 %v4208, %v4212
        %vm4214 = vweird.f32 %v4182
        %vm4215 = vweird.f32 %v4208
        %vm4216 = vmor %vm4214, %vm4215
        %v4217 = vsel %vm4216, %v4208, %v4213
        %v4218 = vrsqrt.pop %v4183
        %v4219 = vmul.f32 %v4218, %v4183
        %v4220 = vmul.f32 %v4219, %v4218
        %v4221 = vmul.f32 0.5, %v4220
        %v4222 = vsub.f32 1.5, %v4221
        %v4223 = vmul.f32 %v4218, %v4222
        %vm4224 = vweird.f32 %v4183
        %vm4225 = vweird.f32 %v4218
        %vm4226 = vmor %vm4224, %vm4225
        %v4227 = vsel %vm4226, %v4218, %v4223
        %v4228 = vrsqrt.pop %v4184
        %v4229 = vmul.f32 %v4228, %v4184
        %v4230 = vmul.f32 %v4229, %v4228
        %v4231 = vmul.f32 0.5, %v4230
        %v4232 = vsub.f32 1.5, %v4231
        %v4233 = vmul.f32 %v4228, %v4232
        %vm4234 = vweird.f32 %v4184
        %vm4235 = vweird.f32 %v4228
        %vm4236 = vmor %vm4234, %vm4235
        %v4237 = vsel %vm4236, %v4228, %v4233
        %v4238 = vrsqrt.pop %v4185
        %v4239 = vmul.f32 %v4238, %v4185
        %v4240 = vmul.f32 %v4239, %v4238
        %v4241 = vmul.f32 0.5, %v4240
        %v4242 = vsub.f32 1.5, %v4241
        %v4243 = vmul.f32 %v4238, %v4242
        %vm4244 = vweird.f32 %v4185
        %vm4245 = vweird.f32 %v4238
        %vm4246 = vmor %vm4244, %vm4245
        %v4247 = vsel %vm4246, %v4238, %v4243
        %v4248 = vrsqrt.pop %v4186
        %v4249 = vmul.f32 %v4248, %v4186
        %v4250 = vmul.f32 %v4249, %v4248
        %v4251 = vmul.f32 0.5, %v4250
        %v4252 = vsub.f32 1.5, %v4251
        %v4253 = vmul.f32 %v4248, %v4252
        %vm4254 = vweird.f32 %v4186
        %vm4255 = vweird.f32 %v4248
        %vm4256 = vmor %vm4254, %vm4255
        %v4257 = vsel %vm4256, %v4248, %v4253
        %v4258 = vrsqrt.pop %v4187
        %v4259 = vmul.f32 %v4258, %v4187
        %v4260 = vmul.f32 %v4259, %v4258
        %v4261 = vmul.f32 0.5, %v4260
        %v4262 = vsub.f32 1.5, %v4261
        %v4263 = vmul.f32 %v4258, %v4262
        %vm4264 = vweird.f32 %v4187
        %vm4265 = vweird.f32 %v4258
        %vm4266 = vmor %vm4264, %vm4265
        %v4267 = vsel %vm4266, %v4258, %v4263
        %v4268 = vmul.f32 %v4132, %v4197
        %v4269 = vmul.f32 %v4133, %v4207
        %v4270 = vmul.f32 %v4134, %v4217
        %v4271 = vmul.f32 %v4135, %v4227
        %v4272 = vmul.f32 %v4136, %v4237
        %v4273 = vmul.f32 %v4137, %v4247
        %v4274 = vmul.f32 %v4138, %v4257
        %v4275 = vmul.f32 %v4139, %v4267
        %v4277 = vperm.slane %v4091, 0
        %v4279 = vmul.f32 %v4268, %v4277
        %v4280 = vmul.f32 %v4269, %v4277
        %v4281 = vmul.f32 %v4270, %v4277
        %v4282 = vmul.f32 %v4271, %v4277
        %v4283 = vmul.f32 %v4272, %v4277
        %v4284 = vmul.f32 %v4273, %v4277
        %v4285 = vmul.f32 %v4274, %v4277
        %v4286 = vmul.f32 %v4275, %v4277
        %v4288 = vperm.slane %v4092, 0
        %v4290 = vadd.f32 %v4279, %v4288
        %v4291 = vadd.f32 %v4280, %v4288
        %v4292 = vadd.f32 %v4281, %v4288
        %v4293 = vadd.f32 %v4282, %v4288
        %v4294 = vadd.f32 %v4283, %v4288
        %v4295 = vadd.f32 %v4284, %v4288
        %v4296 = vadd.f32 %v4285, %v4288
        %v4297 = vadd.f32 %v4286, %v4288
        %v4298 = vadd.f32 %v512, %v4290
        %v4299 = vadd.f32 %v513, %v4291
        %v4300 = vadd.f32 %v514, %v4292
        %v4301 = vadd.f32 %v515, %v4293
        %v4302 = vadd.f32 %v516, %v4294
        %v4303 = vadd.f32 %v517, %v4295
        %v4304 = vadd.f32 %v518, %v4296
        %v4305 = vadd.f32 %v519, %v4297
        %v4306 = vld [vmem:[%s9] sm:$0xff]
        %v4307 = vld [vmem:[%s9 + $0x8] sm:$0xff]
        %v4308 = vld [vmem:[%s9 + $0x10] sm:$0xff]
        %v4309 = vld [vmem:[%s9 + $0x18] sm:$0xff]
        %v4310 = vld [vmem:[%s10] sm:$0x1]
        %v4312 = vperm.slane %v4310, 0
        %v4315 = vsel %vm528, %v4298, 0
        %v4318 = vsel %vm528, %v4299, 0
        %v4321 = vsel %vm528, %v4300, 0
        %v4324 = vsel %vm528, %v4301, 0
        %v4327 = vsel %vm528, %v4302, 0
        %v4330 = vsel %vm528, %v4303, 0
        %v4333 = vsel %vm528, %v4304, 0
        %v4336 = vsel %vm528, %v4305, 0
        %4338 = vmatpush.msra.mxu0 0.0
        %4339 = vmatpush.msra.mxu0 0.0
        %4340 = vmatpush.msra.mxu0 0.0
        %4341 = vmatpush.msra.mxu0 0.0
        %4342 = vmatpush.msra.mxu0 0.0
        %4343 = vmatpush.msra.mxu0 0.0
        %4344 = vmatpush.msra.mxu0 0.0
        %4345 = vmatpush.msra.mxu0 0.0
        %4346 = vmatpush.msra.mxu0 0.0
        %4347 = vmatpush.msra.mxu0 0.0
        %4348 = vmatpush.msra.mxu0 0.0
        %4349 = vmatpush.msra.mxu0 0.0
        %4350 = vmatpush.msra.mxu0 %v4309
        %4351 = vmatpush.msra.mxu0 %v4308
        %4352 = vmatpush.msra.mxu0 %v4307
        %4353 = vmatpush.msra.mxu0 %v4306
        %4354 = vmatmul.f32.gmra.mxu0 %v4315
        %v4355 = vpop.f32.mrf.mxu0
        %v4356 = vadd.f32 %v4312, %v4355
        %4357 = vmatmul.f32.gmra.mxu0 %v4318
        %v4358 = vpop.f32.mrf.mxu0
        %v4359 = vadd.f32 %v4312, %v4358
        %4360 = vmatmul.f32.gmra.mxu0 %v4321
        %v4361 = vpop.f32.mrf.mxu0
        %v4362 = vadd.f32 %v4312, %v4361
        %4363 = vmatmul.f32.gmra.mxu0 %v4324
        %v4364 = vpop.f32.mrf.mxu0
        %v4365 = vadd.f32 %v4312, %v4364
        %4366 = vmatmul.f32.gmra.mxu0 %v4327
        %v4367 = vpop.f32.mrf.mxu0
        %v4368 = vadd.f32 %v4312, %v4367
        %4369 = vmatmul.f32.gmra.mxu0 %v4330
        %v4370 = vpop.f32.mrf.mxu0
        %v4371 = vadd.f32 %v4312, %v4370
        %4372 = vmatmul.f32.gmra.mxu0 %v4333
        %v4373 = vpop.f32.mrf.mxu0
        %v4374 = vadd.f32 %v4312, %v4373
        %4375 = vmatmul.f32.gmra.mxu0 %v4336
        %v4376 = vpop.f32.mrf.mxu0
        %v4377 = vadd.f32 %v4312, %v4376
        %4378 = vdwg.mxu0
        %v4379 = vmul.f32 %v4356, 0.5
        %v4380 = vmul.f32 %v4359, 0.5
        %v4381 = vmul.f32 %v4362, 0.5
        %v4382 = vmul.f32 %v4365, 0.5
        %v4383 = vmul.f32 %v4368, 0.5
        %v4384 = vmul.f32 %v4371, 0.5
        %v4385 = vmul.f32 %v4374, 0.5
        %v4386 = vmul.f32 %v4377, 0.5
        %v4387 = vmul.f32 %v4356, 0.70710677
        %v4388 = vmul.f32 %v4359, 0.70710677
        %v4389 = vmul.f32 %v4362, 0.70710677
        %v4390 = vmul.f32 %v4365, 0.70710677
        %v4391 = vmul.f32 %v4368, 0.70710677
        %v4392 = vmul.f32 %v4371, 0.70710677
        %v4393 = vmul.f32 %v4374, 0.70710677
        %v4394 = vmul.f32 %v4377, 0.70710677
        %v4395 = vand.u32 2147483647, %v4387
        %v4396 = vand.u32 2147483647, %v4388
        %v4397 = vand.u32 2147483647, %v4389
        %v4398 = vand.u32 2147483647, %v4390
        %v4399 = vand.u32 2147483647, %v4391
        %v4400 = vand.u32 2147483647, %v4392
        %v4401 = vand.u32 2147483647, %v4393
        %v4402 = vand.u32 2147483647, %v4394
        %v4403 = vmul.f32 %v4395, 0.3275911
        %v4404 = vmul.f32 %v4396, 0.3275911
        %v4405 = vmul.f32 %v4397, 0.3275911
        %v4406 = vmul.f32 %v4398, 0.3275911
        %v4407 = vmul.f32 %v4399, 0.3275911
        %v4408 = vmul.f32 %v4400, 0.3275911
        %v4409 = vmul.f32 %v4401, 0.3275911
        %v4410 = vmul.f32 %v4402, 0.3275911
        %v4411 = vadd.f32 %v4403, 1.0
        %v4412 = vadd.f32 %v4404, 1.0
        %v4413 = vadd.f32 %v4405, 1.0
        %v4414 = vadd.f32 %v4406, 1.0
        %v4415 = vadd.f32 %v4407, 1.0
        %v4416 = vadd.f32 %v4408, 1.0
        %v4417 = vadd.f32 %v4409, 1.0
        %v4418 = vadd.f32 %v4410, 1.0
        %v4419 = vrcp.pop %v4411
        %v4420 = vmul.f32 %v4411, %v4419
        %v4421 = vsub.f32 1.0, %v4420
        %v4422 = vmul.f32 %v4419, %v4421
        %v4423 = vadd.f32 %v4419, %v4422
        %vm4424 = vweird.f32 %v4411
        %vm4425 = vweird.f32 %v4419
        %vm4426 = vmor %vm4424, %vm4425
        %v4427 = vsel %vm4426, %v4419, %v4423
        %v4428 = vand.u32 2147483647, %v4411
        %vm4429 = vcmp.eq.f32.partialorder %v4428, 8.507059e+37
        %v4430 = vand.u32 %v4411, 2147483648
        %v4431 = vor.u32 1.1754944e-38, %v4430
        %v4432 = vsel %vm4429, %v4431, %v4427
        %v4433 = vmul.f32 1.0, %v4432
        %v4434 = vrcp.pop %v4412
        %v4435 = vmul.f32 %v4412, %v4434
        %v4436 = vsub.f32 1.0, %v4435
        %v4437 = vmul.f32 %v4434, %v4436
        %v4438 = vadd.f32 %v4434, %v4437
        %vm4439 = vweird.f32 %v4412
        %vm4440 = vweird.f32 %v4434
        %vm4441 = vmor %vm4439, %vm4440
        %v4442 = vsel %vm4441, %v4434, %v4438
        %v4443 = vand.u32 2147483647, %v4412
        %vm4444 = vcmp.eq.f32.partialorder %v4443, 8.507059e+37
        %v4445 = vand.u32 %v4412, 2147483648
        %v4446 = vor.u32 1.1754944e-38, %v4445
        %v4447 = vsel %vm4444, %v4446, %v4442
        %v4448 = vmul.f32 1.0, %v4447
        %v4449 = vrcp.pop %v4413
        %v4450 = vmul.f32 %v4413, %v4449
        %v4451 = vsub.f32 1.0, %v4450
        %v4452 = vmul.f32 %v4449, %v4451
        %v4453 = vadd.f32 %v4449, %v4452
        %vm4454 = vweird.f32 %v4413
        %vm4455 = vweird.f32 %v4449
        %vm4456 = vmor %vm4454, %vm4455
        %v4457 = vsel %vm4456, %v4449, %v4453
        %v4458 = vand.u32 2147483647, %v4413
        %vm4459 = vcmp.eq.f32.partialorder %v4458, 8.507059e+37
        %v4460 = vand.u32 %v4413, 2147483648
        %v4461 = vor.u32 1.1754944e-38, %v4460
        %v4462 = vsel %vm4459, %v4461, %v4457
        %v4463 = vmul.f32 1.0, %v4462
        %v4464 = vrcp.pop %v4414
        %v4465 = vmul.f32 %v4414, %v4464
        %v4466 = vsub.f32 1.0, %v4465
        %v4467 = vmul.f32 %v4464, %v4466
        %v4468 = vadd.f32 %v4464, %v4467
        %vm4469 = vweird.f32 %v4414
        %vm4470 = vweird.f32 %v4464
        %vm4471 = vmor %vm4469, %vm4470
        %v4472 = vsel %vm4471, %v4464, %v4468
        %v4473 = vand.u32 2147483647, %v4414
        %vm4474 = vcmp.eq.f32.partialorder %v4473, 8.507059e+37
        %v4475 = vand.u32 %v4414, 2147483648
        %v4476 = vor.u32 1.1754944e-38, %v4475
        %v4477 = vsel %vm4474, %v4476, %v4472
        %v4478 = vmul.f32 1.0, %v4477
        %v4479 = vrcp.pop %v4415
        %v4480 = vmul.f32 %v4415, %v4479
        %v4481 = vsub.f32 1.0, %v4480
        %v4482 = vmul.f32 %v4479, %v4481
        %v4483 = vadd.f32 %v4479, %v4482
        %vm4484 = vweird.f32 %v4415
        %vm4485 = vweird.f32 %v4479
        %vm4486 = vmor %vm4484, %vm4485
        %v4487 = vsel %vm4486, %v4479, %v4483
        %v4488 = vand.u32 2147483647, %v4415
        %vm4489 = vcmp.eq.f32.partialorder %v4488, 8.507059e+37
        %v4490 = vand.u32 %v4415, 2147483648
        %v4491 = vor.u32 1.1754944e-38, %v4490
        %v4492 = vsel %vm4489, %v4491, %v4487
        %v4493 = vmul.f32 1.0, %v4492
        %v4494 = vrcp.pop %v4416
        %v4495 = vmul.f32 %v4416, %v4494
        %v4496 = vsub.f32 1.0, %v4495
        %v4497 = vmul.f32 %v4494, %v4496
        %v4498 = vadd.f32 %v4494, %v4497
        %vm4499 = vweird.f32 %v4416
        %vm4500 = vweird.f32 %v4494
        %vm4501 = vmor %vm4499, %vm4500
        %v4502 = vsel %vm4501, %v4494, %v4498
        %v4503 = vand.u32 2147483647, %v4416
        %vm4504 = vcmp.eq.f32.partialorder %v4503, 8.507059e+37
        %v4505 = vand.u32 %v4416, 2147483648
        %v4506 = vor.u32 1.1754944e-38, %v4505
        %v4507 = vsel %vm4504, %v4506, %v4502
        %v4508 = vmul.f32 1.0, %v4507
        %v4509 = vrcp.pop %v4417
        %v4510 = vmul.f32 %v4417, %v4509
        %v4511 = vsub.f32 1.0, %v4510
        %v4512 = vmul.f32 %v4509, %v4511
        %v4513 = vadd.f32 %v4509, %v4512
        %vm4514 = vweird.f32 %v4417
        %vm4515 = vweird.f32 %v4509
        %vm4516 = vmor %vm4514, %vm4515
        %v4517 = vsel %vm4516, %v4509, %v4513
        %v4518 = vand.u32 2147483647, %v4417
        %vm4519 = vcmp.eq.f32.partialorder %v4518, 8.507059e+37
        %v4520 = vand.u32 %v4417, 2147483648
        %v4521 = vor.u32 1.1754944e-38, %v4520
        %v4522 = vsel %vm4519, %v4521, %v4517
        %v4523 = vmul.f32 1.0, %v4522
        %v4524 = vrcp.pop %v4418
        %v4525 = vmul.f32 %v4418, %v4524
        %v4526 = vsub.f32 1.0, %v4525
        %v4527 = vmul.f32 %v4524, %v4526
        %v4528 = vadd.f32 %v4524, %v4527
        %vm4529 = vweird.f32 %v4418
        %vm4530 = vweird.f32 %v4524
        %vm4531 = vmor %vm4529, %vm4530
        %v4532 = vsel %vm4531, %v4524, %v4528
        %v4533 = vand.u32 2147483647, %v4418
        %vm4534 = vcmp.eq.f32.partialorder %v4533, 8.507059e+37
        %v4535 = vand.u32 %v4418, 2147483648
        %v4536 = vor.u32 1.1754944e-38, %v4535
        %v4537 = vsel %vm4534, %v4536, %v4532
        %v4538 = vmul.f32 1.0, %v4537
        %v4539 = vmul.f32 %v4433, 1.0614054
        %v4540 = vmul.f32 %v4448, 1.0614054
        %v4541 = vmul.f32 %v4463, 1.0614054
        %v4542 = vmul.f32 %v4478, 1.0614054
        %v4543 = vmul.f32 %v4493, 1.0614054
        %v4544 = vmul.f32 %v4508, 1.0614054
        %v4545 = vmul.f32 %v4523, 1.0614054
        %v4546 = vmul.f32 %v4538, 1.0614054
        %v4547 = vadd.f32 %v4539, -1.4531521
        %v4548 = vadd.f32 %v4540, -1.4531521
        %v4549 = vadd.f32 %v4541, -1.4531521
        %v4550 = vadd.f32 %v4542, -1.4531521
        %v4551 = vadd.f32 %v4543, -1.4531521
        %v4552 = vadd.f32 %v4544, -1.4531521
        %v4553 = vadd.f32 %v4545, -1.4531521
        %v4554 = vadd.f32 %v4546, -1.4531521
        %v4555 = vmul.f32 %v4547, %v4433
        %v4556 = vmul.f32 %v4548, %v4448
        %v4557 = vmul.f32 %v4549, %v4463
        %v4558 = vmul.f32 %v4550, %v4478
        %v4559 = vmul.f32 %v4551, %v4493
        %v4560 = vmul.f32 %v4552, %v4508
        %v4561 = vmul.f32 %v4553, %v4523
        %v4562 = vmul.f32 %v4554, %v4538
        %v4563 = vadd.f32 %v4555, 1.4214138
        %v4564 = vadd.f32 %v4556, 1.4214138
        %v4565 = vadd.f32 %v4557, 1.4214138
        %v4566 = vadd.f32 %v4558, 1.4214138
        %v4567 = vadd.f32 %v4559, 1.4214138
        %v4568 = vadd.f32 %v4560, 1.4214138
        %v4569 = vadd.f32 %v4561, 1.4214138
        %v4570 = vadd.f32 %v4562, 1.4214138
        %v4571 = vmul.f32 %v4563, %v4433
        %v4572 = vmul.f32 %v4564, %v4448
        %v4573 = vmul.f32 %v4565, %v4463
        %v4574 = vmul.f32 %v4566, %v4478
        %v4575 = vmul.f32 %v4567, %v4493
        %v4576 = vmul.f32 %v4568, %v4508
        %v4577 = vmul.f32 %v4569, %v4523
        %v4578 = vmul.f32 %v4570, %v4538
        %v4579 = vadd.f32 %v4571, -0.28449672
        %v4580 = vadd.f32 %v4572, -0.28449672
        %v4581 = vadd.f32 %v4573, -0.28449672
        %v4582 = vadd.f32 %v4574, -0.28449672
        %v4583 = vadd.f32 %v4575, -0.28449672
        %v4584 = vadd.f32 %v4576, -0.28449672
        %v4585 = vadd.f32 %v4577, -0.28449672
        %v4586 = vadd.f32 %v4578, -0.28449672
        %v4587 = vmul.f32 %v4579, %v4433
        %v4588 = vmul.f32 %v4580, %v4448
        %v4589 = vmul.f32 %v4581, %v4463
        %v4590 = vmul.f32 %v4582, %v4478
        %v4591 = vmul.f32 %v4583, %v4493
        %v4592 = vmul.f32 %v4584, %v4508
        %v4593 = vmul.f32 %v4585, %v4523
        %v4594 = vmul.f32 %v4586, %v4538
        %v4595 = vadd.f32 %v4587, 0.2548296
        %v4596 = vadd.f32 %v4588, 0.2548296
        %v4597 = vadd.f32 %v4589, 0.2548296
        %v4598 = vadd.f32 %v4590, 0.2548296
        %v4599 = vadd.f32 %v4591, 0.2548296
        %v4600 = vadd.f32 %v4592, 0.2548296
        %v4601 = vadd.f32 %v4593, 0.2548296
        %v4602 = vadd.f32 %v4594, 0.2548296
        %v4603 = vmul.f32 %v4595, %v4433
        %v4604 = vmul.f32 %v4596, %v4448
        %v4605 = vmul.f32 %v4597, %v4463
        %v4606 = vmul.f32 %v4598, %v4478
        %v4607 = vmul.f32 %v4599, %v4493
        %v4608 = vmul.f32 %v4600, %v4508
        %v4609 = vmul.f32 %v4601, %v4523
        %v4610 = vmul.f32 %v4602, %v4538
        %v4611 = vsub.f32 0.0, %v4395
        %v4612 = vsub.f32 0.0, %v4396
        %v4613 = vsub.f32 0.0, %v4397
        %v4614 = vsub.f32 0.0, %v4398
        %v4615 = vsub.f32 0.0, %v4399
        %v4616 = vsub.f32 0.0, %v4400
        %v4617 = vsub.f32 0.0, %v4401
        %v4618 = vsub.f32 0.0, %v4402
        %v4619 = vmul.f32 %v4611, %v4395
        %v4620 = vmul.f32 %v4612, %v4396
        %v4621 = vmul.f32 %v4613, %v4397
        %v4622 = vmul.f32 %v4614, %v4398
        %v4623 = vmul.f32 %v4615, %v4399
        %v4624 = vmul.f32 %v4616, %v4400
        %v4625 = vmul.f32 %v4617, %v4401
        %v4626 = vmul.f32 %v4618, %v4402
        %v4627 = vmul.f32 %v4619, 1.442695
        %v4628 = vpow.pop %v4627
        %v4629 = vmul.f32 %v4620, 1.442695
        %v4630 = vpow.pop %v4629
        %v4631 = vmul.f32 %v4621, 1.442695
        %v4632 = vpow.pop %v4631
        %v4633 = vmul.f32 %v4622, 1.442695
        %v4634 = vpow.pop %v4633
        %v4635 = vmul.f32 %v4623, 1.442695
        %v4636 = vpow.pop %v4635
        %v4637 = vmul.f32 %v4624, 1.442695
        %v4638 = vpow.pop %v4637
        %v4639 = vmul.f32 %v4625, 1.442695
        %v4640 = vpow.pop %v4639
        %v4641 = vmul.f32 %v4626, 1.442695
        %v4642 = vpow.pop %v4641
        %v4643 = vmul.f32 %v4603, %v4628
        %v4644 = vmul.f32 %v4604, %v4630
        %v4645 = vmul.f32 %v4605, %v4632
        %v4646 = vmul.f32 %v4606, %v4634
        %v4647 = vmul.f32 %v4607, %v4636
        %v4648 = vmul.f32 %v4608, %v4638
        %v4649 = vmul.f32 %v4609, %v4640
        %v4650 = vmul.f32 %v4610, %v4642
        %v4651 = vsub.f32 1.0, %v4643
        %v4652 = vsub.f32 1.0, %v4644
        %v4653 = vsub.f32 1.0, %v4645
        %v4654 = vsub.f32 1.0, %v4646
        %v4655 = vsub.f32 1.0, %v4647
        %v4656 = vsub.f32 1.0, %v4648
        %v4657 = vsub.f32 1.0, %v4649
        %v4658 = vsub.f32 1.0, %v4650
        %vm4659 = vcmp.ge.f32.partialorder %v4387, 0.0
        %vm4660 = vcmp.ge.f32.partialorder %v4388, 0.0
        %vm4661 = vcmp.ge.f32.partialorder %v4389, 0.0
        %vm4662 = vcmp.ge.f32.partialorder %v4390, 0.0
        %vm4663 = vcmp.ge.f32.partialorder %v4391, 0.0
        %vm4664 = vcmp.ge.f32.partialorder %v4392, 0.0
        %vm4665 = vcmp.ge.f32.partialorder %v4393, 0.0
        %vm4666 = vcmp.ge.f32.partialorder %v4394, 0.0
        %v4667 = vsub.f32 0.0, %v4651
        %v4668 = vsub.f32 0.0, %v4652
        %v4669 = vsub.f32 0.0, %v4653
        %v4670 = vsub.f32 0.0, %v4654
        %v4671 = vsub.f32 0.0, %v4655
        %v4672 = vsub.f32 0.0, %v4656
        %v4673 = vsub.f32 0.0, %v4657
        %v4674 = vsub.f32 0.0, %v4658
        %v4675 = vsel %vm4659, %v4651, %v4667
        %v4676 = vsel %vm4660, %v4652, %v4668
        %v4677 = vsel %vm4661, %v4653, %v4669
        %v4678 = vsel %vm4662, %v4654, %v4670
        %v4679 = vsel %vm4663, %v4655, %v4671
        %v4680 = vsel %vm4664, %v4656, %v4672
        %v4681 = vsel %vm4665, %v4657, %v4673
        %v4682 = vsel %vm4666, %v4658, %v4674
        %v4683 = vadd.f32 %v4675, 1.0
        %v4684 = vadd.f32 %v4676, 1.0
        %v4685 = vadd.f32 %v4677, 1.0
        %v4686 = vadd.f32 %v4678, 1.0
        %v4687 = vadd.f32 %v4679, 1.0
        %v4688 = vadd.f32 %v4680, 1.0
        %v4689 = vadd.f32 %v4681, 1.0
        %v4690 = vadd.f32 %v4682, 1.0
        %v4691 = vmul.f32 %v4379, %v4683
        %v4692 = vmul.f32 %v4380, %v4684
        %v4693 = vmul.f32 %v4381, %v4685
        %v4694 = vmul.f32 %v4382, %v4686
        %v4695 = vmul.f32 %v4383, %v4687
        %v4696 = vmul.f32 %v4384, %v4688
        %v4697 = vmul.f32 %v4385, %v4689
        %v4698 = vmul.f32 %v4386, %v4690
        %v4699 = vld [vmem:[%s11] sm:$0xff]
        %v4700 = vld [vmem:[%s11 + $0x8] sm:$0xff]
        %v4701 = vld [vmem:[%s11 + $0x10] sm:$0xff]
        %v4702 = vld [vmem:[%s11 + $0x18] sm:$0xff]
        %v4703 = vld [vmem:[%s11 + $0x20] sm:$0xff]
        %v4704 = vld [vmem:[%s11 + $0x28] sm:$0xff]
        %v4705 = vld [vmem:[%s11 + $0x30] sm:$0xff]
        %v4706 = vld [vmem:[%s11 + $0x38] sm:$0xff]
        %v4707 = vld [vmem:[%s11 + $0x40] sm:$0xff]
        %v4708 = vld [vmem:[%s11 + $0x48] sm:$0xff]
        %v4709 = vld [vmem:[%s11 + $0x50] sm:$0xff]
        %v4710 = vld [vmem:[%s11 + $0x58] sm:$0xff]
        %v4711 = vld [vmem:[%s11 + $0x60] sm:$0xff]
        %v4712 = vld [vmem:[%s11 + $0x68] sm:$0xff]
        %v4713 = vld [vmem:[%s11 + $0x70] sm:$0xff]
        %v4714 = vld [vmem:[%s11 + $0x78] sm:$0xff]
        %v4715 = vld [vmem:[%s12] sm:$0x1]
        %v4717 = vperm.slane %v4715, 0
        %4719 = vmatpush.msra.mxu0 %v4714
        %4720 = vmatpush.msra.mxu0 %v4713
        %4721 = vmatpush.msra.mxu0 %v4712
        %4722 = vmatpush.msra.mxu0 %v4711
        %4723 = vmatpush.msra.mxu0 %v4710
        %4724 = vmatpush.msra.mxu0 %v4709
        %4725 = vmatpush.msra.mxu0 %v4708
        %4726 = vmatpush.msra.mxu0 %v4707
        %4727 = vmatpush.msra.mxu0 %v4706
        %4728 = vmatpush.msra.mxu0 %v4705
        %4729 = vmatpush.msra.mxu0 %v4704
        %4730 = vmatpush.msra.mxu0 %v4703
        %4731 = vmatpush.msra.mxu0 %v4702
        %4732 = vmatpush.msra.mxu0 %v4701
        %4733 = vmatpush.msra.mxu0 %v4700
        %4734 = vmatpush.msra.mxu0 %v4699
        %4735 = vmatmul.f32.gmra.mxu0 %v4691
        %v4736 = vpop.f32.mrf.mxu0
        %v4737 = vadd.f32 %v4717, %v4736
        %4738 = vmatmul.f32.gmra.mxu0 %v4692
        %v4739 = vpop.f32.mrf.mxu0
        %v4740 = vadd.f32 %v4717, %v4739
        %4741 = vmatmul.f32.gmra.mxu0 %v4693
        %v4742 = vpop.f32.mrf.mxu0
        %v4743 = vadd.f32 %v4717, %v4742
        %4744 = vmatmul.f32.gmra.mxu0 %v4694
        %v4745 = vpop.f32.mrf.mxu0
        %v4746 = vadd.f32 %v4717, %v4745
        %4747 = vmatmul.f32.gmra.mxu0 %v4695
        %v4748 = vpop.f32.mrf.mxu0
        %v4749 = vadd.f32 %v4717, %v4748
        %4750 = vmatmul.f32.gmra.mxu0 %v4696
        %v4751 = vpop.f32.mrf.mxu0
        %v4752 = vadd.f32 %v4717, %v4751
        %4753 = vmatmul.f32.gmra.mxu0 %v4697
        %v4754 = vpop.f32.mrf.mxu0
        %v4755 = vadd.f32 %v4717, %v4754
        %4756 = vmatmul.f32.gmra.mxu0 %v4698
        %v4757 = vpop.f32.mrf.mxu0
        %v4758 = vadd.f32 %v4717, %v4757
        %4759 = vdwg.mxu0
        %v4760 = vld [vmem:[%s13] sm:$0x1]
        %v4761 = vld [vmem:[%s14] sm:$0x1]
        %v4762 = vsel %vm528, %v4737, 0.0
        %4763 = vadd.xlane.f32.xlu0 %v4762
        %v4764 = vpop.xlane.xlu0 %4763
        %v4765 = vsel %vm528, %v4740, 0.0
        %4766 = vadd.xlane.f32.xlu0 %v4765
        %v4767 = vpop.xlane.xlu0 %4766
        %v4768 = vsel %vm528, %v4743, 0.0
        %4769 = vadd.xlane.f32.xlu0 %v4768
        %v4770 = vpop.xlane.xlu0 %4769
        %v4771 = vsel %vm528, %v4746, 0.0
        %4772 = vadd.xlane.f32.xlu0 %v4771
        %v4773 = vpop.xlane.xlu0 %4772
        %v4774 = vsel %vm528, %v4749, 0.0
        %4775 = vadd.xlane.f32.xlu0 %v4774
        %v4776 = vpop.xlane.xlu0 %4775
        %v4777 = vsel %vm528, %v4752, 0.0
        %4778 = vadd.xlane.f32.xlu0 %v4777
        %v4779 = vpop.xlane.xlu0 %4778
        %v4780 = vsel %vm528, %v4755, 0.0
        %4781 = vadd.xlane.f32.xlu0 %v4780
        %v4782 = vpop.xlane.xlu0 %4781
        %v4783 = vsel %vm528, %v4758, 0.0
        %4784 = vadd.xlane.f32.xlu0 %v4783
        %v4785 = vpop.xlane.xlu0 %4784
        %v4786 = vmul.f32 %v4764, %v4123
        %v4787 = vmul.f32 %v4767, %v4123
        %v4788 = vmul.f32 %v4770, %v4123
        %v4789 = vmul.f32 %v4773, %v4123
        %v4790 = vmul.f32 %v4776, %v4123
        %v4791 = vmul.f32 %v4779, %v4123
        %v4792 = vmul.f32 %v4782, %v4123
        %v4793 = vmul.f32 %v4785, %v4123
        %v4794 = vsub.f32 %v4737, %v4786
        %v4795 = vsub.f32 %v4740, %v4787
        %v4796 = vsub.f32 %v4743, %v4788
        %v4797 = vsub.f32 %v4746, %v4789
        %v4798 = vsub.f32 %v4749, %v4790
        %v4799 = vsub.f32 %v4752, %v4791
        %v4800 = vsub.f32 %v4755, %v4792
        %v4801 = vsub.f32 %v4758, %v4793
        %v4802 = vmul.f32 %v4794, %v4794
        %v4803 = vmul.f32 %v4795, %v4795
        %v4804 = vmul.f32 %v4796, %v4796
        %v4805 = vmul.f32 %v4797, %v4797
        %v4806 = vmul.f32 %v4798, %v4798
        %v4807 = vmul.f32 %v4799, %v4799
        %v4808 = vmul.f32 %v4800, %v4800
        %v4809 = vmul.f32 %v4801, %v4801
        %v4810 = vsel %vm528, %v4802, 0.0
        %4811 = vadd.xlane.f32.xlu0 %v4810
        %v4812 = vpop.xlane.xlu0 %4811
        %v4813 = vsel %vm528, %v4803, 0.0
        %4814 = vadd.xlane.f32.xlu0 %v4813
        %v4815 = vpop.xlane.xlu0 %4814
        %v4816 = vsel %vm528, %v4804, 0.0
        %4817 = vadd.xlane.f32.xlu0 %v4816
        %v4818 = vpop.xlane.xlu0 %4817
        %v4819 = vsel %vm528, %v4805, 0.0
        %4820 = vadd.xlane.f32.xlu0 %v4819
        %v4821 = vpop.xlane.xlu0 %4820
        %v4822 = vsel %vm528, %v4806, 0.0
        %4823 = vadd.xlane.f32.xlu0 %v4822
        %v4824 = vpop.xlane.xlu0 %4823
        %v4825 = vsel %vm528, %v4807, 0.0
        %4826 = vadd.xlane.f32.xlu0 %v4825
        %v4827 = vpop.xlane.xlu0 %4826
        %v4828 = vsel %vm528, %v4808, 0.0
        %4829 = vadd.xlane.f32.xlu0 %v4828
        %v4830 = vpop.xlane.xlu0 %4829
        %v4831 = vsel %vm528, %v4809, 0.0
        %4832 = vadd.xlane.f32.xlu0 %v4831
        %v4833 = vpop.xlane.xlu0 %4832
        %v4834 = vmul.f32 %v4812, %v4123
        %v4835 = vmul.f32 %v4815, %v4123
        %v4836 = vmul.f32 %v4818, %v4123
        %v4837 = vmul.f32 %v4821, %v4123
        %v4838 = vmul.f32 %v4824, %v4123
        %v4839 = vmul.f32 %v4827, %v4123
        %v4840 = vmul.f32 %v4830, %v4123
        %v4841 = vmul.f32 %v4833, %v4123
        %v4842 = vadd.f32 %v4834, 1e-05
        %v4843 = vadd.f32 %v4835, 1e-05
        %v4844 = vadd.f32 %v4836, 1e-05
        %v4845 = vadd.f32 %v4837, 1e-05
        %v4846 = vadd.f32 %v4838, 1e-05
        %v4847 = vadd.f32 %v4839, 1e-05
        %v4848 = vadd.f32 %v4840, 1e-05
        %v4849 = vadd.f32 %v4841, 1e-05
        %v4850 = vrsqrt.pop %v4842
        %v4851 = vmul.f32 %v4850, %v4842
        %v4852 = vmul.f32 %v4851, %v4850
        %v4853 = vmul.f32 0.5, %v4852
        %v4854 = vsub.f32 1.5, %v4853
        %v4855 = vmul.f32 %v4850, %v4854
        %vm4856 = vweird.f32 %v4842
        %vm4857 = vweird.f32 %v4850
        %vm4858 = vmor %vm4856, %vm4857
        %v4859 = vsel %vm4858, %v4850, %v4855
        %v4860 = vrsqrt.pop %v4843
        %v4861 = vmul.f32 %v4860, %v4843
        %v4862 = vmul.f32 %v4861, %v4860
        %v4863 = vmul.f32 0.5, %v4862
        %v4864 = vsub.f32 1.5, %v4863
        %v4865 = vmul.f32 %v4860, %v4864
        %vm4866 = vweird.f32 %v4843
        %vm4867 = vweird.f32 %v4860
        %vm4868 = vmor %vm4866, %vm4867
        %v4869 = vsel %vm4868, %v4860, %v4865
        %v4870 = vrsqrt.pop %v4844
        %v4871 = vmul.f32 %v4870, %v4844
        %v4872 = vmul.f32 %v4871, %v4870
        %v4873 = vmul.f32 0.5, %v4872
        %v4874 = vsub.f32 1.5, %v4873
        %v4875 = vmul.f32 %v4870, %v4874
        %vm4876 = vweird.f32 %v4844
        %vm4877 = vweird.f32 %v4870
        %vm4878 = vmor %vm4876, %vm4877
        %v4879 = vsel %vm4878, %v4870, %v4875
        %v4880 = vrsqrt.pop %v4845
        %v4881 = vmul.f32 %v4880, %v4845
        %v4882 = vmul.f32 %v4881, %v4880
        %v4883 = vmul.f32 0.5, %v4882
        %v4884 = vsub.f32 1.5, %v4883
        %v4885 = vmul.f32 %v4880, %v4884
        %vm4886 = vweird.f32 %v4845
        %vm4887 = vweird.f32 %v4880
        %vm4888 = vmor %vm4886, %vm4887
        %v4889 = vsel %vm4888, %v4880, %v4885
        %v4890 = vrsqrt.pop %v4846
        %v4891 = vmul.f32 %v4890, %v4846
        %v4892 = vmul.f32 %v4891, %v4890
        %v4893 = vmul.f32 0.5, %v4892
        %v4894 = vsub.f32 1.5, %v4893
        %v4895 = vmul.f32 %v4890, %v4894
        %vm4896 = vweird.f32 %v4846
        %vm4897 = vweird.f32 %v4890
        %vm4898 = vmor %vm4896, %vm4897
        %v4899 = vsel %vm4898, %v4890, %v4895
        %v4900 = vrsqrt.pop %v4847
        %v4901 = vmul.f32 %v4900, %v4847
        %v4902 = vmul.f32 %v4901, %v4900
        %v4903 = vmul.f32 0.5, %v4902
        %v4904 = vsub.f32 1.5, %v4903
        %v4905 = vmul.f32 %v4900, %v4904
        %vm4906 = vweird.f32 %v4847
        %vm4907 = vweird.f32 %v4900
        %vm4908 = vmor %vm4906, %vm4907
        %v4909 = vsel %vm4908, %v4900, %v4905
        %v4910 = vrsqrt.pop %v4848
        %v4911 = vmul.f32 %v4910, %v4848
        %v4912 = vmul.f32 %v4911, %v4910
        %v4913 = vmul.f32 0.5, %v4912
        %v4914 = vsub.f32 1.5, %v4913
        %v4915 = vmul.f32 %v4910, %v4914
        %vm4916 = vweird.f32 %v4848
        %vm4917 = vweird.f32 %v4910
        %vm4918 = vmor %vm4916, %vm4917
        %v4919 = vsel %vm4918, %v4910, %v4915
        %v4920 = vrsqrt.pop %v4849
        %v4921 = vmul.f32 %v4920, %v4849
        %v4922 = vmul.f32 %v4921, %v4920
        %v4923 = vmul.f32 0.5, %v4922
        %v4924 = vsub.f32 1.5, %v4923
        %v4925 = vmul.f32 %v4920, %v4924
        %vm4926 = vweird.f32 %v4849
        %vm4927 = vweird.f32 %v4920
        %vm4928 = vmor %vm4926, %vm4927
        %v4929 = vsel %vm4928, %v4920, %v4925
        %v4930 = vmul.f32 %v4794, %v4859
        %v4931 = vmul.f32 %v4795, %v4869
        %v4932 = vmul.f32 %v4796, %v4879
        %v4933 = vmul.f32 %v4797, %v4889
        %v4934 = vmul.f32 %v4798, %v4899
        %v4935 = vmul.f32 %v4799, %v4909
        %v4936 = vmul.f32 %v4800, %v4919
        %v4937 = vmul.f32 %v4801, %v4929
        %v4939 = vperm.slane %v4760, 0
        %v4941 = vmul.f32 %v4930, %v4939
        %v4942 = vmul.f32 %v4931, %v4939
        %v4943 = vmul.f32 %v4932, %v4939
        %v4944 = vmul.f32 %v4933, %v4939
        %v4945 = vmul.f32 %v4934, %v4939
        %v4946 = vmul.f32 %v4935, %v4939
        %v4947 = vmul.f32 %v4936, %v4939
        %v4948 = vmul.f32 %v4937, %v4939
        %v4950 = vperm.slane %v4761, 0
        %v4952 = vadd.f32 %v4941, %v4950
        %v4953 = vadd.f32 %v4942, %v4950
        %v4954 = vadd.f32 %v4943, %v4950
        %v4955 = vadd.f32 %v4944, %v4950
        %v4956 = vadd.f32 %v4945, %v4950
        %v4957 = vadd.f32 %v4946, %v4950
        %v4958 = vadd.f32 %v4947, %v4950
        %v4959 = vadd.f32 %v4948, %v4950
        %v4960 = vadd.f32 %v4298, %v4952
        %v4961 = vadd.f32 %v4299, %v4953
        %v4962 = vadd.f32 %v4300, %v4954
        %v4963 = vadd.f32 %v4301, %v4955
        %v4964 = vadd.f32 %v4302, %v4956
        %v4965 = vadd.f32 %v4303, %v4957
        %v4966 = vadd.f32 %v4304, %v4958
        %v4967 = vadd.f32 %v4305, %v4959
        %4968 = vst.msk [vmem:[%s510] sm:$0xff] %vm528, %v4960
        %4969 = vst.msk [vmem:[%s510 + $0x8] sm:$0xff] %vm528, %v4961
        %4970 = vst.msk [vmem:[%s510 + $0x10] sm:$0xff] %vm528, %v4962
        %4971 = vst.msk [vmem:[%s510 + $0x18] sm:$0xff] %vm528, %v4963
        %4972 = vst.msk [vmem:[%s510 + $0x20] sm:$0xff] %vm528, %v4964
        %4973 = vst.msk [vmem:[%s510 + $0x28] sm:$0xff] %vm528, %v4965
        %4974 = vst.msk [vmem:[%s510 + $0x30] sm:$0xff] %vm528, %v4966
        %4975 = vst.msk [vmem:[%s510 + $0x38] sm:$0xff] %vm528, %v4967
        %s4976 = smul.u32 8, %s27
        %p4977 = scmp.lt.s32.totalorder %s4976, 15
        %s4978 = scalar_select %p4977, %s4976, 15
        %s4979 = smul.addr %s4978, 8
        %s4980 = scalar_lea.vmem %s15, %s4979
        // Predicated region
        $region85: #{tpu_custom_call.1} parent=79 // pred_check
          %p4981 = pneg %p365
        $region86: #{tpu_custom_call.1} parent=79 // pred_check_branch
          %4983 = sbr.rel (%p4981) target = $region88
        $region87: #{tpu_custom_call.1} parent=79 // pred_region
          %s4984 = smul.u32 8, %s27
        $region88: #{tpu_custom_call.1} parent=79 // pred_fallthru
          _
      $region80: #{tpu_custom_call.1} parent=5 // pred_fallthru
        _
      %p4985 = scmp.le.s32.totalorder 2, %s22
      // Predicated region
      $region89: #{tpu_custom_call.1} parent=5 // pred_check
        %p4986 = pneg %p4985
      $region90: #{tpu_custom_call.1} parent=5 // pred_check_branch
        %4988 = sbr.rel (%p4986) target = $region92
      $region91: #{tpu_custom_call.1} parent=5 // pred_region
        %s4989 = ssub.s32 %s22, 2
        // Predicated region
        $region93: #{tpu_custom_call.1} parent=91 // pred_check
          %p4990 = pneg %p371
        $region94: #{tpu_custom_call.1} parent=91 // pred_check_branch
          %4992 = sbr.rel (%p4990) target = $region96
        $region95: #{tpu_custom_call.1} parent=91 // pred_region
          %s4993 = smul.u32 8, %s28
          %p4994 = scmp.lt.s32.totalorder %s4993, 15
          %s4995 = scalar_select %p4994, %s4993, 15
          %s4996 = smul.addr %s4995, 8
          %s4997 = scalar_lea.vmem %s15, %s4996
        $region96: #{tpu_custom_call.1} parent=91 // pred_fallthru
          _
      $region92: #{tpu_custom_call.1} parent=5 // pred_fallthru
        _
    $region6: #{tpu_custom_call.1} parent=1 // loop_footer
      %s26 = sadd.s32 1, %s22
    $region7: #{tpu_custom_call.1} parent=1 // loop_footer_branch
      %21 = sbr.rel target = $region3
    $region8: #{tpu_custom_call.1} parent=1 // loop_exit
      _
    %4998 = vsyncpa [#allocation3], 1
    %s4999 = scalar_lea.sflag [#allocation3], 1
    %5000 = vsyncpa %s4999, 1

</llo_original>
